<compile_context>
chip_gen: v7x
topology: tpu7x:2x2x1
jax: 0.10.0
libtpu: 0.0.40
codegen_flags: <defaults>
</compile_context>

<pallas_src>
import functools

import jax
import jax.numpy as jnp
from jax import lax
from jax.experimental import pallas as pl
from jax.experimental.pallas import tpu as pltpu

EPS = 1e-5
LANE = 128


def _round_up(x, m):
    return (x + m - 1) // m * m


# ------------------------------ Pallas kernel -------------------------------

def _preact_block_kernel(*args, stride, OH, OW, Cin, Cout_p):
    """Whole PreActBlock for one image, fully resident in VMEM (NHWC, C on lanes)."""
    if stride == 1:
        (x_ref, sc_ref, s0_ref, b0_ref, w0_ref, b1_ref, w1_ref,
         o_ref, p_full, y1pad, acc) = args
        phase_in = (x_ref,)
        phase_scr = (p_full,)
    else:  # stride == 2
        (x_ee, x_eo, x_oe, x_oo, s0_ref, b0_ref, w0_ref, b1_ref,
         wsk_ref, bsk_ref, w1_ref,
         o_ref, p_ee, p_eo, p_oe, p_oo, y1pad, acc) = args
        phase_in = (x_ee, x_eo, x_oe, x_oo)
        phase_scr = (p_ee, p_eo, p_oe, p_oo)

    scale0 = s0_ref[...]                    # (1, Cin) f32
    bias0 = b0_ref[...]

    # --- out0 = relu(bn0(x)) written into zero-padded VMEM scratches (conv0 prologue)
    for xr, pr in zip(phase_in, phase_scr):
        ph, pw = xr.shape[1], xr.shape[2]
        pr[...] = jnp.zeros_like(pr)
        pr[1:1 + ph, 1:1 + pw, :] = jnp.maximum(xr[0] * scale0 + bias0, 0.0)

    def conv0_tap(kh, kw):
        # (OH, OW, Cin) input slab for conv0 tap (kh, kw); always contiguous.
        if stride == 1:
            return phase_scr[0][kh:kh + OH, kw:kw + OW, :]
        pr = phase_scr[(0 if kh == 1 else 1) * 2 + (0 if kw == 1 else 1)]
        rs = 0 if kh == 0 else 1
        cs = 0 if kw == 0 else 1
        return pr[rs:rs + OH, cs:cs + OW, :]

    # --- conv0 (bn1 scale pre-folded into w0): 9-tap MXU accumulation, f32 acc
    acc[...] = jnp.zeros_like(acc)
    for kh in range(3):
        for kw in range(3):
            a = conv0_tap(kh, kw).reshape(OH * OW, Cin).astype(jnp.bfloat16)
            acc[...] += jnp.dot(a, w0_ref[kh * 3 + kw],
                                preferred_element_type=jnp.float32)
    y1 = jnp.maximum(acc[...] + b1_ref[...], 0.0)     # relu(bn1(conv0(out0)))

    y1pad[...] = jnp.zeros_like(y1pad)
    y1pad[1:1 + OH, 1:1 + OW, :] = y1.reshape(OH, OW, Cout_p)

    # --- shortcut -> conv1 accumulator init (residual add fused into epilogue)
    if stride == 1:
        acc[...] = sc_ref[0]                          # x, channel-padded
    else:
        # skip_conv input = out0 at even/even positions = interior of p_ee.
        sk = phase_scr[0][1:1 + OH, 1:1 + OW, :].reshape(OH * OW, Cin)
        acc[...] = (jnp.dot(sk.astype(jnp.bfloat16), wsk_ref[...],
                            preferred_element_type=jnp.float32) + bsk_ref[...])

    # --- conv1 (3x3, stride 1, pad 1): 9-tap MXU accumulation
    for kh in range(3):
        for kw in range(3):
            a = y1pad[kh:kh + OH, kw:kw + OW, :].reshape(OH * OW, Cout_p)
            acc[...] += jnp.dot(a.astype(jnp.bfloat16), w1_ref[kh * 3 + kw],
                                preferred_element_type=jnp.float32)

    o_ref[0] = acc[...]                               # lane-dense (OH*OW, Cout_p)


# -------------------------------- JAX wrapper --------------------------------

def _bn_scale_bias(bn):
    gamma, beta, mean, var = bn
    s = gamma / jnp.sqrt(var + EPS)
    return s.astype(jnp.float32), (beta - mean * s).astype(jnp.float32)


def _w_to_taps(w_oihw):
    # torch (O, I, KH, KW) -> (KH*KW, I, O), tap-major to match the kernel loop.
    o, i, kh, kw = w_oihw.shape
    return jnp.transpose(w_oihw, (2, 3, 1, 0)).reshape(kh * kw, i, o)


def preact_block_forward(x_nchw, params, stride):
    assert stride in (1, 2), "ResNet PreActBlock only uses stride 1 or 2"
    N, Cin, H, W = x_nchw.shape
    Cout = params["conv0_w"].shape[0]
    assert H % stride == 0 and W % stride == 0
    OH, OW = H // stride, W // stride
    Cout_p = _round_up(Cout, LANE)                    # lane-dense output channels

    s0, b0 = _bn_scale_bias(params["bn0"])
    s1, b1 = _bn_scale_bias(params["bn1"])

    w0 = _w_to_taps(params["conv0_w"]) * s1[None, None, :]        # fold bn1 scale
    w0 = jnp.pad(w0, ((0, 0), (0, 0), (0, Cout_p - Cout))).astype(jnp.bfloat16)
    w1 = _w_to_taps(params["conv1_w"])
    w1 = jnp.pad(w1, ((0, 0), (0, Cout_p - Cout),
                      (0, Cout_p - Cout))).astype(jnp.bfloat16)
    b1p = jnp.pad(b1, (0, Cout_p - Cout)).reshape(1, Cout_p)

    x_nhwc = jnp.transpose(x_nchw, (0, 2, 3, 1)).astype(jnp.float32)
    s0r = s0.reshape(1, Cin)
    b0r = b0.reshape(1, Cin)

    def full_spec(shape):
        return pl.BlockSpec(shape, lambda *_: (0,) * len(shape))

    if stride == 1:
        # Module only builds skip_conv when stride != 1, so identity shortcut
        # implies in_planes == out_planes (same constraint as `out += shortcut`).
        assert Cin == Cout, "identity shortcut requires in_planes == out_planes"
        sc_in = jnp.pad(x_nhwc, ((0, 0), (0, 0), (0, 0), (0, Cout_p - Cin)))
        sc_in = sc_in.reshape(N, H * W, Cout_p)
        inputs = (x_nhwc, sc_in, s0r, b0r, w0, b1p, w1)
        in_specs = [
            pl.BlockSpec((1, H, W, Cin), lambda n: (n, 0, 0, 0)),
            pl.BlockSpec((1, H * W, Cout_p), lambda n: (n, 0, 0)),
            full_spec((1, Cin)), full_spec((1, Cin)),
            full_spec((9, Cin, Cout_p)), full_spec((1, Cout_p)),
            full_spec((9, Cout_p, Cout_p)),
        ]
        scratch = [
            pltpu.VMEM((H + 2, W + 2, Cin), jnp.float32),        # zero-padded out0
            pltpu.VMEM((OH + 2, OW + 2, Cout_p), jnp.float32),   # zero-padded y1
            pltpu.VMEM((OH * OW, Cout_p), jnp.float32),          # f32 accumulator
        ]
    else:
        ssk, bsk = _bn_scale_bias(params["skip_bn"])
        wsk = params["skip_w"].reshape(Cout, Cin).T * ssk[None, :]   # fold skip_bn scale
        wsk = jnp.pad(wsk, ((0, 0), (0, Cout_p - Cout))).astype(jnp.bfloat16)
        bskp = jnp.pad(bsk, (0, Cout_p - Cout)).reshape(1, Cout_p)
        # Even/odd spatial phases of x (one fused XLA repack): every strided
        # conv0 tap and the 1x1 skip gather become contiguous in-kernel slices.
        phases = tuple(x_nhwc[:, pr::2, pc::2, :] for pr in (0, 1) for pc in (0, 1))
        inputs = phases + (s0r, b0r, w0, b1p, wsk, bskp, w1)
        phase_spec = pl.BlockSpec((1, OH, OW, Cin), lambda n: (n, 0, 0, 0))
        in_specs = [phase_spec] * 4 + [
            full_spec((1, Cin)), full_spec((1, Cin)),
            full_spec((9, Cin, Cout_p)), full_spec((1, Cout_p)),
            full_spec((Cin, Cout_p)), full_spec((1, Cout_p)),
            full_spec((9, Cout_p, Cout_p)),
        ]
        scratch = [pltpu.VMEM((OH + 1, OW + 1, Cin), jnp.float32)
                   for _ in range(4)] + [
            pltpu.VMEM((OH + 2, OW + 2, Cout_p), jnp.float32),   # zero-padded y1
            pltpu.VMEM((OH * OW, Cout_p), jnp.float32),          # f32 accumulator
        ]

    kernel = functools.partial(_preact_block_kernel, stride=stride,
                               OH=OH, OW=OW, Cin=Cin, Cout_p=Cout_p)
    out = pl.pallas_call(
        kernel,
        out_shape=jax.ShapeDtypeStruct((N, OH * OW, Cout_p), jnp.float32),
        grid_spec=pltpu.PrefetchScalarGridSpec(
            num_scalar_prefetch=0,
            grid=(N,),
            in_specs=in_specs,
            out_specs=pl.BlockSpec((1, OH * OW, Cout_p), lambda n: (n, 0, 0)),
            scratch_shapes=scratch,
        ),
        compiler_params=pltpu.CompilerParams(dimension_semantics=("parallel",)),
    )(*inputs)

    out = out[:, :, :Cout].reshape(N, OH, OW, Cout)
    return jnp.transpose(out, (0, 3, 1, 2))           # back to NCHW


# ---------------------------- plain-JAX reference ----------------------------

def reference_forward(x, params, stride):
    def bn(t, p):
        g, b, m, v = p
        s = g / jnp.sqrt(v + EPS)
        return t * s[None, :, None, None] + (b - m * s)[None, :, None, None]

    dn = ("NCHW", "OIHW", "NCHW")
    out = jax.nn.relu(bn(x, params["bn0"]))
    if stride != 1:
        sc = lax.conv_general_dilated(out, params["skip_w"], (stride, stride),
                                      "VALID", dimension_numbers=dn)
        sc = bn(sc, params["skip_bn"])
    else:
        sc = x
    out = lax.conv_general_dilated(out, params["conv0_w"], (stride, stride),
                                   ((1, 1), (1, 1)), dimension_numbers=dn)
    out = jax.nn.relu(bn(out, params["bn1"]))
    out = lax.conv_general_dilated(out, params["conv1_w"], (1, 1),
                                   ((1, 1), (1, 1)), dimension_numbers=dn)
    return out + sc


# ----------------------------------- main ------------------------------------

def make_bn_params(key, c):
    k1, k2, k3, k4 = jax.random.split(key, 4)
    gamma = jax.random.uniform(k1, (c,), jnp.float32, 0.5, 1.5)
    beta = jax.random.normal(k2, (c,), jnp.float32) * 0.1
    mean = jax.random.normal(k3, (c,), jnp.float32) * 0.1
    var = jax.random.uniform(k4, (c,), jnp.float32, 0.5, 1.5)
    return (gamma, beta, mean, var)


def make_params(key, cin, cout, stride):
    keys = jax.random.split(key, 6)
    p = {
        "bn0": make_bn_params(keys[0], cin),
        "conv0_w": jax.random.normal(keys[1], (cout, cin, 3, 3), jnp.float32) * 0.1,
        "bn1": make_bn_params(keys[2], cout),
        "conv1_w": jax.random.normal(keys[3], (cout, cout, 3, 3), jnp.float32) * 0.1,
    }
    if stride != 1:
        p["skip_w"] = jax.random.normal(keys[4], (cout, cin, 1, 1), jnp.float32) * 0.1
        p["skip_bn"] = make_bn_params(keys[5], cout)
    return p


if __name__ == "__main__":
    key = jax.random.PRNGKey(0)
    k1, k2, k3, k4 = jax.random.split(key, 4)

    # Downsampling block: in_planes=4 -> out_planes=8, stride=2 (conv shortcut).
    x_a = jax.random.normal(k1, (2, 4, 16, 16), jnp.float32)
    p_a = make_params(k2, 4, 8, 2)
    out_a = jax.block_until_ready(preact_block_forward(x_a, p_a, 2))
    ref_a = jax.block_until_ready(reference_forward(x_a, p_a, 2))
    assert out_a.shape == (2, 8, 8, 8), out_a.shape
    err_a = float(jnp.max(jnp.abs(out_a - ref_a)))
    # bf16 MXU operands (f32 accumulation) -> tolerance relaxed vs. f32 ref.
    assert jnp.allclose(out_a, ref_a, rtol=4e-2, atol=4e-2), err_a

    # Identity-shortcut block: in_planes = out_planes = 8, stride=1.
    x_b = jax.random.normal(k3, (2, 8, 8, 8), jnp.float32)
    p_b = make_params(k4, 8, 8, 1)
    out_b = jax.block_until_ready(preact_block_forward(x_b, p_b, 1))
    ref_b = jax.block_until_ready(reference_forward(x_b, p_b, 1))
    assert out_b.shape == (2, 8, 8, 8), out_b.shape
    err_b = float(jnp.max(jnp.abs(out_b - ref_b)))
    assert jnp.allclose(out_b, ref_b, rtol=4e-2, atol=4e-2), err_b

    print("KERNEL_OK")
</pallas_src>

<mosaic_0001>
module attributes {stable_mosaic.version = 11 : i64} {
  func.func @_preact_block_kernel(%arg0: i32, %arg1: memref<1x8x8x4xf32, #tpu.memory_space<vmem>>, %arg2: memref<1x8x8x4xf32, #tpu.memory_space<vmem>>, %arg3: memref<1x8x8x4xf32, #tpu.memory_space<vmem>>, %arg4: memref<1x8x8x4xf32, #tpu.memory_space<vmem>>, %arg5: memref<1x4xf32, #tpu.memory_space<vmem>>, %arg6: memref<1x4xf32, #tpu.memory_space<vmem>>, %arg7: memref<9x4x128xbf16, #tpu.memory_space<vmem>>, %arg8: memref<1x128xf32, #tpu.memory_space<vmem>>, %arg9: memref<4x128xbf16, #tpu.memory_space<vmem>>, %arg10: memref<1x128xf32, #tpu.memory_space<vmem>>, %arg11: memref<9x128x128xbf16, #tpu.memory_space<vmem>>, %arg12: memref<1x64x128xf32, #tpu.memory_space<vmem>>, %arg13: memref<9x9x4xf32, #tpu.memory_space<vmem>>, %arg14: memref<9x9x4xf32, #tpu.memory_space<vmem>>, %arg15: memref<9x9x4xf32, #tpu.memory_space<vmem>>, %arg16: memref<9x9x4xf32, #tpu.memory_space<vmem>>, %arg17: memref<10x10x128xf32, #tpu.memory_space<vmem>>, %arg18: memref<64x128xf32, #tpu.memory_space<vmem>>) attributes {dimension_semantics = [#tpu.dimension_semantics<parallel>], iteration_bounds = array<i64: 2>, scalar_prefetch = 0 : i64, scratch_operands = 6 : i64, tpu.core_type = #tpu.core_type<tc>, window_params = [{transform_indices = @transform_0, window_bounds = array<i64: 1, 8, 8, 4>}, {transform_indices = @transform_1, window_bounds = array<i64: 1, 8, 8, 4>}, {transform_indices = @transform_2, window_bounds = array<i64: 1, 8, 8, 4>}, {transform_indices = @transform_3, window_bounds = array<i64: 1, 8, 8, 4>}, {pipeline_mode = #tpu.pipeline_mode<synchronous>, transform_indices = @transform_4, window_bounds = array<i64: 1, 4>}, {pipeline_mode = #tpu.pipeline_mode<synchronous>, transform_indices = @transform_5, window_bounds = array<i64: 1, 4>}, {pipeline_mode = #tpu.pipeline_mode<synchronous>, transform_indices = @transform_6, window_bounds = array<i64: 9, 4, 128>}, {pipeline_mode = #tpu.pipeline_mode<synchronous>, transform_indices = @transform_7, window_bounds = array<i64: 1, 128>}, {pipeline_mode = #tpu.pipeline_mode<synchronous>, transform_indices = @transform_8, window_bounds = array<i64: 4, 128>}, {pipeline_mode = #tpu.pipeline_mode<synchronous>, transform_indices = @transform_9, window_bounds = array<i64: 1, 128>}, {pipeline_mode = #tpu.pipeline_mode<synchronous>, transform_indices = @transform_10, window_bounds = array<i64: 9, 128, 128>}, {transform_indices = @transform_11, window_bounds = array<i64: 1, 64, 128>}]} {
    %c0 = arith.constant 0 : index
    %c0_0 = arith.constant 0 : index
    %0 = vector.load %arg5[%c0, %c0_0] : memref<1x4xf32, #tpu.memory_space<vmem>>, vector<1x4xf32>
    %c0_1 = arith.constant 0 : index
    %c0_2 = arith.constant 0 : index
    %1 = vector.load %arg6[%c0_1, %c0_2] : memref<1x4xf32, #tpu.memory_space<vmem>>, vector<1x4xf32>
    %cst = arith.constant 0.000000e+00 : f32
    %2 = vector.broadcast %cst : f32 to vector<9x9x4xf32>
    %c0_3 = arith.constant 0 : index
    %c0_4 = arith.constant 0 : index
    %c0_5 = arith.constant 0 : index
    %3 = vector.load %arg13[%c0_3, %c0_4, %c0_5] : memref<9x9x4xf32, #tpu.memory_space<vmem>>, vector<9x9x4xf32>
    tpu.vector_store %arg13[%c0_3, %c0_4, %c0_5], %2 {strides = array<i32>} : memref<9x9x4xf32, #tpu.memory_space<vmem>>, vector<9x9x4xf32>,
    %c0_6 = arith.constant 0 : index
    %c0_7 = arith.constant 0 : index
    %c0_8 = arith.constant 0 : index
    %c0_9 = arith.constant 0 : index
    %4 = vector.load %arg1[%c0_6, %c0_7, %c0_8, %c0_9] : memref<1x8x8x4xf32, #tpu.memory_space<vmem>>, vector<1x8x8x4xf32>
    %5 = vector.shape_cast %4 : vector<1x8x8x4xf32> to vector<8x8x4xf32>
    %6 = vector.shape_cast %0 : vector<1x4xf32> to vector<1x1x4xf32>
    %7 = vector.broadcast %6 : vector<1x1x4xf32> to vector<8x8x4xf32>
    %8 = arith.mulf %5, %7 : vector<8x8x4xf32>
    %9 = vector.shape_cast %1 : vector<1x4xf32> to vector<1x1x4xf32>
    %10 = vector.broadcast %9 : vector<1x1x4xf32> to vector<8x8x4xf32>
    %11 = arith.addf %8, %10 : vector<8x8x4xf32>
    %cst_10 = arith.constant 0.000000e+00 : f32
    %12 = vector.broadcast %cst_10 : f32 to vector<8x8x4xf32>
    %13 = arith.maximumf %11, %12 : vector<8x8x4xf32>
    %c1 = arith.constant 1 : index
    %c1_11 = arith.constant 1 : index
    %c0_12 = arith.constant 0 : index
    %14 = vector.load %arg13[%c1, %c1_11, %c0_12] : memref<9x9x4xf32, #tpu.memory_space<vmem>>, vector<8x8x4xf32>
    tpu.vector_store %arg13[%c1, %c1_11, %c0_12], %13 {strides = array<i32>} : memref<9x9x4xf32, #tpu.memory_space<vmem>>, vector<8x8x4xf32>,
    %cst_13 = arith.constant 0.000000e+00 : f32
    %15 = vector.broadcast %cst_13 : f32 to vector<9x9x4xf32>
    %c0_14 = arith.constant 0 : index
    %c0_15 = arith.constant 0 : index
    %c0_16 = arith.constant 0 : index
    %16 = vector.load %arg14[%c0_14, %c0_15, %c0_16] : memref<9x9x4xf32, #tpu.memory_space<vmem>>, vector<9x9x4xf32>
    tpu.vector_store %arg14[%c0_14, %c0_15, %c0_16], %15 {strides = array<i32>} : memref<9x9x4xf32, #tpu.memory_space<vmem>>, vector<9x9x4xf32>,
    %c0_17 = arith.constant 0 : index
    %c0_18 = arith.constant 0 : index
    %c0_19 = arith.constant 0 : index
    %c0_20 = arith.constant 0 : index
    %17 = vector.load %arg2[%c0_17, %c0_18, %c0_19, %c0_20] : memref<1x8x8x4xf32, #tpu.memory_space<vmem>>, vector<1x8x8x4xf32>
    %18 = vector.shape_cast %17 : vector<1x8x8x4xf32> to vector<8x8x4xf32>
    %19 = vector.shape_cast %0 : vector<1x4xf32> to vector<1x1x4xf32>
    %20 = vector.broadcast %19 : vector<1x1x4xf32> to vector<8x8x4xf32>
    %21 = arith.mulf %18, %20 : vector<8x8x4xf32>
    %22 = vector.shape_cast %1 : vector<1x4xf32> to vector<1x1x4xf32>
    %23 = vector.broadcast %22 : vector<1x1x4xf32> to vector<8x8x4xf32>
    %24 = arith.addf %21, %23 : vector<8x8x4xf32>
    %cst_21 = arith.constant 0.000000e+00 : f32
    %25 = vector.broadcast %cst_21 : f32 to vector<8x8x4xf32>
    %26 = arith.maximumf %24, %25 : vector<8x8x4xf32>
    %c1_22 = arith.constant 1 : index
    %c1_23 = arith.constant 1 : index
    %c0_24 = arith.constant 0 : index
    %27 = vector.load %arg14[%c1_22, %c1_23, %c0_24] : memref<9x9x4xf32, #tpu.memory_space<vmem>>, vector<8x8x4xf32>
    tpu.vector_store %arg14[%c1_22, %c1_23, %c0_24], %26 {strides = array<i32>} : memref<9x9x4xf32, #tpu.memory_space<vmem>>, vector<8x8x4xf32>,
    %cst_25 = arith.constant 0.000000e+00 : f32
    %28 = vector.broadcast %cst_25 : f32 to vector<9x9x4xf32>
    %c0_26 = arith.constant 0 : index
    %c0_27 = arith.constant 0 : index
    %c0_28 = arith.constant 0 : index
    %29 = vector.load %arg15[%c0_26, %c0_27, %c0_28] : memref<9x9x4xf32, #tpu.memory_space<vmem>>, vector<9x9x4xf32>
    tpu.vector_store %arg15[%c0_26, %c0_27, %c0_28], %28 {strides = array<i32>} : memref<9x9x4xf32, #tpu.memory_space<vmem>>, vector<9x9x4xf32>,
    %c0_29 = arith.constant 0 : index
    %c0_30 = arith.constant 0 : index
    %c0_31 = arith.constant 0 : index
    %c0_32 = arith.constant 0 : index
    %30 = vector.load %arg3[%c0_29, %c0_30, %c0_31, %c0_32] : memref<1x8x8x4xf32, #tpu.memory_space<vmem>>, vector<1x8x8x4xf32>
    %31 = vector.shape_cast %30 : vector<1x8x8x4xf32> to vector<8x8x4xf32>
    %32 = vector.shape_cast %0 : vector<1x4xf32> to vector<1x1x4xf32>
    %33 = vector.broadcast %32 : vector<1x1x4xf32> to vector<8x8x4xf32>
    %34 = arith.mulf %31, %33 : vector<8x8x4xf32>
    %35 = vector.shape_cast %1 : vector<1x4xf32> to vector<1x1x4xf32>
    %36 = vector.broadcast %35 : vector<1x1x4xf32> to vector<8x8x4xf32>
    %37 = arith.addf %34, %36 : vector<8x8x4xf32>
    %cst_33 = arith.constant 0.000000e+00 : f32
    %38 = vector.broadcast %cst_33 : f32 to vector<8x8x4xf32>
    %39 = arith.maximumf %37, %38 : vector<8x8x4xf32>
    %c1_34 = arith.constant 1 : index
    %c1_35 = arith.constant 1 : index
    %c0_36 = arith.constant 0 : index
    %40 = vector.load %arg15[%c1_34, %c1_35, %c0_36] : memref<9x9x4xf32, #tpu.memory_space<vmem>>, vector<8x8x4xf32>
    tpu.vector_store %arg15[%c1_34, %c1_35, %c0_36], %39 {strides = array<i32>} : memref<9x9x4xf32, #tpu.memory_space<vmem>>, vector<8x8x4xf32>,
    %cst_37 = arith.constant 0.000000e+00 : f32
    %41 = vector.broadcast %cst_37 : f32 to vector<9x9x4xf32>
    %c0_38 = arith.constant 0 : index
    %c0_39 = arith.constant 0 : index
    %c0_40 = arith.constant 0 : index
    %42 = vector.load %arg16[%c0_38, %c0_39, %c0_40] : memref<9x9x4xf32, #tpu.memory_space<vmem>>, vector<9x9x4xf32>
    tpu.vector_store %arg16[%c0_38, %c0_39, %c0_40], %41 {strides = array<i32>} : memref<9x9x4xf32, #tpu.memory_space<vmem>>, vector<9x9x4xf32>,
    %c0_41 = arith.constant 0 : index
    %c0_42 = arith.constant 0 : index
    %c0_43 = arith.constant 0 : index
    %c0_44 = arith.constant 0 : index
    %43 = vector.load %arg4[%c0_41, %c0_42, %c0_43, %c0_44] : memref<1x8x8x4xf32, #tpu.memory_space<vmem>>, vector<1x8x8x4xf32>
    %44 = vector.shape_cast %43 : vector<1x8x8x4xf32> to vector<8x8x4xf32>
    %45 = vector.shape_cast %0 : vector<1x4xf32> to vector<1x1x4xf32>
    %46 = vector.broadcast %45 : vector<1x1x4xf32> to vector<8x8x4xf32>
    %47 = arith.mulf %44, %46 : vector<8x8x4xf32>
    %48 = vector.shape_cast %1 : vector<1x4xf32> to vector<1x1x4xf32>
    %49 = vector.broadcast %48 : vector<1x1x4xf32> to vector<8x8x4xf32>
    %50 = arith.addf %47, %49 : vector<8x8x4xf32>
    %cst_45 = arith.constant 0.000000e+00 : f32
    %51 = vector.broadcast %cst_45 : f32 to vector<8x8x4xf32>
    %52 = arith.maximumf %50, %51 : vector<8x8x4xf32>
    %c1_46 = arith.constant 1 : index
    %c1_47 = arith.constant 1 : index
    %c0_48 = arith.constant 0 : index
    %53 = vector.load %arg16[%c1_46, %c1_47, %c0_48] : memref<9x9x4xf32, #tpu.memory_space<vmem>>, vector<8x8x4xf32>
    tpu.vector_store %arg16[%c1_46, %c1_47, %c0_48], %52 {strides = array<i32>} : memref<9x9x4xf32, #tpu.memory_space<vmem>>, vector<8x8x4xf32>,
    %cst_49 = arith.constant 0.000000e+00 : f32
    %54 = vector.broadcast %cst_49 : f32 to vector<64x128xf32>
    %c0_50 = arith.constant 0 : index
    %c0_51 = arith.constant 0 : index
    %55 = vector.load %arg18[%c0_50, %c0_51] : memref<64x128xf32, #tpu.memory_space<vmem>>, vector<64x128xf32>
    tpu.vector_store %arg18[%c0_50, %c0_51], %54 {strides = array<i32>} : memref<64x128xf32, #tpu.memory_space<vmem>>, vector<64x128xf32>,
    %c0_52 = arith.constant 0 : index
    %c0_53 = arith.constant 0 : index
    %c0_54 = arith.constant 0 : index
    %56 = vector.load %arg16[%c0_52, %c0_53, %c0_54] : memref<9x9x4xf32, #tpu.memory_space<vmem>>, vector<8x8x4xf32>
    %57 = vector.shape_cast %56 : vector<8x8x4xf32> to vector<64x4xf32>
    %58 = arith.truncf %57 : vector<64x4xf32> to vector<64x4xbf16>
    %c0_55 = arith.constant 0 : index
    %c0_56 = arith.constant 0 : index
    %59 = vector.load %arg18[%c0_55, %c0_56] : memref<64x128xf32, #tpu.memory_space<vmem>>, vector<64x128xf32>
    %c0_57 = arith.constant 0 : index
    %c0_58 = arith.constant 0 : index
    %c0_59 = arith.constant 0 : index
    %60 = vector.load %arg7[%c0_57, %c0_58, %c0_59] : memref<9x4x128xbf16, #tpu.memory_space<vmem>>, vector<1x4x128xbf16>
    %61 = vector.shape_cast %60 : vector<1x4x128xbf16> to vector<4x128xbf16>
    %cst_60 = arith.constant dense<0.000000e+00> : vector<64x128xf32>
    %62 = tpu.matmul %58, %61, %cst_60 {dimension_numbers = #tpu.dot_dimension_numbers<[1], [0], [0], [1], [0, 0, 1, 1], [], []>} : vector<64x4xbf16>, vector<4x128xbf16>, vector<64x128xf32> -> vector<64x128xf32>
    %63 = arith.addf %59, %62 : vector<64x128xf32>
    %c0_61 = arith.constant 0 : index
    %c0_62 = arith.constant 0 : index
    %64 = vector.load %arg18[%c0_61, %c0_62] : memref<64x128xf32, #tpu.memory_space<vmem>>, vector<64x128xf32>
    tpu.vector_store %arg18[%c0_61, %c0_62], %63 {strides = array<i32>} : memref<64x128xf32, #tpu.memory_space<vmem>>, vector<64x128xf32>,
    %c0_63 = arith.constant 0 : index
    %c1_64 = arith.constant 1 : index
    %c0_65 = arith.constant 0 : index
    %65 = vector.load %arg15[%c0_63, %c1_64, %c0_65] : memref<9x9x4xf32, #tpu.memory_space<vmem>>, vector<8x8x4xf32>
    %66 = vector.shape_cast %65 : vector<8x8x4xf32> to vector<64x4xf32>
    %67 = arith.truncf %66 : vector<64x4xf32> to vector<64x4xbf16>
    %c0_66 = arith.constant 0 : index
    %c0_67 = arith.constant 0 : index
    %68 = vector.load %arg18[%c0_66, %c0_67] : memref<64x128xf32, #tpu.memory_space<vmem>>, vector<64x128xf32>
    %c1_68 = arith.constant 1 : index
    %c0_69 = arith.constant 0 : index
    %c0_70 = arith.constant 0 : index
    %69 = vector.load %arg7[%c1_68, %c0_69, %c0_70] : memref<9x4x128xbf16, #tpu.memory_space<vmem>>, vector<1x4x128xbf16>
    %70 = vector.shape_cast %69 : vector<1x4x128xbf16> to vector<4x128xbf16>
    %cst_71 = arith.constant dense<0.000000e+00> : vector<64x128xf32>
    %71 = tpu.matmul %67, %70, %cst_71 {dimension_numbers = #tpu.dot_dimension_numbers<[1], [0], [0], [1], [0, 0, 1, 1], [], []>} : vector<64x4xbf16>, vector<4x128xbf16>, vector<64x128xf32> -> vector<64x128xf32>
    %72 = arith.addf %68, %71 : vector<64x128xf32>
    %c0_72 = arith.constant 0 : index
    %c0_73 = arith.constant 0 : index
    %73 = vector.load %arg18[%c0_72, %c0_73] : memref<64x128xf32, #tpu.memory_space<vmem>>, vector<64x128xf32>
    tpu.vector_store %arg18[%c0_72, %c0_73], %72 {strides = array<i32>} : memref<64x128xf32, #tpu.memory_space<vmem>>, vector<64x128xf32>,
    %c0_74 = arith.constant 0 : index
    %c1_75 = arith.constant 1 : index
    %c0_76 = arith.constant 0 : index
    %74 = vector.load %arg16[%c0_74, %c1_75, %c0_76] : memref<9x9x4xf32, #tpu.memory_space<vmem>>, vector<8x8x4xf32>
    %75 = vector.shape_cast %74 : vector<8x8x4xf32> to vector<64x4xf32>
    %76 = arith.truncf %75 : vector<64x4xf32> to vector<64x4xbf16>
    %c0_77 = arith.constant 0 : index
    %c0_78 = arith.constant 0 : index
    %77 = vector.load %arg18[%c0_77, %c0_78] : memref<64x128xf32, #tpu.memory_space<vmem>>, vector<64x128xf32>
    %c2 = arith.constant 2 : index
    %c0_79 = arith.constant 0 : index
    %c0_80 = arith.constant 0 : index
    %78 = vector.load %arg7[%c2, %c0_79, %c0_80] : memref<9x4x128xbf16, #tpu.memory_space<vmem>>, vector<1x4x128xbf16>
    %79 = vector.shape_cast %78 : vector<1x4x128xbf16> to vector<4x128xbf16>
    %cst_81 = arith.constant dense<0.000000e+00> : vector<64x128xf32>
    %80 = tpu.matmul %76, %79, %cst_81 {dimension_numbers = #tpu.dot_dimension_numbers<[1], [0], [0], [1], [0, 0, 1, 1], [], []>} : vector<64x4xbf16>, vector<4x128xbf16>, vector<64x128xf32> -> vector<64x128xf32>
    %81 = arith.addf %77, %80 : vector<64x128xf32>
    %c0_82 = arith.constant 0 : index
    %c0_83 = arith.constant 0 : index
    %82 = vector.load %arg18[%c0_82, %c0_83] : memref<64x128xf32, #tpu.memory_space<vmem>>, vector<64x128xf32>
    tpu.vector_store %arg18[%c0_82, %c0_83], %81 {strides = array<i32>} : memref<64x128xf32, #tpu.memory_space<vmem>>, vector<64x128xf32>,
    %c1_84 = arith.constant 1 : index
    %c0_85 = arith.constant 0 : index
    %c0_86 = arith.constant 0 : index
    %83 = vector.load %arg14[%c1_84, %c0_85, %c0_86] : memref<9x9x4xf32, #tpu.memory_space<vmem>>, vector<8x8x4xf32>
    %84 = vector.shape_cast %83 : vector<8x8x4xf32> to vector<64x4xf32>
    %85 = arith.truncf %84 : vector<64x4xf32> to vector<64x4xbf16>
    %c0_87 = arith.constant 0 : index
    %c0_88 = arith.constant 0 : index
    %86 = vector.load %arg18[%c0_87, %c0_88] : memref<64x128xf32, #tpu.memory_space<vmem>>, vector<64x128xf32>
    %c3 = arith.constant 3 : index
    %c0_89 = arith.constant 0 : index
    %c0_90 = arith.constant 0 : index
    %87 = vector.load %arg7[%c3, %c0_89, %c0_90] : memref<9x4x128xbf16, #tpu.memory_space<vmem>>, vector<1x4x128xbf16>
    %88 = vector.shape_cast %87 : vector<1x4x128xbf16> to vector<4x128xbf16>
    %cst_91 = arith.constant dense<0.000000e+00> : vector<64x128xf32>
    %89 = tpu.matmul %85, %88, %cst_91 {dimension_numbers = #tpu.dot_dimension_numbers<[1], [0], [0], [1], [0, 0, 1, 1], [], []>} : vector<64x4xbf16>, vector<4x128xbf16>, vector<64x128xf32> -> vector<64x128xf32>
    %90 = arith.addf %86, %89 : vector<64x128xf32>
    %c0_92 = arith.constant 0 : index
    %c0_93 = arith.constant 0 : index
    %91 = vector.load %arg18[%c0_92, %c0_93] : memref<64x128xf32, #tpu.memory_space<vmem>>, vector<64x128xf32>
    tpu.vector_store %arg18[%c0_92, %c0_93], %90 {strides = array<i32>} : memref<64x128xf32, #tpu.memory_space<vmem>>, vector<64x128xf32>,
    %c1_94 = arith.constant 1 : index
    %c1_95 = arith.constant 1 : index
    %c0_96 = arith.constant 0 : index
    %92 = vector.load %arg13[%c1_94, %c1_95, %c0_96] : memref<9x9x4xf32, #tpu.memory_space<vmem>>, vector<8x8x4xf32>
    %93 = vector.shape_cast %92 : vector<8x8x4xf32> to vector<64x4xf32>
    %94 = arith.truncf %93 : vector<64x4xf32> to vector<64x4xbf16>
    %c0_97 = arith.constant 0 : index
    %c0_98 = arith.constant 0 : index
    %95 = vector.load %arg18[%c0_97, %c0_98] : memref<64x128xf32, #tpu.memory_space<vmem>>, vector<64x128xf32>
    %c4 = arith.constant 4 : index
    %c0_99 = arith.constant 0 : index
    %c0_100 = arith.constant 0 : index
    %96 = vector.load %arg7[%c4, %c0_99, %c0_100] : memref<9x4x128xbf16, #tpu.memory_space<vmem>>, vector<1x4x128xbf16>
    %97 = vector.shape_cast %96 : vector<1x4x128xbf16> to vector<4x128xbf16>
    %cst_101 = arith.constant dense<0.000000e+00> : vector<64x128xf32>
    %98 = tpu.matmul %94, %97, %cst_101 {dimension_numbers = #tpu.dot_dimension_numbers<[1], [0], [0], [1], [0, 0, 1, 1], [], []>} : vector<64x4xbf16>, vector<4x128xbf16>, vector<64x128xf32> -> vector<64x128xf32>
    %99 = arith.addf %95, %98 : vector<64x128xf32>
    %c0_102 = arith.constant 0 : index
    %c0_103 = arith.constant 0 : index
    %100 = vector.load %arg18[%c0_102, %c0_103] : memref<64x128xf32, #tpu.memory_space<vmem>>, vector<64x128xf32>
    tpu.vector_store %arg18[%c0_102, %c0_103], %99 {strides = array<i32>} : memref<64x128xf32, #tpu.memory_space<vmem>>, vector<64x128xf32>,
    %c1_104 = arith.constant 1 : index
    %c1_105 = arith.constant 1 : index
    %c0_106 = arith.constant 0 : index
    %101 = vector.load %arg14[%c1_104, %c1_105, %c0_106] : memref<9x9x4xf32, #tpu.memory_space<vmem>>, vector<8x8x4xf32>
    %102 = vector.shape_cast %101 : vector<8x8x4xf32> to vector<64x4xf32>
    %103 = arith.truncf %102 : vector<64x4xf32> to vector<64x4xbf16>
    %c0_107 = arith.constant 0 : index
    %c0_108 = arith.constant 0 : index
    %104 = vector.load %arg18[%c0_107, %c0_108] : memref<64x128xf32, #tpu.memory_space<vmem>>, vector<64x128xf32>
    %c5 = arith.constant 5 : index
    %c0_109 = arith.constant 0 : index
    %c0_110 = arith.constant 0 : index
    %105 = vector.load %arg7[%c5, %c0_109, %c0_110] : memref<9x4x128xbf16, #tpu.memory_space<vmem>>, vector<1x4x128xbf16>
    %106 = vector.shape_cast %105 : vector<1x4x128xbf16> to vector<4x128xbf16>
    %cst_111 = arith.constant dense<0.000000e+00> : vector<64x128xf32>
    %107 = tpu.matmul %103, %106, %cst_111 {dimension_numbers = #tpu.dot_dimension_numbers<[1], [0], [0], [1], [0, 0, 1, 1], [], []>} : vector<64x4xbf16>, vector<4x128xbf16>, vector<64x128xf32> -> vector<64x128xf32>
    %108 = arith.addf %104, %107 : vector<64x128xf32>
    %c0_112 = arith.constant 0 : index
    %c0_113 = arith.constant 0 : index
    %109 = vector.load %arg18[%c0_112, %c0_113] : memref<64x128xf32, #tpu.memory_space<vmem>>, vector<64x128xf32>
    tpu.vector_store %arg18[%c0_112, %c0_113], %108 {strides = array<i32>} : memref<64x128xf32, #tpu.memory_space<vmem>>, vector<64x128xf32>,
    %c1_114 = arith.constant 1 : index
    %c0_115 = arith.constant 0 : index
    %c0_116 = arith.constant 0 : index
    %110 = vector.load %arg16[%c1_114, %c0_115, %c0_116] : memref<9x9x4xf32, #tpu.memory_space<vmem>>, vector<8x8x4xf32>
    %111 = vector.shape_cast %110 : vector<8x8x4xf32> to vector<64x4xf32>
    %112 = arith.truncf %111 : vector<64x4xf32> to vector<64x4xbf16>
    %c0_117 = arith.constant 0 : index
    %c0_118 = arith.constant 0 : index
    %113 = vector.load %arg18[%c0_117, %c0_118] : memref<64x128xf32, #tpu.memory_space<vmem>>, vector<64x128xf32>
    %c6 = arith.constant 6 : index
    %c0_119 = arith.constant 0 : index
    %c0_120 = arith.constant 0 : index
    %114 = vector.load %arg7[%c6, %c0_119, %c0_120] : memref<9x4x128xbf16, #tpu.memory_space<vmem>>, vector<1x4x128xbf16>
    %115 = vector.shape_cast %114 : vector<1x4x128xbf16> to vector<4x128xbf16>
    %cst_121 = arith.constant dense<0.000000e+00> : vector<64x128xf32>
    %116 = tpu.matmul %112, %115, %cst_121 {dimension_numbers = #tpu.dot_dimension_numbers<[1], [0], [0], [1], [0, 0, 1, 1], [], []>} : vector<64x4xbf16>, vector<4x128xbf16>, vector<64x128xf32> -> vector<64x128xf32>
    %117 = arith.addf %113, %116 : vector<64x128xf32>
    %c0_122 = arith.constant 0 : index
    %c0_123 = arith.constant 0 : index
    %118 = vector.load %arg18[%c0_122, %c0_123] : memref<64x128xf32, #tpu.memory_space<vmem>>, vector<64x128xf32>
    tpu.vector_store %arg18[%c0_122, %c0_123], %117 {strides = array<i32>} : memref<64x128xf32, #tpu.memory_space<vmem>>, vector<64x128xf32>,
    %c1_124 = arith.constant 1 : index
    %c1_125 = arith.constant 1 : index
    %c0_126 = arith.constant 0 : index
    %119 = vector.load %arg15[%c1_124, %c1_125, %c0_126] : memref<9x9x4xf32, #tpu.memory_space<vmem>>, vector<8x8x4xf32>
    %120 = vector.shape_cast %119 : vector<8x8x4xf32> to vector<64x4xf32>
    %121 = arith.truncf %120 : vector<64x4xf32> to vector<64x4xbf16>
    %c0_127 = arith.constant 0 : index
    %c0_128 = arith.constant 0 : index
    %122 = vector.load %arg18[%c0_127, %c0_128] : memref<64x128xf32, #tpu.memory_space<vmem>>, vector<64x128xf32>
    %c7 = arith.constant 7 : index
    %c0_129 = arith.constant 0 : index
    %c0_130 = arith.constant 0 : index
    %123 = vector.load %arg7[%c7, %c0_129, %c0_130] : memref<9x4x128xbf16, #tpu.memory_space<vmem>>, vector<1x4x128xbf16>
    %124 = vector.shape_cast %123 : vector<1x4x128xbf16> to vector<4x128xbf16>
    %cst_131 = arith.constant dense<0.000000e+00> : vector<64x128xf32>
    %125 = tpu.matmul %121, %124, %cst_131 {dimension_numbers = #tpu.dot_dimension_numbers<[1], [0], [0], [1], [0, 0, 1, 1], [], []>} : vector<64x4xbf16>, vector<4x128xbf16>, vector<64x128xf32> -> vector<64x128xf32>
    %126 = arith.addf %122, %125 : vector<64x128xf32>
    %c0_132 = arith.constant 0 : index
    %c0_133 = arith.constant 0 : index
    %127 = vector.load %arg18[%c0_132, %c0_133] : memref<64x128xf32, #tpu.memory_space<vmem>>, vector<64x128xf32>
    tpu.vector_store %arg18[%c0_132, %c0_133], %126 {strides = array<i32>} : memref<64x128xf32, #tpu.memory_space<vmem>>, vector<64x128xf32>,
    %c1_134 = arith.constant 1 : index
    %c1_135 = arith.constant 1 : index
    %c0_136 = arith.constant 0 : index
    %128 = vector.load %arg16[%c1_134, %c1_135, %c0_136] : memref<9x9x4xf32, #tpu.memory_space<vmem>>, vector<8x8x4xf32>
    %129 = vector.shape_cast %128 : vector<8x8x4xf32> to vector<64x4xf32>
    %130 = arith.truncf %129 : vector<64x4xf32> to vector<64x4xbf16>
    %c0_137 = arith.constant 0 : index
    %c0_138 = arith.constant 0 : index
    %131 = vector.load %arg18[%c0_137, %c0_138] : memref<64x128xf32, #tpu.memory_space<vmem>>, vector<64x128xf32>
    %c8 = arith.constant 8 : index
    %c0_139 = arith.constant 0 : index
    %c0_140 = arith.constant 0 : index
    %132 = vector.load %arg7[%c8, %c0_139, %c0_140] : memref<9x4x128xbf16, #tpu.memory_space<vmem>>, vector<1x4x128xbf16>
    %133 = vector.shape_cast %132 : vector<1x4x128xbf16> to vector<4x128xbf16>
    %cst_141 = arith.constant dense<0.000000e+00> : vector<64x128xf32>
    %134 = tpu.matmul %130, %133, %cst_141 {dimension_numbers = #tpu.dot_dimension_numbers<[1], [0], [0], [1], [0, 0, 1, 1], [], []>} : vector<64x4xbf16>, vector<4x128xbf16>, vector<64x128xf32> -> vector<64x128xf32>
    %135 = arith.addf %131, %134 : vector<64x128xf32>
    %c0_142 = arith.constant 0 : index
    %c0_143 = arith.constant 0 : index
    %136 = vector.load %arg18[%c0_142, %c0_143] : memref<64x128xf32, #tpu.memory_space<vmem>>, vector<64x128xf32>
    tpu.vector_store %arg18[%c0_142, %c0_143], %135 {strides = array<i32>} : memref<64x128xf32, #tpu.memory_space<vmem>>, vector<64x128xf32>,
    %c0_144 = arith.constant 0 : index
    %c0_145 = arith.constant 0 : index
    %137 = vector.load %arg18[%c0_144, %c0_145] : memref<64x128xf32, #tpu.memory_space<vmem>>, vector<64x128xf32>
    %c0_146 = arith.constant 0 : index
    %c0_147 = arith.constant 0 : index
    %138 = vector.load %arg8[%c0_146, %c0_147] : memref<1x128xf32, #tpu.memory_space<vmem>>, vector<1x128xf32>
    %139 = vector.broadcast %138 : vector<1x128xf32> to vector<64x128xf32>
    %140 = arith.addf %137, %139 : vector<64x128xf32>
    %cst_148 = arith.constant 0.000000e+00 : f32
    %141 = vector.broadcast %cst_148 : f32 to vector<64x128xf32>
    %142 = arith.maximumf %140, %141 : vector<64x128xf32>
    %cst_149 = arith.constant 0.000000e+00 : f32
    %143 = vector.broadcast %cst_149 : f32 to vector<10x10x128xf32>
    %c0_150 = arith.constant 0 : index
    %c0_151 = arith.constant 0 : index
    %c0_152 = arith.constant 0 : index
    %144 = vector.load %arg17[%c0_150, %c0_151, %c0_152] : memref<10x10x128xf32, #tpu.memory_space<vmem>>, vector<10x10x128xf32>
    tpu.vector_store %arg17[%c0_150, %c0_151, %c0_152], %143 {strides = array<i32>} : memref<10x10x128xf32, #tpu.memory_space<vmem>>, vector<10x10x128xf32>,
    %145 = vector.shape_cast %142 : vector<64x128xf32> to vector<8x8x128xf32>
    %c1_153 = arith.constant 1 : index
    %c1_154 = arith.constant 1 : index
    %c0_155 = arith.constant 0 : index
    %146 = vector.load %arg17[%c1_153, %c1_154, %c0_155] : memref<10x10x128xf32, #tpu.memory_space<vmem>>, vector<8x8x128xf32>
    tpu.vector_store %arg17[%c1_153, %c1_154, %c0_155], %145 {strides = array<i32>} : memref<10x10x128xf32, #tpu.memory_space<vmem>>, vector<8x8x128xf32>,
    %c1_156 = arith.constant 1 : index
    %c1_157 = arith.constant 1 : index
    %c0_158 = arith.constant 0 : index
    %147 = vector.load %arg13[%c1_156, %c1_157, %c0_158] : memref<9x9x4xf32, #tpu.memory_space<vmem>>, vector<8x8x4xf32>
    %148 = vector.shape_cast %147 : vector<8x8x4xf32> to vector<64x4xf32>
    %149 = arith.truncf %148 : vector<64x4xf32> to vector<64x4xbf16>
    %c0_159 = arith.constant 0 : index
    %c0_160 = arith.constant 0 : index
    %150 = vector.load %arg9[%c0_159, %c0_160] : memref<4x128xbf16, #tpu.memory_space<vmem>>, vector<4x128xbf16>
    %cst_161 = arith.constant dense<0.000000e+00> : vector<64x128xf32>
    %151 = tpu.matmul %149, %150, %cst_161 {dimension_numbers = #tpu.dot_dimension_numbers<[1], [0], [0], [1], [0, 0, 1, 1], [], []>} : vector<64x4xbf16>, vector<4x128xbf16>, vector<64x128xf32> -> vector<64x128xf32>
    %c0_162 = arith.constant 0 : index
    %c0_163 = arith.constant 0 : index
    %152 = vector.load %arg10[%c0_162, %c0_163] : memref<1x128xf32, #tpu.memory_space<vmem>>, vector<1x128xf32>
    %153 = vector.broadcast %152 : vector<1x128xf32> to vector<64x128xf32>
    %154 = arith.addf %151, %153 : vector<64x128xf32>
    %c0_164 = arith.constant 0 : index
    %c0_165 = arith.constant 0 : index
    %155 = vector.load %arg18[%c0_164, %c0_165] : memref<64x128xf32, #tpu.memory_space<vmem>>, vector<64x128xf32>
    tpu.vector_store %arg18[%c0_164, %c0_165], %154 {strides = array<i32>} : memref<64x128xf32, #tpu.memory_space<vmem>>, vector<64x128xf32>,
    %c0_166 = arith.constant 0 : index
    %c0_167 = arith.constant 0 : index
    %c0_168 = arith.constant 0 : index
    %156 = vector.load %arg17[%c0_166, %c0_167, %c0_168] : memref<10x10x128xf32, #tpu.memory_space<vmem>>, vector<8x8x128xf32>
    %157 = vector.shape_cast %156 : vector<8x8x128xf32> to vector<64x128xf32>
    %c0_169 = arith.constant 0 : index
    %c0_170 = arith.constant 0 : index
    %158 = vector.load %arg18[%c0_169, %c0_170] : memref<64x128xf32, #tpu.memory_space<vmem>>, vector<64x128xf32>
    %159 = arith.truncf %157 : vector<64x128xf32> to vector<64x128xbf16>
    %c0_171 = arith.constant 0 : index
    %c0_172 = arith.constant 0 : index
    %c0_173 = arith.constant 0 : index
    %160 = vector.load %arg11[%c0_171, %c0_172, %c0_173] : memref<9x128x128xbf16, #tpu.memory_space<vmem>>, vector<1x128x128xbf16>
    %161 = vector.shape_cast %160 : vector<1x128x128xbf16> to vector<128x128xbf16>
    %cst_174 = arith.constant dense<0.000000e+00> : vector<64x128xf32>
    %162 = tpu.matmul %159, %161, %cst_174 {dimension_numbers = #tpu.dot_dimension_numbers<[1], [0], [0], [1], [0, 0, 1, 1], [], []>} : vector<64x128xbf16>, vector<128x128xbf16>, vector<64x128xf32> -> vector<64x128xf32>
    %163 = arith.addf %158, %162 : vector<64x128xf32>
    %c0_175 = arith.constant 0 : index
    %c0_176 = arith.constant 0 : index
    %164 = vector.load %arg18[%c0_175, %c0_176] : memref<64x128xf32, #tpu.memory_space<vmem>>, vector<64x128xf32>
    tpu.vector_store %arg18[%c0_175, %c0_176], %163 {strides = array<i32>} : memref<64x128xf32, #tpu.memory_space<vmem>>, vector<64x128xf32>,
    %c0_177 = arith.constant 0 : index
    %c1_178 = arith.constant 1 : index
    %c0_179 = arith.constant 0 : index
    %165 = vector.load %arg17[%c0_177, %c1_178, %c0_179] : memref<10x10x128xf32, #tpu.memory_space<vmem>>, vector<8x8x128xf32>
    %166 = vector.shape_cast %165 : vector<8x8x128xf32> to vector<64x128xf32>
    %c0_180 = arith.constant 0 : index
    %c0_181 = arith.constant 0 : index
    %167 = vector.load %arg18[%c0_180, %c0_181] : memref<64x128xf32, #tpu.memory_space<vmem>>, vector<64x128xf32>
    %168 = arith.truncf %166 : vector<64x128xf32> to vector<64x128xbf16>
    %c1_182 = arith.constant 1 : index
    %c0_183 = arith.constant 0 : index
    %c0_184 = arith.constant 0 : index
    %169 = vector.load %arg11[%c1_182, %c0_183, %c0_184] : memref<9x128x128xbf16, #tpu.memory_space<vmem>>, vector<1x128x128xbf16>
    %170 = vector.shape_cast %169 : vector<1x128x128xbf16> to vector<128x128xbf16>
    %cst_185 = arith.constant dense<0.000000e+00> : vector<64x128xf32>
    %171 = tpu.matmul %168, %170, %cst_185 {dimension_numbers = #tpu.dot_dimension_numbers<[1], [0], [0], [1], [0, 0, 1, 1], [], []>} : vector<64x128xbf16>, vector<128x128xbf16>, vector<64x128xf32> -> vector<64x128xf32>
    %172 = arith.addf %167, %171 : vector<64x128xf32>
    %c0_186 = arith.constant 0 : index
    %c0_187 = arith.constant 0 : index
    %173 = vector.load %arg18[%c0_186, %c0_187] : memref<64x128xf32, #tpu.memory_space<vmem>>, vector<64x128xf32>
    tpu.vector_store %arg18[%c0_186, %c0_187], %172 {strides = array<i32>} : memref<64x128xf32, #tpu.memory_space<vmem>>, vector<64x128xf32>,
    %c0_188 = arith.constant 0 : index
    %c2_189 = arith.constant 2 : index
    %c0_190 = arith.constant 0 : index
    %174 = vector.load %arg17[%c0_188, %c2_189, %c0_190] : memref<10x10x128xf32, #tpu.memory_space<vmem>>, vector<8x8x128xf32>
    %175 = vector.shape_cast %174 : vector<8x8x128xf32> to vector<64x128xf32>
    %c0_191 = arith.constant 0 : index
    %c0_192 = arith.constant 0 : index
    %176 = vector.load %arg18[%c0_191, %c0_192] : memref<64x128xf32, #tpu.memory_space<vmem>>, vector<64x128xf32>
    %177 = arith.truncf %175 : vector<64x128xf32> to vector<64x128xbf16>
    %c2_193 = arith.constant 2 : index
    %c0_194 = arith.constant 0 : index
    %c0_195 = arith.constant 0 : index
    %178 = vector.load %arg11[%c2_193, %c0_194, %c0_195] : memref<9x128x128xbf16, #tpu.memory_space<vmem>>, vector<1x128x128xbf16>
    %179 = vector.shape_cast %178 : vector<1x128x128xbf16> to vector<128x128xbf16>
    %cst_196 = arith.constant dense<0.000000e+00> : vector<64x128xf32>
    %180 = tpu.matmul %177, %179, %cst_196 {dimension_numbers = #tpu.dot_dimension_numbers<[1], [0], [0], [1], [0, 0, 1, 1], [], []>} : vector<64x128xbf16>, vector<128x128xbf16>, vector<64x128xf32> -> vector<64x128xf32>
    %181 = arith.addf %176, %180 : vector<64x128xf32>
    %c0_197 = arith.constant 0 : index
    %c0_198 = arith.constant 0 : index
    %182 = vector.load %arg18[%c0_197, %c0_198] : memref<64x128xf32, #tpu.memory_space<vmem>>, vector<64x128xf32>
    tpu.vector_store %arg18[%c0_197, %c0_198], %181 {strides = array<i32>} : memref<64x128xf32, #tpu.memory_space<vmem>>, vector<64x128xf32>,
    %c1_199 = arith.constant 1 : index
    %c0_200 = arith.constant 0 : index
    %c0_201 = arith.constant 0 : index
    %183 = vector.load %arg17[%c1_199, %c0_200, %c0_201] : memref<10x10x128xf32, #tpu.memory_space<vmem>>, vector<8x8x128xf32>
    %184 = vector.shape_cast %183 : vector<8x8x128xf32> to vector<64x128xf32>
    %c0_202 = arith.constant 0 : index
    %c0_203 = arith.constant 0 : index
    %185 = vector.load %arg18[%c0_202, %c0_203] : memref<64x128xf32, #tpu.memory_space<vmem>>, vector<64x128xf32>
    %186 = arith.truncf %184 : vector<64x128xf32> to vector<64x128xbf16>
    %c3_204 = arith.constant 3 : index
    %c0_205 = arith.constant 0 : index
    %c0_206 = arith.constant 0 : index
    %187 = vector.load %arg11[%c3_204, %c0_205, %c0_206] : memref<9x128x128xbf16, #tpu.memory_space<vmem>>, vector<1x128x128xbf16>
    %188 = vector.shape_cast %187 : vector<1x128x128xbf16> to vector<128x128xbf16>
    %cst_207 = arith.constant dense<0.000000e+00> : vector<64x128xf32>
    %189 = tpu.matmul %186, %188, %cst_207 {dimension_numbers = #tpu.dot_dimension_numbers<[1], [0], [0], [1], [0, 0, 1, 1], [], []>} : vector<64x128xbf16>, vector<128x128xbf16>, vector<64x128xf32> -> vector<64x128xf32>
    %190 = arith.addf %185, %189 : vector<64x128xf32>
    %c0_208 = arith.constant 0 : index
    %c0_209 = arith.constant 0 : index
    %191 = vector.load %arg18[%c0_208, %c0_209] : memref<64x128xf32, #tpu.memory_space<vmem>>, vector<64x128xf32>
    tpu.vector_store %arg18[%c0_208, %c0_209], %190 {strides = array<i32>} : memref<64x128xf32, #tpu.memory_space<vmem>>, vector<64x128xf32>,
    %c1_210 = arith.constant 1 : index
    %c1_211 = arith.constant 1 : index
    %c0_212 = arith.constant 0 : index
    %192 = vector.load %arg17[%c1_210, %c1_211, %c0_212] : memref<10x10x128xf32, #tpu.memory_space<vmem>>, vector<8x8x128xf32>
    %193 = vector.shape_cast %192 : vector<8x8x128xf32> to vector<64x128xf32>
    %c0_213 = arith.constant 0 : index
    %c0_214 = arith.constant 0 : index
    %194 = vector.load %arg18[%c0_213, %c0_214] : memref<64x128xf32, #tpu.memory_space<vmem>>, vector<64x128xf32>
    %195 = arith.truncf %193 : vector<64x128xf32> to vector<64x128xbf16>
    %c4_215 = arith.constant 4 : index
    %c0_216 = arith.constant 0 : index
    %c0_217 = arith.constant 0 : index
    %196 = vector.load %arg11[%c4_215, %c0_216, %c0_217] : memref<9x128x128xbf16, #tpu.memory_space<vmem>>, vector<1x128x128xbf16>
    %197 = vector.shape_cast %196 : vector<1x128x128xbf16> to vector<128x128xbf16>
    %cst_218 = arith.constant dense<0.000000e+00> : vector<64x128xf32>
    %198 = tpu.matmul %195, %197, %cst_218 {dimension_numbers = #tpu.dot_dimension_numbers<[1], [0], [0], [1], [0, 0, 1, 1], [], []>} : vector<64x128xbf16>, vector<128x128xbf16>, vector<64x128xf32> -> vector<64x128xf32>
    %199 = arith.addf %194, %198 : vector<64x128xf32>
    %c0_219 = arith.constant 0 : index
    %c0_220 = arith.constant 0 : index
    %200 = vector.load %arg18[%c0_219, %c0_220] : memref<64x128xf32, #tpu.memory_space<vmem>>, vector<64x128xf32>
    tpu.vector_store %arg18[%c0_219, %c0_220], %199 {strides = array<i32>} : memref<64x128xf32, #tpu.memory_space<vmem>>, vector<64x128xf32>,
    %c1_221 = arith.constant 1 : index
    %c2_222 = arith.constant 2 : index
    %c0_223 = arith.constant 0 : index
    %201 = vector.load %arg17[%c1_221, %c2_222, %c0_223] : memref<10x10x128xf32, #tpu.memory_space<vmem>>, vector<8x8x128xf32>
    %202 = vector.shape_cast %201 : vector<8x8x128xf32> to vector<64x128xf32>
    %c0_224 = arith.constant 0 : index
    %c0_225 = arith.constant 0 : index
    %203 = vector.load %arg18[%c0_224, %c0_225] : memref<64x128xf32, #tpu.memory_space<vmem>>, vector<64x128xf32>
    %204 = arith.truncf %202 : vector<64x128xf32> to vector<64x128xbf16>
    %c5_226 = arith.constant 5 : index
    %c0_227 = arith.constant 0 : index
    %c0_228 = arith.constant 0 : index
    %205 = vector.load %arg11[%c5_226, %c0_227, %c0_228] : memref<9x128x128xbf16, #tpu.memory_space<vmem>>, vector<1x128x128xbf16>
    %206 = vector.shape_cast %205 : vector<1x128x128xbf16> to vector<128x128xbf16>
    %cst_229 = arith.constant dense<0.000000e+00> : vector<64x128xf32>
    %207 = tpu.matmul %204, %206, %cst_229 {dimension_numbers = #tpu.dot_dimension_numbers<[1], [0], [0], [1], [0, 0, 1, 1], [], []>} : vector<64x128xbf16>, vector<128x128xbf16>, vector<64x128xf32> -> vector<64x128xf32>
    %208 = arith.addf %203, %207 : vector<64x128xf32>
    %c0_230 = arith.constant 0 : index
    %c0_231 = arith.constant 0 : index
    %209 = vector.load %arg18[%c0_230, %c0_231] : memref<64x128xf32, #tpu.memory_space<vmem>>, vector<64x128xf32>
    tpu.vector_store %arg18[%c0_230, %c0_231], %208 {strides = array<i32>} : memref<64x128xf32, #tpu.memory_space<vmem>>, vector<64x128xf32>,
    %c2_232 = arith.constant 2 : index
    %c0_233 = arith.constant 0 : index
    %c0_234 = arith.constant 0 : index
    %210 = vector.load %arg17[%c2_232, %c0_233, %c0_234] : memref<10x10x128xf32, #tpu.memory_space<vmem>>, vector<8x8x128xf32>
    %211 = vector.shape_cast %210 : vector<8x8x128xf32> to vector<64x128xf32>
    %c0_235 = arith.constant 0 : index
    %c0_236 = arith.constant 0 : index
    %212 = vector.load %arg18[%c0_235, %c0_236] : memref<64x128xf32, #tpu.memory_space<vmem>>, vector<64x128xf32>
    %213 = arith.truncf %211 : vector<64x128xf32> to vector<64x128xbf16>
    %c6_237 = arith.constant 6 : index
    %c0_238 = arith.constant 0 : index
    %c0_239 = arith.constant 0 : index
    %214 = vector.load %arg11[%c6_237, %c0_238, %c0_239] : memref<9x128x128xbf16, #tpu.memory_space<vmem>>, vector<1x128x128xbf16>
    %215 = vector.shape_cast %214 : vector<1x128x128xbf16> to vector<128x128xbf16>
    %cst_240 = arith.constant dense<0.000000e+00> : vector<64x128xf32>
    %216 = tpu.matmul %213, %215, %cst_240 {dimension_numbers = #tpu.dot_dimension_numbers<[1], [0], [0], [1], [0, 0, 1, 1], [], []>} : vector<64x128xbf16>, vector<128x128xbf16>, vector<64x128xf32> -> vector<64x128xf32>
    %217 = arith.addf %212, %216 : vector<64x128xf32>
    %c0_241 = arith.constant 0 : index
    %c0_242 = arith.constant 0 : index
    %218 = vector.load %arg18[%c0_241, %c0_242] : memref<64x128xf32, #tpu.memory_space<vmem>>, vector<64x128xf32>
    tpu.vector_store %arg18[%c0_241, %c0_242], %217 {strides = array<i32>} : memref<64x128xf32, #tpu.memory_space<vmem>>, vector<64x128xf32>,
    %c2_243 = arith.constant 2 : index
    %c1_244 = arith.constant 1 : index
    %c0_245 = arith.constant 0 : index
    %219 = vector.load %arg17[%c2_243, %c1_244, %c0_245] : memref<10x10x128xf32, #tpu.memory_space<vmem>>, vector<8x8x128xf32>
    %220 = vector.shape_cast %219 : vector<8x8x128xf32> to vector<64x128xf32>
    %c0_246 = arith.constant 0 : index
    %c0_247 = arith.constant 0 : index
    %221 = vector.load %arg18[%c0_246, %c0_247] : memref<64x128xf32, #tpu.memory_space<vmem>>, vector<64x128xf32>
    %222 = arith.truncf %220 : vector<64x128xf32> to vector<64x128xbf16>
    %c7_248 = arith.constant 7 : index
    %c0_249 = arith.constant 0 : index
    %c0_250 = arith.constant 0 : index
    %223 = vector.load %arg11[%c7_248, %c0_249, %c0_250] : memref<9x128x128xbf16, #tpu.memory_space<vmem>>, vector<1x128x128xbf16>
    %224 = vector.shape_cast %223 : vector<1x128x128xbf16> to vector<128x128xbf16>
    %cst_251 = arith.constant dense<0.000000e+00> : vector<64x128xf32>
    %225 = tpu.matmul %222, %224, %cst_251 {dimension_numbers = #tpu.dot_dimension_numbers<[1], [0], [0], [1], [0, 0, 1, 1], [], []>} : vector<64x128xbf16>, vector<128x128xbf16>, vector<64x128xf32> -> vector<64x128xf32>
    %226 = arith.addf %221, %225 : vector<64x128xf32>
    %c0_252 = arith.constant 0 : index
    %c0_253 = arith.constant 0 : index
    %227 = vector.load %arg18[%c0_252, %c0_253] : memref<64x128xf32, #tpu.memory_space<vmem>>, vector<64x128xf32>
    tpu.vector_store %arg18[%c0_252, %c0_253], %226 {strides = array<i32>} : memref<64x128xf32, #tpu.memory_space<vmem>>, vector<64x128xf32>,
    %c2_254 = arith.constant 2 : index
    %c2_255 = arith.constant 2 : index
    %c0_256 = arith.constant 0 : index
    %228 = vector.load %arg17[%c2_254, %c2_255, %c0_256] : memref<10x10x128xf32, #tpu.memory_space<vmem>>, vector<8x8x128xf32>
    %229 = vector.shape_cast %228 : vector<8x8x128xf32> to vector<64x128xf32>
    %c0_257 = arith.constant 0 : index
    %c0_258 = arith.constant 0 : index
    %230 = vector.load %arg18[%c0_257, %c0_258] : memref<64x128xf32, #tpu.memory_space<vmem>>, vector<64x128xf32>
    %231 = arith.truncf %229 : vector<64x128xf32> to vector<64x128xbf16>
    %c8_259 = arith.constant 8 : index
    %c0_260 = arith.constant 0 : index
    %c0_261 = arith.constant 0 : index
    %232 = vector.load %arg11[%c8_259, %c0_260, %c0_261] : memref<9x128x128xbf16, #tpu.memory_space<vmem>>, vector<1x128x128xbf16>
    %233 = vector.shape_cast %232 : vector<1x128x128xbf16> to vector<128x128xbf16>
    %cst_262 = arith.constant dense<0.000000e+00> : vector<64x128xf32>
    %234 = tpu.matmul %231, %233, %cst_262 {dimension_numbers = #tpu.dot_dimension_numbers<[1], [0], [0], [1], [0, 0, 1, 1], [], []>} : vector<64x128xbf16>, vector<128x128xbf16>, vector<64x128xf32> -> vector<64x128xf32>
    %235 = arith.addf %230, %234 : vector<64x128xf32>
    %c0_263 = arith.constant 0 : index
    %c0_264 = arith.constant 0 : index
    %236 = vector.load %arg18[%c0_263, %c0_264] : memref<64x128xf32, #tpu.memory_space<vmem>>, vector<64x128xf32>
    tpu.vector_store %arg18[%c0_263, %c0_264], %235 {strides = array<i32>} : memref<64x128xf32, #tpu.memory_space<vmem>>, vector<64x128xf32>,
    %c0_265 = arith.constant 0 : index
    %c0_266 = arith.constant 0 : index
    %237 = vector.load %arg18[%c0_265, %c0_266] : memref<64x128xf32, #tpu.memory_space<vmem>>, vector<64x128xf32>
    %c0_267 = arith.constant 0 : index
    %c0_268 = arith.constant 0 : index
    %c0_269 = arith.constant 0 : index
    %238 = vector.load %arg12[%c0_267, %c0_268, %c0_269] : memref<1x64x128xf32, #tpu.memory_space<vmem>>, vector<1x64x128xf32>
    %239 = vector.shape_cast %238 : vector<1x64x128xf32> to vector<64x128xf32>
    %240 = vector.shape_cast %237 : vector<64x128xf32> to vector<1x64x128xf32>
    tpu.vector_store %arg12[%c0_267, %c0_268, %c0_269], %240 {strides = array<i32>} : memref<1x64x128xf32, #tpu.memory_space<vmem>>, vector<1x64x128xf32>,
    return
  }
  func.func @transform_0(%arg0: i32) -> (i32, i32, i32, i32) {
    %c0_i32 = arith.constant 0 : i32
    %c0_i32_0 = arith.constant 0 : i32
    %c0_i32_1 = arith.constant 0 : i32
    %c0_i32_2 = arith.constant 0 : i32
    return %arg0, %c0_i32, %c0_i32_0, %c0_i32_1 : i32, i32, i32, i32
  }
  func.func @transform_1(%arg0: i32) -> (i32, i32, i32, i32) {
    %c0_i32 = arith.constant 0 : i32
    %c0_i32_0 = arith.constant 0 : i32
    %c0_i32_1 = arith.constant 0 : i32
    %c0_i32_2 = arith.constant 0 : i32
    return %arg0, %c0_i32, %c0_i32_0, %c0_i32_1 : i32, i32, i32, i32
  }
  func.func @transform_2(%arg0: i32) -> (i32, i32, i32, i32) {
    %c0_i32 = arith.constant 0 : i32
    %c0_i32_0 = arith.constant 0 : i32
    %c0_i32_1 = arith.constant 0 : i32
    %c0_i32_2 = arith.constant 0 : i32
    return %arg0, %c0_i32, %c0_i32_0, %c0_i32_1 : i32, i32, i32, i32
  }
  func.func @transform_3(%arg0: i32) -> (i32, i32, i32, i32) {
    %c0_i32 = arith.constant 0 : i32
    %c0_i32_0 = arith.constant 0 : i32
    %c0_i32_1 = arith.constant 0 : i32
    %c0_i32_2 = arith.constant 0 : i32
    return %arg0, %c0_i32, %c0_i32_0, %c0_i32_1 : i32, i32, i32, i32
  }
  func.func @transform_4(%arg0: i32) -> (i32, i32) {
    %c0_i32 = arith.constant 0 : i32
    %c0_i32_0 = arith.constant 0 : i32
    %c0_i32_1 = arith.constant 0 : i32
    return %c0_i32, %c0_i32_0 : i32, i32
  }
  func.func @transform_5(%arg0: i32) -> (i32, i32) {
    %c0_i32 = arith.constant 0 : i32
    %c0_i32_0 = arith.constant 0 : i32
    %c0_i32_1 = arith.constant 0 : i32
    return %c0_i32, %c0_i32_0 : i32, i32
  }
  func.func @transform_6(%arg0: i32) -> (i32, i32, i32) {
    %c0_i32 = arith.constant 0 : i32
    %c0_i32_0 = arith.constant 0 : i32
    %c0_i32_1 = arith.constant 0 : i32
    %c0_i32_2 = arith.constant 0 : i32
    return %c0_i32, %c0_i32_0, %c0_i32_1 : i32, i32, i32
  }
  func.func @transform_7(%arg0: i32) -> (i32, i32) {
    %c0_i32 = arith.constant 0 : i32
    %c0_i32_0 = arith.constant 0 : i32
    %c0_i32_1 = arith.constant 0 : i32
    return %c0_i32, %c0_i32_0 : i32, i32
  }
  func.func @transform_8(%arg0: i32) -> (i32, i32) {
    %c0_i32 = arith.constant 0 : i32
    %c0_i32_0 = arith.constant 0 : i32
    %c0_i32_1 = arith.constant 0 : i32
    return %c0_i32, %c0_i32_0 : i32, i32
  }
  func.func @transform_9(%arg0: i32) -> (i32, i32) {
    %c0_i32 = arith.constant 0 : i32
    %c0_i32_0 = arith.constant 0 : i32
    %c0_i32_1 = arith.constant 0 : i32
    return %c0_i32, %c0_i32_0 : i32, i32
  }
  func.func @transform_10(%arg0: i32) -> (i32, i32, i32) {
    %c0_i32 = arith.constant 0 : i32
    %c0_i32_0 = arith.constant 0 : i32
    %c0_i32_1 = arith.constant 0 : i32
    %c0_i32_2 = arith.constant 0 : i32
    return %c0_i32, %c0_i32_0, %c0_i32_1 : i32, i32, i32
  }
  func.func @transform_11(%arg0: i32) -> (i32, i32, i32) {
    %c0_i32 = arith.constant 0 : i32
    %c0_i32_0 = arith.constant 0 : i32
    %c0_i32_1 = arith.constant 0 : i32
    return %arg0, %c0_i32, %c0_i32_0 : i32, i32, i32
  }
}

</mosaic_0001>

<llo_original>
// kernel: tpu_custom_call.1
$region0: #{tpu_custom_call.1}
  #allocation0 [shape = 'u32[]', space=smem, size = 0x4, offset = 0x4, fixed_abs, tag = 'smem constant byte address 0x4 - core index']
  #allocation1 [shape = 'u32[144,128]{1,0:T(1,128)}', space=vmem, size = 0x12000, scoped, tag = 'internal scratch']
  #allocation2 [shape = 'f32[9,9,4]{2,1,0:T(8,128)}', space=vmem, size = 0x12000, scoped, tag = 'scratch operand']
  #allocation3 [shape = 'f32[9,9,4]{2,1,0:T(8,128)}', space=vmem, size = 0x12000, scoped, tag = 'scratch operand']
  #allocation4 [shape = 'f32[9,9,4]{2,1,0:T(8,128)}', space=vmem, size = 0x12000, scoped, tag = 'scratch operand']
  #allocation5 [shape = 'f32[9,9,4]{2,1,0:T(8,128)}', space=vmem, size = 0x12000, scoped, tag = 'scratch operand']
  #allocation6 [shape = 'f32[10,10,128]{2,1,0:T(8,128)}', space=vmem, size = 0x14000, scoped, tag = 'scratch operand']
  #allocation7 [shape = 'f32[64,128]{1,0:T(8,128)}', space=vmem, size = 0x8000, scoped, tag = 'scratch operand']
  %s0 = inlined_call_operand.vmem [shape: f32[2,8,8,4], index: 0, kind: input, shape index: {}]
  %s1 = inlined_call_operand.vmem [shape: f32[2,8,8,4], index: 1, kind: input, shape index: {}]
  %s2 = inlined_call_operand.vmem [shape: f32[2,8,8,4], index: 2, kind: input, shape index: {}]
  %s3 = inlined_call_operand.vmem [shape: f32[2,8,8,4], index: 3, kind: input, shape index: {}]
  %s4 = inlined_call_operand.vmem [shape: f32[1,4], index: 4, kind: input, shape index: {}]
  %s5 = inlined_call_operand.vmem [shape: f32[1,4], index: 5, kind: input, shape index: {}]
  %s6 = inlined_call_operand.vmem [shape: bf16[9,4,128], index: 6, kind: input, shape index: {}]
  %s7 = inlined_call_operand.vmem [shape: f32[1,128], index: 7, kind: input, shape index: {}]
  %s8 = inlined_call_operand.vmem [shape: bf16[4,128], index: 8, kind: input, shape index: {}]
  %s9 = inlined_call_operand.vmem [shape: f32[1,128], index: 9, kind: input, shape index: {}]
  %s10 = inlined_call_operand.vmem [shape: bf16[9,128,128], index: 10, kind: input, shape index: {}]
  %s11 = inlined_call_operand.hbm [shape: f32[2,64,128], index: 11, kind: output, shape index: {}]
  %s12 = sld [smem:[#allocation0]]
  $region77: #{tpu_custom_call.1} parent=0
    _
  %s14 = ssub.s32 1, %s12
  %s15 = scalar_select 0, %s14, %s12
  $region1: #{tpu_custom_call.1} parent=0
    #allocation8 [shape = 'u8[65536]{0}', space=vmem, size = 0x10000, scoped, tag = 'output window, operand 0']
    #allocation9 [shape = 's32[2]{0}', space=sflag, size = 0x8, scoped, tag = 'scoped memory for tpu_custom_call.1']
    %16 = vsyncpa [#allocation9], 0
    %s17 = scalar_lea.sflag [#allocation9], 1
    %18 = vsyncpa %s17, 0
    loop: start=0, step=1, limit=4
    $region2: #{tpu_custom_call.1} parent=1 // loop_pre_header
      _
    $region3: #{tpu_custom_call.1} parent=1 // loop_header
      %s20 = sphi 0, %s24
      %p21 = scmp.ge.s32.totalorder %s20, 4
      %s30 = sphi 0, %s32
      %s33 = sphi 0, %s30
      %s34 = sphi 0, %s33
      %s50 = sphi 0, %s34
      %s56 = sphi 0, %s58
      %s59 = sphi 0, %s56
      %s60 = sphi 0, %s59
      %s76 = sphi 0, %s60
      %s82 = sphi 0, %s84
      %s85 = sphi 0, %s82
      %s86 = sphi 0, %s85
      %s102 = sphi 0, %s86
      %s108 = sphi 0, %s110
      %s111 = sphi 0, %s108
      %s112 = sphi 0, %s111
      %s128 = sphi 0, %s112
      %s132 = sphi 0, %s132
      %s134 = sphi 0, %s132
      %s135 = sphi 0, %s134
      %s149 = sphi 0, %s135
      %s153 = sphi 0, %s153
      %s155 = sphi 0, %s153
      %s156 = sphi 0, %s155
      %s170 = sphi 0, %s156
      %s174 = sphi 0, %s174
      %s176 = sphi 0, %s174
      %s177 = sphi 0, %s176
      %s191 = sphi 0, %s177
      %s195 = sphi 0, %s195
      %s197 = sphi 0, %s195
      %s198 = sphi 0, %s197
      %s212 = sphi 0, %s198
      %s216 = sphi 0, %s216
      %s218 = sphi 0, %s216
      %s219 = sphi 0, %s218
      %s233 = sphi 0, %s219
      %s237 = sphi 0, %s237
      %s239 = sphi 0, %s237
      %s240 = sphi 0, %s239
      %s254 = sphi 0, %s240
      %s258 = sphi 0, %s258
      %s260 = sphi 0, %s258
      %s261 = sphi 0, %s260
      %s275 = sphi 0, %s261
      %s281 = sphi 0, %s283
      %s284 = sphi 0, %s281
      %s285 = sphi 0, %s284
      %s301 = sphi 0, %s285
    $region4: #{tpu_custom_call.1} parent=1 // loop_header_branch
      %23 = sbr.rel (%p21) target = $region8
    $region5: #{tpu_custom_call.1} parent=1 // loop_body
      %s25 = ssub.s32 %s20, 1
      %s26 = ssub.s32 %s20, 2
      %s27 = sadd.s32 %s20, 1
      %s28 = ssub.s32 %s20, %s27
      %p29 = scmp.eq.s32.totalorder %s28, 0
      %s31 = sadd.s32 %s30, 1
      %s32 = scalar_select %p29, %s30, %s31
      %p35 = pneg %p29
      %p36 = scmp.eq.s32.totalorder %s20, 1
      %p37 = por %p35, %p36
      %p38 = scmp.ne.s32.totalorder %s30, %s33
      %p39 = scmp.eq.s32.totalorder %s20, 0
      %p40 = por %p38, %p39
      %p41 = scmp.ne.s32.totalorder %s30, %s33
      %p42 = scmp.eq.s32.totalorder %s25, 1
      %p43 = por %p41, %p42
      %p44 = scmp.ne.s32.totalorder %s33, %s34
      %p45 = scmp.eq.s32.totalorder %s25, 0
      %p46 = por %p44, %p45
      %p47 = scmp.ne.s32.totalorder %s33, %s34
      %p48 = scmp.eq.s32.totalorder %s26, 1
      %p49 = por %p47, %p48
      %p51 = scmp.ne.s32.totalorder %s34, %s50
      %p52 = scmp.eq.s32.totalorder %s26, 0
      %p53 = por %p51, %p52
      %s54 = ssub.s32 %s20, %s27
      %p55 = scmp.eq.s32.totalorder %s54, 0
      %s57 = sadd.s32 %s56, 1
      %s58 = scalar_select %p55, %s56, %s57
      %p61 = pneg %p55
      %p62 = scmp.eq.s32.totalorder %s20, 1
      %p63 = por %p61, %p62
      %p64 = scmp.ne.s32.totalorder %s56, %s59
      %p65 = scmp.eq.s32.totalorder %s20, 0
      %p66 = por %p64, %p65
      %p67 = scmp.ne.s32.totalorder %s56, %s59
      %p68 = scmp.eq.s32.totalorder %s25, 1
      %p69 = por %p67, %p68
      %p70 = scmp.ne.s32.totalorder %s59, %s60
      %p71 = scmp.eq.s32.totalorder %s25, 0
      %p72 = por %p70, %p71
      %p73 = scmp.ne.s32.totalorder %s59, %s60
      %p74 = scmp.eq.s32.totalorder %s26, 1
      %p75 = por %p73, %p74
      %p77 = scmp.ne.s32.totalorder %s60, %s76
      %p78 = scmp.eq.s32.totalorder %s26, 0
      %p79 = por %p77, %p78
      %s80 = ssub.s32 %s20, %s27
      %p81 = scmp.eq.s32.totalorder %s80, 0
      %s83 = sadd.s32 %s82, 1
      %s84 = scalar_select %p81, %s82, %s83
      %p87 = pneg %p81
      %p88 = scmp.eq.s32.totalorder %s20, 1
      %p89 = por %p87, %p88
      %p90 = scmp.ne.s32.totalorder %s82, %s85
      %p91 = scmp.eq.s32.totalorder %s20, 0
      %p92 = por %p90, %p91
      %p93 = scmp.ne.s32.totalorder %s82, %s85
      %p94 = scmp.eq.s32.totalorder %s25, 1
      %p95 = por %p93, %p94
      %p96 = scmp.ne.s32.totalorder %s85, %s86
      %p97 = scmp.eq.s32.totalorder %s25, 0
      %p98 = por %p96, %p97
      %p99 = scmp.ne.s32.totalorder %s85, %s86
      %p100 = scmp.eq.s32.totalorder %s26, 1
      %p101 = por %p99, %p100
      %p103 = scmp.ne.s32.totalorder %s86, %s102
      %p104 = scmp.eq.s32.totalorder %s26, 0
      %p105 = por %p103, %p104
      %s106 = ssub.s32 %s20, %s27
      %p107 = scmp.eq.s32.totalorder %s106, 0
      %s109 = sadd.s32 %s108, 1
      %s110 = scalar_select %p107, %s108, %s109
      %p113 = pneg %p107
      %p114 = scmp.eq.s32.totalorder %s20, 1
      %p115 = por %p113, %p114
      %p116 = scmp.ne.s32.totalorder %s108, %s111
      %p117 = scmp.eq.s32.totalorder %s20, 0
      %p118 = por %p116, %p117
      %p119 = scmp.ne.s32.totalorder %s108, %s111
      %p120 = scmp.eq.s32.totalorder %s25, 1
      %p121 = por %p119, %p120
      %p122 = scmp.ne.s32.totalorder %s111, %s112
      %p123 = scmp.eq.s32.totalorder %s25, 0
      %p124 = por %p122, %p123
      %p125 = scmp.ne.s32.totalorder %s111, %s112
      %p126 = scmp.eq.s32.totalorder %s26, 1
      %p127 = por %p125, %p126
      %p129 = scmp.ne.s32.totalorder %s112, %s128
      %p130 = scmp.eq.s32.totalorder %s26, 0
      %p131 = por %p129, %p130
      %s133 = sadd.s32 %s132, 1
      %p136 = scmp.eq.s32.totalorder %s20, 1
      %p137 = scmp.ne.s32.totalorder %s132, %s134
      %p138 = scmp.eq.s32.totalorder %s20, 0
      %p139 = por %p137, %p138
      %p140 = scmp.ne.s32.totalorder %s132, %s134
      %p141 = scmp.eq.s32.totalorder %s25, 1
      %p142 = por %p140, %p141
      %p143 = scmp.ne.s32.totalorder %s134, %s135
      %p144 = scmp.eq.s32.totalorder %s25, 0
      %p145 = por %p143, %p144
      %p146 = scmp.ne.s32.totalorder %s134, %s135
      %p147 = scmp.eq.s32.totalorder %s26, 1
      %p148 = por %p146, %p147
      %p150 = scmp.ne.s32.totalorder %s135, %s149
      %p151 = scmp.eq.s32.totalorder %s26, 0
      %p152 = por %p150, %p151
      %s154 = sadd.s32 %s153, 1
      %p157 = scmp.eq.s32.totalorder %s20, 1
      %p158 = scmp.ne.s32.totalorder %s153, %s155
      %p159 = scmp.eq.s32.totalorder %s20, 0
      %p160 = por %p158, %p159
      %p161 = scmp.ne.s32.totalorder %s153, %s155
      %p162 = scmp.eq.s32.totalorder %s25, 1
      %p163 = por %p161, %p162
      %p164 = scmp.ne.s32.totalorder %s155, %s156
      %p165 = scmp.eq.s32.totalorder %s25, 0
      %p166 = por %p164, %p165
      %p167 = scmp.ne.s32.totalorder %s155, %s156
      %p168 = scmp.eq.s32.totalorder %s26, 1
      %p169 = por %p167, %p168
      %p171 = scmp.ne.s32.totalorder %s156, %s170
      %p172 = scmp.eq.s32.totalorder %s26, 0
      %p173 = por %p171, %p172
      %s175 = sadd.s32 %s174, 1
      %p178 = scmp.eq.s32.totalorder %s20, 1
      %p179 = scmp.ne.s32.totalorder %s174, %s176
      %p180 = scmp.eq.s32.totalorder %s20, 0
      %p181 = por %p179, %p180
      %p182 = scmp.ne.s32.totalorder %s174, %s176
      %p183 = scmp.eq.s32.totalorder %s25, 1
      %p184 = por %p182, %p183
      %p185 = scmp.ne.s32.totalorder %s176, %s177
      %p186 = scmp.eq.s32.totalorder %s25, 0
      %p187 = por %p185, %p186
      %p188 = scmp.ne.s32.totalorder %s176, %s177
      %p189 = scmp.eq.s32.totalorder %s26, 1
      %p190 = por %p188, %p189
      %p192 = scmp.ne.s32.totalorder %s177, %s191
      %p193 = scmp.eq.s32.totalorder %s26, 0
      %p194 = por %p192, %p193
      %s196 = sadd.s32 %s195, 1
      %p199 = scmp.eq.s32.totalorder %s20, 1
      %p200 = scmp.ne.s32.totalorder %s195, %s197
      %p201 = scmp.eq.s32.totalorder %s20, 0
      %p202 = por %p200, %p201
      %p203 = scmp.ne.s32.totalorder %s195, %s197
      %p204 = scmp.eq.s32.totalorder %s25, 1
      %p205 = por %p203, %p204
      %p206 = scmp.ne.s32.totalorder %s197, %s198
      %p207 = scmp.eq.s32.totalorder %s25, 0
      %p208 = por %p206, %p207
      %p209 = scmp.ne.s32.totalorder %s197, %s198
      %p210 = scmp.eq.s32.totalorder %s26, 1
      %p211 = por %p209, %p210
      %p213 = scmp.ne.s32.totalorder %s198, %s212
      %p214 = scmp.eq.s32.totalorder %s26, 0
      %p215 = por %p213, %p214
      %s217 = sadd.s32 %s216, 1
      %p220 = scmp.eq.s32.totalorder %s20, 1
      %p221 = scmp.ne.s32.totalorder %s216, %s218
      %p222 = scmp.eq.s32.totalorder %s20, 0
      %p223 = por %p221, %p222
      %p224 = scmp.ne.s32.totalorder %s216, %s218
      %p225 = scmp.eq.s32.totalorder %s25, 1
      %p226 = por %p224, %p225
      %p227 = scmp.ne.s32.totalorder %s218, %s219
      %p228 = scmp.eq.s32.totalorder %s25, 0
      %p229 = por %p227, %p228
      %p230 = scmp.ne.s32.totalorder %s218, %s219
      %p231 = scmp.eq.s32.totalorder %s26, 1
      %p232 = por %p230, %p231
      %p234 = scmp.ne.s32.totalorder %s219, %s233
      %p235 = scmp.eq.s32.totalorder %s26, 0
      %p236 = por %p234, %p235
      %s238 = sadd.s32 %s237, 1
      %p241 = scmp.eq.s32.totalorder %s20, 1
      %p242 = scmp.ne.s32.totalorder %s237, %s239
      %p243 = scmp.eq.s32.totalorder %s20, 0
      %p244 = por %p242, %p243
      %p245 = scmp.ne.s32.totalorder %s237, %s239
      %p246 = scmp.eq.s32.totalorder %s25, 1
      %p247 = por %p245, %p246
      %p248 = scmp.ne.s32.totalorder %s239, %s240
      %p249 = scmp.eq.s32.totalorder %s25, 0
      %p250 = por %p248, %p249
      %p251 = scmp.ne.s32.totalorder %s239, %s240
      %p252 = scmp.eq.s32.totalorder %s26, 1
      %p253 = por %p251, %p252
      %p255 = scmp.ne.s32.totalorder %s240, %s254
      %p256 = scmp.eq.s32.totalorder %s26, 0
      %p257 = por %p255, %p256
      %s259 = sadd.s32 %s258, 1
      %p262 = scmp.eq.s32.totalorder %s20, 1
      %p263 = scmp.ne.s32.totalorder %s258, %s260
      %p264 = scmp.eq.s32.totalorder %s20, 0
      %p265 = por %p263, %p264
      %p266 = scmp.ne.s32.totalorder %s258, %s260
      %p267 = scmp.eq.s32.totalorder %s25, 1
      %p268 = por %p266, %p267
      %p269 = scmp.ne.s32.totalorder %s260, %s261
      %p270 = scmp.eq.s32.totalorder %s25, 0
      %p271 = por %p269, %p270
      %p272 = scmp.ne.s32.totalorder %s260, %s261
      %p273 = scmp.eq.s32.totalorder %s26, 1
      %p274 = por %p272, %p273
      %p276 = scmp.ne.s32.totalorder %s261, %s275
      %p277 = scmp.eq.s32.totalorder %s26, 0
      %p278 = por %p276, %p277
      %s279 = ssub.s32 %s20, %s27
      %p280 = scmp.eq.s32.totalorder %s279, 0
      %s282 = sadd.s32 %s281, 1
      %s283 = scalar_select %p280, %s281, %s282
      %p286 = pneg %p280
      %p287 = scmp.eq.s32.totalorder %s20, 1
      %p288 = por %p286, %p287
      %p289 = scmp.ne.s32.totalorder %s281, %s284
      %p290 = scmp.eq.s32.totalorder %s20, 0
      %p291 = por %p289, %p290
      %p292 = scmp.ne.s32.totalorder %s281, %s284
      %p293 = scmp.eq.s32.totalorder %s25, 1
      %p294 = por %p292, %p293
      %p295 = scmp.ne.s32.totalorder %s284, %s285
      %p296 = scmp.eq.s32.totalorder %s25, 0
      %p297 = por %p295, %p296
      %p298 = scmp.ne.s32.totalorder %s284, %s285
      %p299 = scmp.eq.s32.totalorder %s26, 1
      %p300 = por %p298, %p299
      %p302 = scmp.ne.s32.totalorder %s285, %s301
      %p303 = scmp.eq.s32.totalorder %s26, 0
      %p304 = por %p302, %p303
      %p305 = scmp.le.s32.totalorder 1, %s20
      %p306 = scmp.lt.s32.totalorder %s20, 3
      %p307 = pnand %p305, %p306
      %p308 = pneg %p307
      // Predicated region
      $region9: #{tpu_custom_call.1} parent=5 // pred_check
        _
      $region10: #{tpu_custom_call.1} parent=5 // pred_check_branch
        %310 = sbr.rel (%p307) target = $region12
      $region11: #{tpu_custom_call.1} parent=5 // pred_region
        %s311 = ssub.s32 %s20, 1
        // Predicated region
        $region13: #{tpu_custom_call.1} parent=11 // pred_check
          %p312 = pneg %p145
        $region14: #{tpu_custom_call.1} parent=11 // pred_check_branch
          %314 = sbr.rel (%p312) target = $region16
        $region15: #{tpu_custom_call.1} parent=11 // pred_region
          _
        $region16: #{tpu_custom_call.1} parent=11 // pred_fallthru
          _
        // Predicated region
        $region17: #{tpu_custom_call.1} parent=11 // pred_check
          %p315 = pneg %p166
        $region18: #{tpu_custom_call.1} parent=11 // pred_check_branch
          %317 = sbr.rel (%p315) target = $region20
        $region19: #{tpu_custom_call.1} parent=11 // pred_region
          _
        $region20: #{tpu_custom_call.1} parent=11 // pred_fallthru
          _
        // Predicated region
        $region21: #{tpu_custom_call.1} parent=11 // pred_check
          %p318 = pneg %p187
        $region22: #{tpu_custom_call.1} parent=11 // pred_check_branch
          %320 = sbr.rel (%p318) target = $region24
        $region23: #{tpu_custom_call.1} parent=11 // pred_region
          _
        $region24: #{tpu_custom_call.1} parent=11 // pred_fallthru
          _
        // Predicated region
        $region25: #{tpu_custom_call.1} parent=11 // pred_check
          %p321 = pneg %p208
        $region26: #{tpu_custom_call.1} parent=11 // pred_check_branch
          %323 = sbr.rel (%p321) target = $region28
        $region27: #{tpu_custom_call.1} parent=11 // pred_region
          _
        $region28: #{tpu_custom_call.1} parent=11 // pred_fallthru
          _
        // Predicated region
        $region29: #{tpu_custom_call.1} parent=11 // pred_check
          %p324 = pneg %p229
        $region30: #{tpu_custom_call.1} parent=11 // pred_check_branch
          %326 = sbr.rel (%p324) target = $region32
        $region31: #{tpu_custom_call.1} parent=11 // pred_region
          _
        $region32: #{tpu_custom_call.1} parent=11 // pred_fallthru
          _
        // Predicated region
        $region33: #{tpu_custom_call.1} parent=11 // pred_check
          %p327 = pneg %p250
        $region34: #{tpu_custom_call.1} parent=11 // pred_check_branch
          %329 = sbr.rel (%p327) target = $region36
        $region35: #{tpu_custom_call.1} parent=11 // pred_region
          _
        $region36: #{tpu_custom_call.1} parent=11 // pred_fallthru
          _
        // Predicated region
        $region37: #{tpu_custom_call.1} parent=11 // pred_check
          %p330 = pneg %p271
        $region38: #{tpu_custom_call.1} parent=11 // pred_check_branch
          %332 = sbr.rel (%p330) target = $region40
        $region39: #{tpu_custom_call.1} parent=11 // pred_region
          _
        $region40: #{tpu_custom_call.1} parent=11 // pred_fallthru
          _
      $region12: #{tpu_custom_call.1} parent=5 // pred_fallthru
        _
      %p333 = scmp.lt.s32.totalorder %s20, 2
      // Predicated region
      $region41: #{tpu_custom_call.1} parent=5 // pred_check
        %p334 = pneg %p333
      $region42: #{tpu_custom_call.1} parent=5 // pred_check_branch
        %336 = sbr.rel (%p334) target = $region44
      $region43: #{tpu_custom_call.1} parent=5 // pred_region
        // Predicated region
        $region45: #{tpu_custom_call.1} parent=43 // pred_check
          %p337 = pneg %p40
        $region46: #{tpu_custom_call.1} parent=43 // pred_check_branch
          %339 = sbr.rel (%p337) target = $region48
        $region47: #{tpu_custom_call.1} parent=43 // pred_region
          %p340 = scmp.lt.s32.totalorder %s20, 1
          %s341 = scalar_select %p340, %s20, 1
          %s342 = smul.addr %s341, 8
          %s343 = smul.addr %s342, 8
          %s344 = scalar_lea.vmem %s0, %s343
        $region48: #{tpu_custom_call.1} parent=43 // pred_fallthru
          _
        // Predicated region
        $region49: #{tpu_custom_call.1} parent=43 // pred_check
          %p345 = pneg %p66
        $region50: #{tpu_custom_call.1} parent=43 // pred_check_branch
          %347 = sbr.rel (%p345) target = $region52
        $region51: #{tpu_custom_call.1} parent=43 // pred_region
          %p348 = scmp.lt.s32.totalorder %s20, 1
          %s349 = scalar_select %p348, %s20, 1
          %s350 = smul.addr %s349, 8
          %s351 = smul.addr %s350, 8
          %s352 = scalar_lea.vmem %s1, %s351
        $region52: #{tpu_custom_call.1} parent=43 // pred_fallthru
          _
        // Predicated region
        $region53: #{tpu_custom_call.1} parent=43 // pred_check
          %p353 = pneg %p92
        $region54: #{tpu_custom_call.1} parent=43 // pred_check_branch
          %355 = sbr.rel (%p353) target = $region56
        $region55: #{tpu_custom_call.1} parent=43 // pred_region
          %p356 = scmp.lt.s32.totalorder %s20, 1
          %s357 = scalar_select %p356, %s20, 1
          %s358 = smul.addr %s357, 8
          %s359 = smul.addr %s358, 8
          %s360 = scalar_lea.vmem %s2, %s359
        $region56: #{tpu_custom_call.1} parent=43 // pred_fallthru
          _
        // Predicated region
        $region57: #{tpu_custom_call.1} parent=43 // pred_check
          %p361 = pneg %p118
        $region58: #{tpu_custom_call.1} parent=43 // pred_check_branch
          %363 = sbr.rel (%p361) target = $region60
        $region59: #{tpu_custom_call.1} parent=43 // pred_region
          %p364 = scmp.lt.s32.totalorder %s20, 1
          %s365 = scalar_select %p364, %s20, 1
          %s366 = smul.addr %s365, 8
          %s367 = smul.addr %s366, 8
          %s368 = scalar_lea.vmem %s3, %s367
        $region60: #{tpu_custom_call.1} parent=43 // pred_fallthru
          _
      $region44: #{tpu_custom_call.1} parent=5 // pred_fallthru
        _
      %p369 = scmp.le.s32.totalorder 1, %s20
      %p370 = scmp.lt.s32.totalorder %s20, 3
      %p371 = pnand %p369, %p370
      %p372 = pneg %p371
      // Predicated region
      $region61: #{tpu_custom_call.1} parent=5 // pred_check
        _
      $region62: #{tpu_custom_call.1} parent=5 // pred_check_branch
        %374 = sbr.rel (%p371) target = $region64
      $region63: #{tpu_custom_call.1} parent=5 // pred_region
        %s375 = ssub.s32 %s20, 1
        %p376 = scmp.lt.s32.totalorder %s25, 1
        %s377 = scalar_select %p376, %s25, 1
        %s378 = smul.addr %s377, 8
        %s379 = smul.addr %s378, 8
        %s380 = scalar_lea.vmem %s0, %s379
        %p381 = pneg %p46
        %p382 = pneg %p43
        %p383 = scmp.lt.s32.totalorder %s25, 1
        %s384 = scalar_select %p383, %s25, 1
        %s385 = smul.addr %s384, 8
        %s386 = smul.addr %s385, 8
        %s387 = scalar_lea.vmem %s1, %s386
        %p388 = pneg %p72
        %p389 = pneg %p69
        %p390 = scmp.lt.s32.totalorder %s25, 1
        %s391 = scalar_select %p390, %s25, 1
        %s392 = smul.addr %s391, 8
        %s393 = smul.addr %s392, 8
        %s394 = scalar_lea.vmem %s2, %s393
        %p395 = pneg %p98
        %p396 = pneg %p95
        %p397 = scmp.lt.s32.totalorder %s25, 1
        %s398 = scalar_select %p397, %s25, 1
        %s399 = smul.addr %s398, 8
        %s400 = smul.addr %s399, 8
        %s401 = scalar_lea.vmem %s3, %s400
        %p402 = pneg %p124
        %p403 = pneg %p121
        %p404 = pneg %p145
        %p405 = pneg %p142
        %p406 = pneg %p166
        %p407 = pneg %p163
        %p408 = pneg %p187
        %p409 = pneg %p184
        %p410 = pneg %p208
        %p411 = pneg %p205
        %p412 = pneg %p229
        %p413 = pneg %p226
        %p414 = pneg %p250
        %p415 = pneg %p247
        %p416 = pneg %p271
        %p417 = pneg %p268
        %p418 = pneg %p297
        %p419 = pneg %p294
        %s420 = sand.u32 %s284, 1
        %s421 = scalar_lea.sflag [#allocation9], %s420
        %s422 = sand.u32 %s284, 1
        %s423 = smul.addr %s422, 64
        %s424 = scalar_lea.vmem [#allocation8], %s423
        %p425 = scmp.lt.s32.totalorder %s25, 1
        %s426 = scalar_select %p425, %s25, 1
        %s427 = smul.addr %s426, 8
        %s428 = smul.addr %s427, 8
        %s429 = scalar_lea.vmem %s0, %s428
        %p430 = scmp.lt.s32.totalorder %s25, 1
        %s431 = scalar_select %p430, %s25, 1
        %s432 = smul.addr %s431, 8
        %s433 = smul.addr %s432, 8
        %s434 = scalar_lea.vmem %s1, %s433
        %p435 = scmp.lt.s32.totalorder %s25, 1
        %s436 = scalar_select %p435, %s25, 1
        %s437 = smul.addr %s436, 8
        %s438 = smul.addr %s437, 8
        %s439 = scalar_lea.vmem %s2, %s438
        %p440 = scmp.lt.s32.totalorder %s25, 1
        %s441 = scalar_select %p440, %s25, 1
        %s442 = smul.addr %s441, 8
        %s443 = smul.addr %s442, 8
        %s444 = scalar_lea.vmem %s3, %s443
        %v446 = vld [vmem:[%s4] sm:$0x1]
        %v447 = vld [vmem:[%s5] sm:$0x1]
        %vm448 = vcmask 31744
        %449 = vst.msk [vmem:[#allocation2] sm:$0xff] %vm448, 0.0
        %vm450 = vcmask 24576
        %451 = vst.msk [vmem:[#allocation2 + $0x8] sm:$0x1] %vm450, 0.0
        %452 = vst.msk [vmem:[#allocation2 + $0x10] sm:$0xff] %vm448, 0.0
        %453 = vst.msk [vmem:[#allocation2 + $0x18] sm:$0x1] %vm450, 0.0
        %454 = vst.msk [vmem:[#allocation2 + $0x20] sm:$0xff] %vm448, 0.0
        %455 = vst.msk [vmem:[#allocation2 + $0x28] sm:$0x1] %vm450, 0.0
        %456 = vst.msk [vmem:[#allocation2 + $0x30] sm:$0xff] %vm448, 0.0
        %457 = vst.msk [vmem:[#allocation2 + $0x38] sm:$0x1] %vm450, 0.0
        %458 = vst.msk [vmem:[#allocation2 + $0x40] sm:$0xff] %vm448, 0.0
        %459 = vst.msk [vmem:[#allocation2 + $0x48] sm:$0x1] %vm450, 0.0
        %460 = vst.msk [vmem:[#allocation2 + $0x50] sm:$0xff] %vm448, 0.0
        %461 = vst.msk [vmem:[#allocation2 + $0x58] sm:$0x1] %vm450, 0.0
        %462 = vst.msk [vmem:[#allocation2 + $0x60] sm:$0xff] %vm448, 0.0
        %463 = vst.msk [vmem:[#allocation2 + $0x68] sm:$0x1] %vm450, 0.0
        %464 = vst.msk [vmem:[#allocation2 + $0x70] sm:$0xff] %vm448, 0.0
        %465 = vst.msk [vmem:[#allocation2 + $0x78] sm:$0x1] %vm450, 0.0
        %466 = vst.msk [vmem:[#allocation2 + $0x80] sm:$0xff] %vm448, 0.0
        %467 = vst.msk [vmem:[#allocation2 + $0x88] sm:$0x1] %vm450, 0.0
        %v468 = vld [vmem:[%s429] sm:$0xff]
        %v469 = vld [vmem:[%s429 + $0x8] sm:$0xff]
        %v470 = vld [vmem:[%s429 + $0x10] sm:$0xff]
        %v471 = vld [vmem:[%s429 + $0x18] sm:$0xff]
        %v472 = vld [vmem:[%s429 + $0x20] sm:$0xff]
        %v473 = vld [vmem:[%s429 + $0x28] sm:$0xff]
        %v474 = vld [vmem:[%s429 + $0x30] sm:$0xff]
        %v475 = vld [vmem:[%s429 + $0x38] sm:$0xff]
        %v477 = vlaneseq
        %v478 = vshrl.u32 %v477, 7
        %v479 = vsub.s32 0, %v478
        %v480 = vrot.slane %v446, %v479
        %v482 = vmul.f32 %v468, %v480
        %v483 = vmul.f32 %v469, %v480
        %v484 = vmul.f32 %v470, %v480
        %v485 = vmul.f32 %v471, %v480
        %v486 = vmul.f32 %v472, %v480
        %v487 = vmul.f32 %v473, %v480
        %v488 = vmul.f32 %v474, %v480
        %v489 = vmul.f32 %v475, %v480
        %v491 = vlaneseq
        %v492 = vshrl.u32 %v491, 7
        %v493 = vsub.s32 0, %v492
        %v494 = vrot.slane %v447, %v493
        %v496 = vadd.f32 %v482, %v494
        %v497 = vadd.f32 %v483, %v494
        %v498 = vadd.f32 %v484, %v494
        %v499 = vadd.f32 %v485, %v494
        %v500 = vadd.f32 %v486, %v494
        %v501 = vadd.f32 %v487, %v494
        %v502 = vadd.f32 %v488, %v494
        %v503 = vadd.f32 %v489, %v494
        %v504 = vmax.f32 %v496, 0.0
        %v505 = vmax.f32 %v497, 0.0
        %v506 = vmax.f32 %v498, 0.0
        %v507 = vmax.f32 %v499, 0.0
        %v508 = vmax.f32 %v500, 0.0
        %v509 = vmax.f32 %v501, 0.0
        %v510 = vmax.f32 %v502, 0.0
        %v511 = vmax.f32 %v503, 0.0
        %s512 = scalar_lea.vmem [#allocation2], 16
        %513 = vst.msk [vmem:[%s512 + $0x1] sm:$0xff] %vm448, %v504
        %514 = vst.msk [vmem:[%s512 + $0x11] sm:$0xff] %vm448, %v505
        %515 = vst.msk [vmem:[%s512 + $0x21] sm:$0xff] %vm448, %v506
        %516 = vst.msk [vmem:[%s512 + $0x31] sm:$0xff] %vm448, %v507
        %517 = vst.msk [vmem:[%s512 + $0x41] sm:$0xff] %vm448, %v508
        %518 = vst.msk [vmem:[%s512 + $0x51] sm:$0xff] %vm448, %v509
        %519 = vst.msk [vmem:[%s512 + $0x61] sm:$0xff] %vm448, %v510
        %520 = vst.msk [vmem:[%s512 + $0x71] sm:$0xff] %vm448, %v511
        %521 = vst.msk [vmem:[#allocation3] sm:$0xff] %vm448, 0.0
        %522 = vst.msk [vmem:[#allocation3 + $0x8] sm:$0x1] %vm450, 0.0
        %523 = vst.msk [vmem:[#allocation3 + $0x10] sm:$0xff] %vm448, 0.0
        %524 = vst.msk [vmem:[#allocation3 + $0x18] sm:$0x1] %vm450, 0.0
        %525 = vst.msk [vmem:[#allocation3 + $0x20] sm:$0xff] %vm448, 0.0
        %526 = vst.msk [vmem:[#allocation3 + $0x28] sm:$0x1] %vm450, 0.0
        %527 = vst.msk [vmem:[#allocation3 + $0x30] sm:$0xff] %vm448, 0.0
        %528 = vst.msk [vmem:[#allocation3 + $0x38] sm:$0x1] %vm450, 0.0
        %529 = vst.msk [vmem:[#allocation3 + $0x40] sm:$0xff] %vm448, 0.0
        %530 = vst.msk [vmem:[#allocation3 + $0x48] sm:$0x1] %vm450, 0.0
        %531 = vst.msk [vmem:[#allocation3 + $0x50] sm:$0xff] %vm448, 0.0
        %532 = vst.msk [vmem:[#allocation3 + $0x58] sm:$0x1] %vm450, 0.0
        %533 = vst.msk [vmem:[#allocation3 + $0x60] sm:$0xff] %vm448, 0.0
        %534 = vst.msk [vmem:[#allocation3 + $0x68] sm:$0x1] %vm450, 0.0
        %535 = vst.msk [vmem:[#allocation3 + $0x70] sm:$0xff] %vm448, 0.0
        %536 = vst.msk [vmem:[#allocation3 + $0x78] sm:$0x1] %vm450, 0.0
        %537 = vst.msk [vmem:[#allocation3 + $0x80] sm:$0xff] %vm448, 0.0
        %538 = vst.msk [vmem:[#allocation3 + $0x88] sm:$0x1] %vm450, 0.0
        %v539 = vld [vmem:[%s434] sm:$0xff]
        %v540 = vld [vmem:[%s434 + $0x8] sm:$0xff]
        %v541 = vld [vmem:[%s434 + $0x10] sm:$0xff]
        %v542 = vld [vmem:[%s434 + $0x18] sm:$0xff]
        %v543 = vld [vmem:[%s434 + $0x20] sm:$0xff]
        %v544 = vld [vmem:[%s434 + $0x28] sm:$0xff]
        %v545 = vld [vmem:[%s434 + $0x30] sm:$0xff]
        %v546 = vld [vmem:[%s434 + $0x38] sm:$0xff]
        %v547 = vmul.f32 %v539, %v480
        %v548 = vmul.f32 %v540, %v480
        %v549 = vmul.f32 %v541, %v480
        %v550 = vmul.f32 %v542, %v480
        %v551 = vmul.f32 %v543, %v480
        %v552 = vmul.f32 %v544, %v480
        %v553 = vmul.f32 %v545, %v480
        %v554 = vmul.f32 %v546, %v480
        %v555 = vadd.f32 %v547, %v494
        %v556 = vadd.f32 %v548, %v494
        %v557 = vadd.f32 %v549, %v494
        %v558 = vadd.f32 %v550, %v494
        %v559 = vadd.f32 %v551, %v494
        %v560 = vadd.f32 %v552, %v494
        %v561 = vadd.f32 %v553, %v494
        %v562 = vadd.f32 %v554, %v494
        %v563 = vmax.f32 %v555, 0.0
        %v564 = vmax.f32 %v556, 0.0
        %v565 = vmax.f32 %v557, 0.0
        %v566 = vmax.f32 %v558, 0.0
        %v567 = vmax.f32 %v559, 0.0
        %v568 = vmax.f32 %v560, 0.0
        %v569 = vmax.f32 %v561, 0.0
        %v570 = vmax.f32 %v562, 0.0
        %s571 = scalar_lea.vmem [#allocation3], 16
        %572 = vst.msk [vmem:[%s571 + $0x1] sm:$0xff] %vm448, %v563
        %573 = vst.msk [vmem:[%s571 + $0x11] sm:$0xff] %vm448, %v564
        %574 = vst.msk [vmem:[%s571 + $0x21] sm:$0xff] %vm448, %v565
        %575 = vst.msk [vmem:[%s571 + $0x31] sm:$0xff] %vm448, %v566
        %576 = vst.msk [vmem:[%s571 + $0x41] sm:$0xff] %vm448, %v567
        %577 = vst.msk [vmem:[%s571 + $0x51] sm:$0xff] %vm448, %v568
        %578 = vst.msk [vmem:[%s571 + $0x61] sm:$0xff] %vm448, %v569
        %579 = vst.msk [vmem:[%s571 + $0x71] sm:$0xff] %vm448, %v570
        %580 = vst.msk [vmem:[#allocation4] sm:$0xff] %vm448, 0.0
        %581 = vst.msk [vmem:[#allocation4 + $0x8] sm:$0x1] %vm450, 0.0
        %582 = vst.msk [vmem:[#allocation4 + $0x10] sm:$0xff] %vm448, 0.0
        %583 = vst.msk [vmem:[#allocation4 + $0x18] sm:$0x1] %vm450, 0.0
        %584 = vst.msk [vmem:[#allocation4 + $0x20] sm:$0xff] %vm448, 0.0
        %585 = vst.msk [vmem:[#allocation4 + $0x28] sm:$0x1] %vm450, 0.0
        %586 = vst.msk [vmem:[#allocation4 + $0x30] sm:$0xff] %vm448, 0.0
        %587 = vst.msk [vmem:[#allocation4 + $0x38] sm:$0x1] %vm450, 0.0
        %588 = vst.msk [vmem:[#allocation4 + $0x40] sm:$0xff] %vm448, 0.0
        %589 = vst.msk [vmem:[#allocation4 + $0x48] sm:$0x1] %vm450, 0.0
        %590 = vst.msk [vmem:[#allocation4 + $0x50] sm:$0xff] %vm448, 0.0
        %591 = vst.msk [vmem:[#allocation4 + $0x58] sm:$0x1] %vm450, 0.0
        %592 = vst.msk [vmem:[#allocation4 + $0x60] sm:$0xff] %vm448, 0.0
        %593 = vst.msk [vmem:[#allocation4 + $0x68] sm:$0x1] %vm450, 0.0
        %594 = vst.msk [vmem:[#allocation4 + $0x70] sm:$0xff] %vm448, 0.0
        %595 = vst.msk [vmem:[#allocation4 + $0x78] sm:$0x1] %vm450, 0.0
        %596 = vst.msk [vmem:[#allocation4 + $0x80] sm:$0xff] %vm448, 0.0
        %597 = vst.msk [vmem:[#allocation4 + $0x88] sm:$0x1] %vm450, 0.0
        %v598 = vld [vmem:[%s439] sm:$0xff]
        %v599 = vld [vmem:[%s439 + $0x8] sm:$0xff]
        %v600 = vld [vmem:[%s439 + $0x10] sm:$0xff]
        %v601 = vld [vmem:[%s439 + $0x18] sm:$0xff]
        %v602 = vld [vmem:[%s439 + $0x20] sm:$0xff]
        %v603 = vld [vmem:[%s439 + $0x28] sm:$0xff]
        %v604 = vld [vmem:[%s439 + $0x30] sm:$0xff]
        %v605 = vld [vmem:[%s439 + $0x38] sm:$0xff]
        %v606 = vmul.f32 %v598, %v480
        %v607 = vmul.f32 %v599, %v480
        %v608 = vmul.f32 %v600, %v480
        %v609 = vmul.f32 %v601, %v480
        %v610 = vmul.f32 %v602, %v480
        %v611 = vmul.f32 %v603, %v480
        %v612 = vmul.f32 %v604, %v480
        %v613 = vmul.f32 %v605, %v480
        %v614 = vadd.f32 %v606, %v494
        %v615 = vadd.f32 %v607, %v494
        %v616 = vadd.f32 %v608, %v494
        %v617 = vadd.f32 %v609, %v494
        %v618 = vadd.f32 %v610, %v494
        %v619 = vadd.f32 %v611, %v494
        %v620 = vadd.f32 %v612, %v494
        %v621 = vadd.f32 %v613, %v494
        %v622 = vmax.f32 %v614, 0.0
        %v623 = vmax.f32 %v615, 0.0
        %v624 = vmax.f32 %v616, 0.0
        %v625 = vmax.f32 %v617, 0.0
        %v626 = vmax.f32 %v618, 0.0
        %v627 = vmax.f32 %v619, 0.0
        %v628 = vmax.f32 %v620, 0.0
        %v629 = vmax.f32 %v621, 0.0
        %s630 = scalar_lea.vmem [#allocation4], 16
        %631 = vst.msk [vmem:[%s630 + $0x1] sm:$0xff] %vm448, %v622
        %632 = vst.msk [vmem:[%s630 + $0x11] sm:$0xff] %vm448, %v623
        %633 = vst.msk [vmem:[%s630 + $0x21] sm:$0xff] %vm448, %v624
        %634 = vst.msk [vmem:[%s630 + $0x31] sm:$0xff] %vm448, %v625
        %635 = vst.msk [vmem:[%s630 + $0x41] sm:$0xff] %vm448, %v626
        %636 = vst.msk [vmem:[%s630 + $0x51] sm:$0xff] %vm448, %v627
        %637 = vst.msk [vmem:[%s630 + $0x61] sm:$0xff] %vm448, %v628
        %638 = vst.msk [vmem:[%s630 + $0x71] sm:$0xff] %vm448, %v629
        %639 = vst.msk [vmem:[#allocation5] sm:$0xff] %vm448, 0.0
        %640 = vst.msk [vmem:[#allocation5 + $0x8] sm:$0x1] %vm450, 0.0
        %641 = vst.msk [vmem:[#allocation5 + $0x10] sm:$0xff] %vm448, 0.0
        %642 = vst.msk [vmem:[#allocation5 + $0x18] sm:$0x1] %vm450, 0.0
        %643 = vst.msk [vmem:[#allocation5 + $0x20] sm:$0xff] %vm448, 0.0
        %644 = vst.msk [vmem:[#allocation5 + $0x28] sm:$0x1] %vm450, 0.0
        %645 = vst.msk [vmem:[#allocation5 + $0x30] sm:$0xff] %vm448, 0.0
        %646 = vst.msk [vmem:[#allocation5 + $0x38] sm:$0x1] %vm450, 0.0
        %647 = vst.msk [vmem:[#allocation5 + $0x40] sm:$0xff] %vm448, 0.0
        %648 = vst.msk [vmem:[#allocation5 + $0x48] sm:$0x1] %vm450, 0.0
        %649 = vst.msk [vmem:[#allocation5 + $0x50] sm:$0xff] %vm448, 0.0
        %650 = vst.msk [vmem:[#allocation5 + $0x58] sm:$0x1] %vm450, 0.0
        %651 = vst.msk [vmem:[#allocation5 + $0x60] sm:$0xff] %vm448, 0.0
        %652 = vst.msk [vmem:[#allocation5 + $0x68] sm:$0x1] %vm450, 0.0
        %653 = vst.msk [vmem:[#allocation5 + $0x70] sm:$0xff] %vm448, 0.0
        %654 = vst.msk [vmem:[#allocation5 + $0x78] sm:$0x1] %vm450, 0.0
        %655 = vst.msk [vmem:[#allocation5 + $0x80] sm:$0xff] %vm448, 0.0
        %656 = vst.msk [vmem:[#allocation5 + $0x88] sm:$0x1] %vm450, 0.0
        %v657 = vld [vmem:[%s444] sm:$0xff]
        %v658 = vld [vmem:[%s444 + $0x8] sm:$0xff]
        %v659 = vld [vmem:[%s444 + $0x10] sm:$0xff]
        %v660 = vld [vmem:[%s444 + $0x18] sm:$0xff]
        %v661 = vld [vmem:[%s444 + $0x20] sm:$0xff]
        %v662 = vld [vmem:[%s444 + $0x28] sm:$0xff]
        %v663 = vld [vmem:[%s444 + $0x30] sm:$0xff]
        %v664 = vld [vmem:[%s444 + $0x38] sm:$0xff]
        %v665 = vmul.f32 %v657, %v480
        %v666 = vmul.f32 %v658, %v480
        %v667 = vmul.f32 %v659, %v480
        %v668 = vmul.f32 %v660, %v480
        %v669 = vmul.f32 %v661, %v480
        %v670 = vmul.f32 %v662, %v480
        %v671 = vmul.f32 %v663, %v480
        %v672 = vmul.f32 %v664, %v480
        %v673 = vadd.f32 %v665, %v494
        %v674 = vadd.f32 %v666, %v494
        %v675 = vadd.f32 %v667, %v494
        %v676 = vadd.f32 %v668, %v494
        %v677 = vadd.f32 %v669, %v494
        %v678 = vadd.f32 %v670, %v494
        %v679 = vadd.f32 %v671, %v494
        %v680 = vadd.f32 %v672, %v494
        %v681 = vmax.f32 %v673, 0.0
        %v682 = vmax.f32 %v674, 0.0
        %v683 = vmax.f32 %v675, 0.0
        %v684 = vmax.f32 %v676, 0.0
        %v685 = vmax.f32 %v677, 0.0
        %v686 = vmax.f32 %v678, 0.0
        %v687 = vmax.f32 %v679, 0.0
        %v688 = vmax.f32 %v680, 0.0
        %s689 = scalar_lea.vmem [#allocation5], 16
        %690 = vst.msk [vmem:[%s689 + $0x1] sm:$0xff] %vm448, %v681
        %691 = vst.msk [vmem:[%s689 + $0x11] sm:$0xff] %vm448, %v682
        %692 = vst.msk [vmem:[%s689 + $0x21] sm:$0xff] %vm448, %v683
        %693 = vst.msk [vmem:[%s689 + $0x31] sm:$0xff] %vm448, %v684
        %694 = vst.msk [vmem:[%s689 + $0x41] sm:$0xff] %vm448, %v685
        %695 = vst.msk [vmem:[%s689 + $0x51] sm:$0xff] %vm448, %v686
        %696 = vst.msk [vmem:[%s689 + $0x61] sm:$0xff] %vm448, %v687
        %697 = vst.msk [vmem:[%s689 + $0x71] sm:$0xff] %vm448, %v688
        %698 = vst [vmem:[#allocation7] sm:$0xff] 0.0
        %699 = vst [vmem:[#allocation7 + $0x8] sm:$0xff] 0.0
        %700 = vst [vmem:[#allocation7 + $0x10] sm:$0xff] 0.0
        %701 = vst [vmem:[#allocation7 + $0x18] sm:$0xff] 0.0
        %702 = vst [vmem:[#allocation7 + $0x20] sm:$0xff] 0.0
        %703 = vst [vmem:[#allocation7 + $0x28] sm:$0xff] 0.0
        %704 = vst [vmem:[#allocation7 + $0x30] sm:$0xff] 0.0
        %705 = vst [vmem:[#allocation7 + $0x38] sm:$0xff] 0.0
        %v706 = vld [vmem:[#allocation5] sm:$0xff]
        %v707 = vld [vmem:[#allocation5 + $0x10] sm:$0xff]
        %v708 = vld [vmem:[#allocation5 + $0x20] sm:$0xff]
        %v709 = vld [vmem:[#allocation5 + $0x30] sm:$0xff]
        %v710 = vld [vmem:[#allocation5 + $0x40] sm:$0xff]
        %v711 = vld [vmem:[#allocation5 + $0x50] sm:$0xff]
        %v712 = vld [vmem:[#allocation5 + $0x60] sm:$0xff]
        %v713 = vld [vmem:[#allocation5 + $0x70] sm:$0xff]
        %v714 = vpack.c.bf16 %v707, %v706
        %v715 = vpack.c.bf16 %v709, %v708
        %v716 = vpack.c.bf16 %v711, %v710
        %v717 = vpack.c.bf16 %v713, %v712
        %v718 = vld [vmem:[#allocation7] sm:$0xff]
        %v719 = vld [vmem:[#allocation7 + $0x8] sm:$0xff]
        %v720 = vld [vmem:[#allocation7 + $0x10] sm:$0xff]
        %v721 = vld [vmem:[#allocation7 + $0x18] sm:$0xff]
        %v722 = vld [vmem:[#allocation7 + $0x20] sm:$0xff]
        %v723 = vld [vmem:[#allocation7 + $0x28] sm:$0xff]
        %v724 = vld [vmem:[#allocation7 + $0x30] sm:$0xff]
        %v725 = vld [vmem:[#allocation7 + $0x38] sm:$0xff]
        %v726 = vld [vmem:[%s6] sm:$0x3]
        %v728 = vsel %vm448, %v714, 0
        %v731 = vsel %vm448, %v715, 0
        %v734 = vsel %vm448, %v716, 0
        %v737 = vsel %vm448, %v717, 0
        %vm739 = vcmask 1041408
        %v741 = vsel %vm739, %v726, 0
        %743 = vmatprep.subr.bf16.mxu0 0
        %744 = vmatpush1.bf16.msra.mxu0 %v741
        %745 = vmatprep.subr.bf16.mxu0 0
        %746 = vmatpush1.bf16.msra.mxu0 0
        %747 = vmatprep.subr.bf16.mxu0 0
        %748 = vmatpush1.bf16.msra.mxu0 0
        %749 = vmatprep.subr.bf16.mxu0 0
        %750 = vmatpush1.bf16.msra.mxu0 0
        %751 = vmatprep.subr.bf16.mxu0 0
        %752 = vmatpush1.bf16.msra.mxu0 0
        %753 = vmatprep.subr.bf16.mxu0 0
        %754 = vmatpush1.bf16.msra.mxu0 0
        %755 = vmatprep.subr.bf16.mxu0 0
        %756 = vmatpush1.bf16.msra.mxu0 0
        %757 = vmatprep.subr.bf16.mxu0 0
        %758 = vmatpush1.bf16.msra.mxu0 0
        %759 = vmatprep.subr.bf16.mxu0 0
        %760 = vmatpush1.bf16.msra.mxu0 0
        %761 = vmatprep.subr.bf16.mxu0 0
        %762 = vmatpush1.bf16.msra.mxu0 0
        %763 = vmatprep.subr.bf16.mxu0 0
        %764 = vmatpush1.bf16.msra.mxu0 0
        %765 = vmatprep.subr.bf16.mxu0 0
        %766 = vmatpush1.bf16.msra.mxu0 0
        %767 = vmatprep.subr.bf16.mxu0 0
        %768 = vmatpush1.bf16.msra.mxu0 0
        %769 = vmatprep.subr.bf16.mxu0 0
        %770 = vmatpush1.bf16.msra.mxu0 0
        %771 = vmatprep.subr.bf16.mxu0 0
        %772 = vmatpush1.bf16.msra.mxu0 0
        %773 = vmatprep.subr.bf16.mxu0 0
        %774 = vmatpush1.bf16.msra.mxu0 0
        %775 = vmatprep.mubr.bf16.mxu0 0
        %776 = vmatmul.mubr.bf16.gmra.mrb[0].mxu0 %v728
        %v777 = vpop.f32.mrb[0].mxu0
        %v778 = vadd.f32 0.0, %v777
        %v779 = vpop.f32.mrb[0].mxu0
        %v780 = vpop.f32.mrb[0].mxu0
        %v781 = vadd.f32 0.0, %v780
        %v782 = vpop.f32.mrb[0].mxu0
        %783 = vmatprep.mubr.bf16.mxu0 0
        %784 = vmatmul.mubr.bf16.gmra.mrb[0].mxu0 %v731
        %v785 = vpop.f32.mrb[0].mxu0
        %v786 = vadd.f32 0.0, %v785
        %v787 = vpop.f32.mrb[0].mxu0
        %v788 = vpop.f32.mrb[0].mxu0
        %v789 = vadd.f32 0.0, %v788
        %v790 = vpop.f32.mrb[0].mxu0
        %791 = vmatprep.mubr.bf16.mxu0 0
        %792 = vmatmul.mubr.bf16.gmra.mrb[0].mxu0 %v734
        %v793 = vpop.f32.mrb[0].mxu0
        %v794 = vadd.f32 0.0, %v793
        %v795 = vpop.f32.mrb[0].mxu0
        %v796 = vpop.f32.mrb[0].mxu0
        %v797 = vadd.f32 0.0, %v796
        %v798 = vpop.f32.mrb[0].mxu0
        %799 = vmatprep.mubr.bf16.mxu0 0
        %800 = vmatmul.mubr.bf16.gmra.mrb[0].mxu0 %v737
        %v801 = vpop.f32.mrb[0].mxu0
        %v802 = vadd.f32 0.0, %v801
        %v803 = vpop.f32.mrb[0].mxu0
        %v804 = vpop.f32.mrb[0].mxu0
        %v805 = vadd.f32 0.0, %v804
        %v806 = vpop.f32.mrb[0].mxu0
        %807 = vdwg.mxu0
        %v808 = vadd.f32 %v718, %v778
        %v809 = vadd.f32 %v719, %v781
        %v810 = vadd.f32 %v720, %v786
        %v811 = vadd.f32 %v721, %v789
        %v812 = vadd.f32 %v722, %v794
        %v813 = vadd.f32 %v723, %v797
        %v814 = vadd.f32 %v724, %v802
        %v815 = vadd.f32 %v725, %v805
        %816 = vst [vmem:[#allocation7] sm:$0xff] %v808
        %817 = vst [vmem:[#allocation7 + $0x8] sm:$0xff] %v809
        %818 = vst [vmem:[#allocation7 + $0x10] sm:$0xff] %v810
        %819 = vst [vmem:[#allocation7 + $0x18] sm:$0xff] %v811
        %820 = vst [vmem:[#allocation7 + $0x20] sm:$0xff] %v812
        %821 = vst [vmem:[#allocation7 + $0x28] sm:$0xff] %v813
        %822 = vst [vmem:[#allocation7 + $0x30] sm:$0xff] %v814
        %823 = vst [vmem:[#allocation7 + $0x38] sm:$0xff] %v815
        %v824 = vld [vmem:[#allocation4 + $0x1] sm:$0xff]
        %v825 = vld [vmem:[#allocation4 + $0x11] sm:$0xff]
        %v826 = vld [vmem:[#allocation4 + $0x21] sm:$0xff]
        %v827 = vld [vmem:[#allocation4 + $0x31] sm:$0xff]
        %v828 = vld [vmem:[#allocation4 + $0x41] sm:$0xff]
        %v829 = vld [vmem:[#allocation4 + $0x51] sm:$0xff]
        %v830 = vld [vmem:[#allocation4 + $0x61] sm:$0xff]
        %v831 = vld [vmem:[#allocation4 + $0x71] sm:$0xff]
        %v832 = vpack.c.bf16 %v825, %v824
        %v833 = vpack.c.bf16 %v827, %v826
        %v834 = vpack.c.bf16 %v829, %v828
        %v835 = vpack.c.bf16 %v831, %v830
        %v836 = vld [vmem:[#allocation7] sm:$0xff]
        %v837 = vld [vmem:[#allocation7 + $0x8] sm:$0xff]
        %v838 = vld [vmem:[#allocation7 + $0x10] sm:$0xff]
        %v839 = vld [vmem:[#allocation7 + $0x18] sm:$0xff]
        %v840 = vld [vmem:[#allocation7 + $0x20] sm:$0xff]
        %v841 = vld [vmem:[#allocation7 + $0x28] sm:$0xff]
        %v842 = vld [vmem:[#allocation7 + $0x30] sm:$0xff]
        %v843 = vld [vmem:[#allocation7 + $0x38] sm:$0xff]
        %s844 = scalar_lea.vmem %s6, 2
        %v845 = vld [vmem:[%s844] sm:$0x3]
        %v847 = vsel %vm448, %v832, 0
        %v850 = vsel %vm448, %v833, 0
        %v853 = vsel %vm448, %v834, 0
        %v856 = vsel %vm448, %v835, 0
        %v859 = vsel %vm739, %v845, 0
        %861 = vmatprep.subr.bf16.mxu0 0
        %862 = vmatpush1.bf16.msra.mxu0 %v859
        %863 = vmatprep.subr.bf16.mxu0 0
        %864 = vmatpush1.bf16.msra.mxu0 0
        %865 = vmatprep.subr.bf16.mxu0 0
        %866 = vmatpush1.bf16.msra.mxu0 0
        %867 = vmatprep.subr.bf16.mxu0 0
        %868 = vmatpush1.bf16.msra.mxu0 0
        %869 = vmatprep.subr.bf16.mxu0 0
        %870 = vmatpush1.bf16.msra.mxu0 0
        %871 = vmatprep.subr.bf16.mxu0 0
        %872 = vmatpush1.bf16.msra.mxu0 0
        %873 = vmatprep.subr.bf16.mxu0 0
        %874 = vmatpush1.bf16.msra.mxu0 0
        %875 = vmatprep.subr.bf16.mxu0 0
        %876 = vmatpush1.bf16.msra.mxu0 0
        %877 = vmatprep.subr.bf16.mxu0 0
        %878 = vmatpush1.bf16.msra.mxu0 0
        %879 = vmatprep.subr.bf16.mxu0 0
        %880 = vmatpush1.bf16.msra.mxu0 0
        %881 = vmatprep.subr.bf16.mxu0 0
        %882 = vmatpush1.bf16.msra.mxu0 0
        %883 = vmatprep.subr.bf16.mxu0 0
        %884 = vmatpush1.bf16.msra.mxu0 0
        %885 = vmatprep.subr.bf16.mxu0 0
        %886 = vmatpush1.bf16.msra.mxu0 0
        %887 = vmatprep.subr.bf16.mxu0 0
        %888 = vmatpush1.bf16.msra.mxu0 0
        %889 = vmatprep.subr.bf16.mxu0 0
        %890 = vmatpush1.bf16.msra.mxu0 0
        %891 = vmatprep.subr.bf16.mxu0 0
        %892 = vmatpush1.bf16.msra.mxu0 0
        %893 = vmatprep.mubr.bf16.mxu0 0
        %894 = vmatmul.mubr.bf16.gmra.mrb[0].mxu0 %v847
        %v895 = vpop.f32.mrb[0].mxu0
        %v896 = vadd.f32 0.0, %v895
        %v897 = vpop.f32.mrb[0].mxu0
        %v898 = vpop.f32.mrb[0].mxu0
        %v899 = vadd.f32 0.0, %v898
        %v900 = vpop.f32.mrb[0].mxu0
        %901 = vmatprep.mubr.bf16.mxu0 0
        %902 = vmatmul.mubr.bf16.gmra.mrb[0].mxu0 %v850
        %v903 = vpop.f32.mrb[0].mxu0
        %v904 = vadd.f32 0.0, %v903
        %v905 = vpop.f32.mrb[0].mxu0
        %v906 = vpop.f32.mrb[0].mxu0
        %v907 = vadd.f32 0.0, %v906
        %v908 = vpop.f32.mrb[0].mxu0
        %909 = vmatprep.mubr.bf16.mxu0 0
        %910 = vmatmul.mubr.bf16.gmra.mrb[0].mxu0 %v853
        %v911 = vpop.f32.mrb[0].mxu0
        %v912 = vadd.f32 0.0, %v911
        %v913 = vpop.f32.mrb[0].mxu0
        %v914 = vpop.f32.mrb[0].mxu0
        %v915 = vadd.f32 0.0, %v914
        %v916 = vpop.f32.mrb[0].mxu0
        %917 = vmatprep.mubr.bf16.mxu0 0
        %918 = vmatmul.mubr.bf16.gmra.mrb[0].mxu0 %v856
        %v919 = vpop.f32.mrb[0].mxu0
        %v920 = vadd.f32 0.0, %v919
        %v921 = vpop.f32.mrb[0].mxu0
        %v922 = vpop.f32.mrb[0].mxu0
        %v923 = vadd.f32 0.0, %v922
        %v924 = vpop.f32.mrb[0].mxu0
        %925 = vdwg.mxu0
        %v926 = vadd.f32 %v836, %v896
        %v927 = vadd.f32 %v837, %v899
        %v928 = vadd.f32 %v838, %v904
        %v929 = vadd.f32 %v839, %v907
        %v930 = vadd.f32 %v840, %v912
        %v931 = vadd.f32 %v841, %v915
        %v932 = vadd.f32 %v842, %v920
        %v933 = vadd.f32 %v843, %v923
        %934 = vst [vmem:[#allocation7] sm:$0xff] %v926
        %935 = vst [vmem:[#allocation7 + $0x8] sm:$0xff] %v927
        %936 = vst [vmem:[#allocation7 + $0x10] sm:$0xff] %v928
        %937 = vst [vmem:[#allocation7 + $0x18] sm:$0xff] %v929
        %938 = vst [vmem:[#allocation7 + $0x20] sm:$0xff] %v930
        %939 = vst [vmem:[#allocation7 + $0x28] sm:$0xff] %v931
        %940 = vst [vmem:[#allocation7 + $0x30] sm:$0xff] %v932
        %941 = vst [vmem:[#allocation7 + $0x38] sm:$0xff] %v933
        %v942 = vld [vmem:[#allocation5 + $0x1] sm:$0xff]
        %v943 = vld [vmem:[#allocation5 + $0x11] sm:$0xff]
        %v944 = vld [vmem:[#allocation5 + $0x21] sm:$0xff]
        %v945 = vld [vmem:[#allocation5 + $0x31] sm:$0xff]
        %v946 = vld [vmem:[#allocation5 + $0x41] sm:$0xff]
        %v947 = vld [vmem:[#allocation5 + $0x51] sm:$0xff]
        %v948 = vld [vmem:[#allocation5 + $0x61] sm:$0xff]
        %v949 = vld [vmem:[#allocation5 + $0x71] sm:$0xff]
        %v950 = vpack.c.bf16 %v943, %v942
        %v951 = vpack.c.bf16 %v945, %v944
        %v952 = vpack.c.bf16 %v947, %v946
        %v953 = vpack.c.bf16 %v949, %v948
        %v954 = vld [vmem:[#allocation7] sm:$0xff]
        %v955 = vld [vmem:[#allocation7 + $0x8] sm:$0xff]
        %v956 = vld [vmem:[#allocation7 + $0x10] sm:$0xff]
        %v957 = vld [vmem:[#allocation7 + $0x18] sm:$0xff]
        %v958 = vld [vmem:[#allocation7 + $0x20] sm:$0xff]
        %v959 = vld [vmem:[#allocation7 + $0x28] sm:$0xff]
        %v960 = vld [vmem:[#allocation7 + $0x30] sm:$0xff]
        %v961 = vld [vmem:[#allocation7 + $0x38] sm:$0xff]
        %s962 = scalar_lea.vmem %s6, 4
        %v963 = vld [vmem:[%s962] sm:$0x3]
        %v965 = vsel %vm448, %v950, 0
        %v968 = vsel %vm448, %v951, 0
        %v971 = vsel %vm448, %v952, 0
        %v974 = vsel %vm448, %v953, 0
        %v977 = vsel %vm739, %v963, 0
        %979 = vmatprep.subr.bf16.mxu0 0
        %980 = vmatpush1.bf16.msra.mxu0 %v977
        %981 = vmatprep.subr.bf16.mxu0 0
        %982 = vmatpush1.bf16.msra.mxu0 0
        %983 = vmatprep.subr.bf16.mxu0 0
        %984 = vmatpush1.bf16.msra.mxu0 0
        %985 = vmatprep.subr.bf16.mxu0 0
        %986 = vmatpush1.bf16.msra.mxu0 0
        %987 = vmatprep.subr.bf16.mxu0 0
        %988 = vmatpush1.bf16.msra.mxu0 0
        %989 = vmatprep.subr.bf16.mxu0 0
        %990 = vmatpush1.bf16.msra.mxu0 0
        %991 = vmatprep.subr.bf16.mxu0 0
        %992 = vmatpush1.bf16.msra.mxu0 0
        %993 = vmatprep.subr.bf16.mxu0 0
        %994 = vmatpush1.bf16.msra.mxu0 0
        %995 = vmatprep.subr.bf16.mxu0 0
        %996 = vmatpush1.bf16.msra.mxu0 0
        %997 = vmatprep.subr.bf16.mxu0 0
        %998 = vmatpush1.bf16.msra.mxu0 0
        %999 = vmatprep.subr.bf16.mxu0 0
        %1000 = vmatpush1.bf16.msra.mxu0 0
        %1001 = vmatprep.subr.bf16.mxu0 0
        %1002 = vmatpush1.bf16.msra.mxu0 0
        %1003 = vmatprep.subr.bf16.mxu0 0
        %1004 = vmatpush1.bf16.msra.mxu0 0
        %1005 = vmatprep.subr.bf16.mxu0 0
        %1006 = vmatpush1.bf16.msra.mxu0 0
        %1007 = vmatprep.subr.bf16.mxu0 0
        %1008 = vmatpush1.bf16.msra.mxu0 0
        %1009 = vmatprep.subr.bf16.mxu0 0
        %1010 = vmatpush1.bf16.msra.mxu0 0
        %1011 = vmatprep.mubr.bf16.mxu0 0
        %1012 = vmatmul.mubr.bf16.gmra.mrb[0].mxu0 %v965
        %v1013 = vpop.f32.mrb[0].mxu0
        %v1014 = vadd.f32 0.0, %v1013
        %v1015 = vpop.f32.mrb[0].mxu0
        %v1016 = vpop.f32.mrb[0].mxu0
        %v1017 = vadd.f32 0.0, %v1016
        %v1018 = vpop.f32.mrb[0].mxu0
        %1019 = vmatprep.mubr.bf16.mxu0 0
        %1020 = vmatmul.mubr.bf16.gmra.mrb[0].mxu0 %v968
        %v1021 = vpop.f32.mrb[0].mxu0
        %v1022 = vadd.f32 0.0, %v1021
        %v1023 = vpop.f32.mrb[0].mxu0
        %v1024 = vpop.f32.mrb[0].mxu0
        %v1025 = vadd.f32 0.0, %v1024
        %v1026 = vpop.f32.mrb[0].mxu0
        %1027 = vmatprep.mubr.bf16.mxu0 0
        %1028 = vmatmul.mubr.bf16.gmra.mrb[0].mxu0 %v971
        %v1029 = vpop.f32.mrb[0].mxu0
        %v1030 = vadd.f32 0.0, %v1029
        %v1031 = vpop.f32.mrb[0].mxu0
        %v1032 = vpop.f32.mrb[0].mxu0
        %v1033 = vadd.f32 0.0, %v1032
        %v1034 = vpop.f32.mrb[0].mxu0
        %1035 = vmatprep.mubr.bf16.mxu0 0
        %1036 = vmatmul.mubr.bf16.gmra.mrb[0].mxu0 %v974
        %v1037 = vpop.f32.mrb[0].mxu0
        %v1038 = vadd.f32 0.0, %v1037
        %v1039 = vpop.f32.mrb[0].mxu0
        %v1040 = vpop.f32.mrb[0].mxu0
        %v1041 = vadd.f32 0.0, %v1040
        %v1042 = vpop.f32.mrb[0].mxu0
        %1043 = vdwg.mxu0
        %v1044 = vadd.f32 %v954, %v1014
        %v1045 = vadd.f32 %v955, %v1017
        %v1046 = vadd.f32 %v956, %v1022
        %v1047 = vadd.f32 %v957, %v1025
        %v1048 = vadd.f32 %v958, %v1030
        %v1049 = vadd.f32 %v959, %v1033
        %v1050 = vadd.f32 %v960, %v1038
        %v1051 = vadd.f32 %v961, %v1041
        %1052 = vst [vmem:[#allocation7] sm:$0xff] %v1044
        %1053 = vst [vmem:[#allocation7 + $0x8] sm:$0xff] %v1045
        %1054 = vst [vmem:[#allocation7 + $0x10] sm:$0xff] %v1046
        %1055 = vst [vmem:[#allocation7 + $0x18] sm:$0xff] %v1047
        %1056 = vst [vmem:[#allocation7 + $0x20] sm:$0xff] %v1048
        %1057 = vst [vmem:[#allocation7 + $0x28] sm:$0xff] %v1049
        %1058 = vst [vmem:[#allocation7 + $0x30] sm:$0xff] %v1050
        %1059 = vst [vmem:[#allocation7 + $0x38] sm:$0xff] %v1051
        %v1060 = vld [vmem:[%s571] sm:$0xff]
        %v1061 = vld [vmem:[%s571 + $0x10] sm:$0xff]
        %v1062 = vld [vmem:[%s571 + $0x20] sm:$0xff]
        %v1063 = vld [vmem:[%s571 + $0x30] sm:$0xff]
        %v1064 = vld [vmem:[%s571 + $0x40] sm:$0xff]
        %v1065 = vld [vmem:[%s571 + $0x50] sm:$0xff]
        %v1066 = vld [vmem:[%s571 + $0x60] sm:$0xff]
        %v1067 = vld [vmem:[%s571 + $0x70] sm:$0xff]
        %v1068 = vpack.c.bf16 %v1061, %v1060
        %v1069 = vpack.c.bf16 %v1063, %v1062
        %v1070 = vpack.c.bf16 %v1065, %v1064
        %v1071 = vpack.c.bf16 %v1067, %v1066
        %v1072 = vld [vmem:[#allocation7] sm:$0xff]
        %v1073 = vld [vmem:[#allocation7 + $0x8] sm:$0xff]
        %v1074 = vld [vmem:[#allocation7 + $0x10] sm:$0xff]
        %v1075 = vld [vmem:[#allocation7 + $0x18] sm:$0xff]
        %v1076 = vld [vmem:[#allocation7 + $0x20] sm:$0xff]
        %v1077 = vld [vmem:[#allocation7 + $0x28] sm:$0xff]
        %v1078 = vld [vmem:[#allocation7 + $0x30] sm:$0xff]
        %v1079 = vld [vmem:[#allocation7 + $0x38] sm:$0xff]
        %s1080 = scalar_lea.vmem %s6, 6
        %v1081 = vld [vmem:[%s1080] sm:$0x3]
        %v1083 = vsel %vm448, %v1068, 0
        %v1086 = vsel %vm448, %v1069, 0
        %v1089 = vsel %vm448, %v1070, 0
        %v1092 = vsel %vm448, %v1071, 0
        %v1095 = vsel %vm739, %v1081, 0
        %1097 = vmatprep.subr.bf16.mxu0 0
        %1098 = vmatpush1.bf16.msra.mxu0 %v1095
        %1099 = vmatprep.subr.bf16.mxu0 0
        %1100 = vmatpush1.bf16.msra.mxu0 0
        %1101 = vmatprep.subr.bf16.mxu0 0
        %1102 = vmatpush1.bf16.msra.mxu0 0
        %1103 = vmatprep.subr.bf16.mxu0 0
        %1104 = vmatpush1.bf16.msra.mxu0 0
        %1105 = vmatprep.subr.bf16.mxu0 0
        %1106 = vmatpush1.bf16.msra.mxu0 0
        %1107 = vmatprep.subr.bf16.mxu0 0
        %1108 = vmatpush1.bf16.msra.mxu0 0
        %1109 = vmatprep.subr.bf16.mxu0 0
        %1110 = vmatpush1.bf16.msra.mxu0 0
        %1111 = vmatprep.subr.bf16.mxu0 0
        %1112 = vmatpush1.bf16.msra.mxu0 0
        %1113 = vmatprep.subr.bf16.mxu0 0
        %1114 = vmatpush1.bf16.msra.mxu0 0
        %1115 = vmatprep.subr.bf16.mxu0 0
        %1116 = vmatpush1.bf16.msra.mxu0 0
        %1117 = vmatprep.subr.bf16.mxu0 0
        %1118 = vmatpush1.bf16.msra.mxu0 0
        %1119 = vmatprep.subr.bf16.mxu0 0
        %1120 = vmatpush1.bf16.msra.mxu0 0
        %1121 = vmatprep.subr.bf16.mxu0 0
        %1122 = vmatpush1.bf16.msra.mxu0 0
        %1123 = vmatprep.subr.bf16.mxu0 0
        %1124 = vmatpush1.bf16.msra.mxu0 0
        %1125 = vmatprep.subr.bf16.mxu0 0
        %1126 = vmatpush1.bf16.msra.mxu0 0
        %1127 = vmatprep.subr.bf16.mxu0 0
        %1128 = vmatpush1.bf16.msra.mxu0 0
        %1129 = vmatprep.mubr.bf16.mxu0 0
        %1130 = vmatmul.mubr.bf16.gmra.mrb[0].mxu0 %v1083
        %v1131 = vpop.f32.mrb[0].mxu0
        %v1132 = vadd.f32 0.0, %v1131
        %v1133 = vpop.f32.mrb[0].mxu0
        %v1134 = vpop.f32.mrb[0].mxu0
        %v1135 = vadd.f32 0.0, %v1134
        %v1136 = vpop.f32.mrb[0].mxu0
        %1137 = vmatprep.mubr.bf16.mxu0 0
        %1138 = vmatmul.mubr.bf16.gmra.mrb[0].mxu0 %v1086
        %v1139 = vpop.f32.mrb[0].mxu0
        %v1140 = vadd.f32 0.0, %v1139
        %v1141 = vpop.f32.mrb[0].mxu0
        %v1142 = vpop.f32.mrb[0].mxu0
        %v1143 = vadd.f32 0.0, %v1142
        %v1144 = vpop.f32.mrb[0].mxu0
        %1145 = vmatprep.mubr.bf16.mxu0 0
        %1146 = vmatmul.mubr.bf16.gmra.mrb[0].mxu0 %v1089
        %v1147 = vpop.f32.mrb[0].mxu0
        %v1148 = vadd.f32 0.0, %v1147
        %v1149 = vpop.f32.mrb[0].mxu0
        %v1150 = vpop.f32.mrb[0].mxu0
        %v1151 = vadd.f32 0.0, %v1150
        %v1152 = vpop.f32.mrb[0].mxu0
        %1153 = vmatprep.mubr.bf16.mxu0 0
        %1154 = vmatmul.mubr.bf16.gmra.mrb[0].mxu0 %v1092
        %v1155 = vpop.f32.mrb[0].mxu0
        %v1156 = vadd.f32 0.0, %v1155
        %v1157 = vpop.f32.mrb[0].mxu0
        %v1158 = vpop.f32.mrb[0].mxu0
        %v1159 = vadd.f32 0.0, %v1158
        %v1160 = vpop.f32.mrb[0].mxu0
        %1161 = vdwg.mxu0
        %v1162 = vadd.f32 %v1072, %v1132
        %v1163 = vadd.f32 %v1073, %v1135
        %v1164 = vadd.f32 %v1074, %v1140
        %v1165 = vadd.f32 %v1075, %v1143
        %v1166 = vadd.f32 %v1076, %v1148
        %v1167 = vadd.f32 %v1077, %v1151
        %v1168 = vadd.f32 %v1078, %v1156
        %v1169 = vadd.f32 %v1079, %v1159
        %1170 = vst [vmem:[#allocation7] sm:$0xff] %v1162
        %1171 = vst [vmem:[#allocation7 + $0x8] sm:$0xff] %v1163
        %1172 = vst [vmem:[#allocation7 + $0x10] sm:$0xff] %v1164
        %1173 = vst [vmem:[#allocation7 + $0x18] sm:$0xff] %v1165
        %1174 = vst [vmem:[#allocation7 + $0x20] sm:$0xff] %v1166
        %1175 = vst [vmem:[#allocation7 + $0x28] sm:$0xff] %v1167
        %1176 = vst [vmem:[#allocation7 + $0x30] sm:$0xff] %v1168
        %1177 = vst [vmem:[#allocation7 + $0x38] sm:$0xff] %v1169
        %v1178 = vld [vmem:[%s512 + $0x1] sm:$0xff]
        %v1179 = vld [vmem:[%s512 + $0x11] sm:$0xff]
        %v1180 = vld [vmem:[%s512 + $0x21] sm:$0xff]
        %v1181 = vld [vmem:[%s512 + $0x31] sm:$0xff]
        %v1182 = vld [vmem:[%s512 + $0x41] sm:$0xff]
        %v1183 = vld [vmem:[%s512 + $0x51] sm:$0xff]
        %v1184 = vld [vmem:[%s512 + $0x61] sm:$0xff]
        %v1185 = vld [vmem:[%s512 + $0x71] sm:$0xff]
        %v1186 = vpack.c.bf16 %v1179, %v1178
        %v1187 = vpack.c.bf16 %v1181, %v1180
        %v1188 = vpack.c.bf16 %v1183, %v1182
        %v1189 = vpack.c.bf16 %v1185, %v1184
        %v1190 = vld [vmem:[#allocation7] sm:$0xff]
        %v1191 = vld [vmem:[#allocation7 + $0x8] sm:$0xff]
        %v1192 = vld [vmem:[#allocation7 + $0x10] sm:$0xff]
        %v1193 = vld [vmem:[#allocation7 + $0x18] sm:$0xff]
        %v1194 = vld [vmem:[#allocation7 + $0x20] sm:$0xff]
        %v1195 = vld [vmem:[#allocation7 + $0x28] sm:$0xff]
        %v1196 = vld [vmem:[#allocation7 + $0x30] sm:$0xff]
        %v1197 = vld [vmem:[#allocation7 + $0x38] sm:$0xff]
        %s1198 = scalar_lea.vmem %s6, 8
        %v1199 = vld [vmem:[%s1198] sm:$0x3]
        %v1201 = vsel %vm448, %v1186, 0
        %v1204 = vsel %vm448, %v1187, 0
        %v1207 = vsel %vm448, %v1188, 0
        %v1210 = vsel %vm448, %v1189, 0
        %v1213 = vsel %vm739, %v1199, 0
        %1215 = vmatprep.subr.bf16.mxu0 0
        %1216 = vmatpush1.bf16.msra.mxu0 %v1213
        %1217 = vmatprep.subr.bf16.mxu0 0
        %1218 = vmatpush1.bf16.msra.mxu0 0
        %1219 = vmatprep.subr.bf16.mxu0 0
        %1220 = vmatpush1.bf16.msra.mxu0 0
        %1221 = vmatprep.subr.bf16.mxu0 0
        %1222 = vmatpush1.bf16.msra.mxu0 0
        %1223 = vmatprep.subr.bf16.mxu0 0
        %1224 = vmatpush1.bf16.msra.mxu0 0
        %1225 = vmatprep.subr.bf16.mxu0 0
        %1226 = vmatpush1.bf16.msra.mxu0 0
        %1227 = vmatprep.subr.bf16.mxu0 0
        %1228 = vmatpush1.bf16.msra.mxu0 0
        %1229 = vmatprep.subr.bf16.mxu0 0
        %1230 = vmatpush1.bf16.msra.mxu0 0
        %1231 = vmatprep.subr.bf16.mxu0 0
        %1232 = vmatpush1.bf16.msra.mxu0 0
        %1233 = vmatprep.subr.bf16.mxu0 0
        %1234 = vmatpush1.bf16.msra.mxu0 0
        %1235 = vmatprep.subr.bf16.mxu0 0
        %1236 = vmatpush1.bf16.msra.mxu0 0
        %1237 = vmatprep.subr.bf16.mxu0 0
        %1238 = vmatpush1.bf16.msra.mxu0 0
        %1239 = vmatprep.subr.bf16.mxu0 0
        %1240 = vmatpush1.bf16.msra.mxu0 0
        %1241 = vmatprep.subr.bf16.mxu0 0
        %1242 = vmatpush1.bf16.msra.mxu0 0
        %1243 = vmatprep.subr.bf16.mxu0 0
        %1244 = vmatpush1.bf16.msra.mxu0 0
        %1245 = vmatprep.subr.bf16.mxu0 0
        %1246 = vmatpush1.bf16.msra.mxu0 0
        %1247 = vmatprep.mubr.bf16.mxu0 0
        %1248 = vmatmul.mubr.bf16.gmra.mrb[0].mxu0 %v1201
        %v1249 = vpop.f32.mrb[0].mxu0
        %v1250 = vadd.f32 0.0, %v1249
        %v1251 = vpop.f32.mrb[0].mxu0
        %v1252 = vpop.f32.mrb[0].mxu0
        %v1253 = vadd.f32 0.0, %v1252
        %v1254 = vpop.f32.mrb[0].mxu0
        %1255 = vmatprep.mubr.bf16.mxu0 0
        %1256 = vmatmul.mubr.bf16.gmra.mrb[0].mxu0 %v1204
        %v1257 = vpop.f32.mrb[0].mxu0
        %v1258 = vadd.f32 0.0, %v1257
        %v1259 = vpop.f32.mrb[0].mxu0
        %v1260 = vpop.f32.mrb[0].mxu0
        %v1261 = vadd.f32 0.0, %v1260
        %v1262 = vpop.f32.mrb[0].mxu0
        %1263 = vmatprep.mubr.bf16.mxu0 0
        %1264 = vmatmul.mubr.bf16.gmra.mrb[0].mxu0 %v1207
        %v1265 = vpop.f32.mrb[0].mxu0
        %v1266 = vadd.f32 0.0, %v1265
        %v1267 = vpop.f32.mrb[0].mxu0
        %v1268 = vpop.f32.mrb[0].mxu0
        %v1269 = vadd.f32 0.0, %v1268
        %v1270 = vpop.f32.mrb[0].mxu0
        %1271 = vmatprep.mubr.bf16.mxu0 0
        %1272 = vmatmul.mubr.bf16.gmra.mrb[0].mxu0 %v1210
        %v1273 = vpop.f32.mrb[0].mxu0
        %v1274 = vadd.f32 0.0, %v1273
        %v1275 = vpop.f32.mrb[0].mxu0
        %v1276 = vpop.f32.mrb[0].mxu0
        %v1277 = vadd.f32 0.0, %v1276
        %v1278 = vpop.f32.mrb[0].mxu0
        %1279 = vdwg.mxu0
        %v1280 = vadd.f32 %v1190, %v1250
        %v1281 = vadd.f32 %v1191, %v1253
        %v1282 = vadd.f32 %v1192, %v1258
        %v1283 = vadd.f32 %v1193, %v1261
        %v1284 = vadd.f32 %v1194, %v1266
        %v1285 = vadd.f32 %v1195, %v1269
        %v1286 = vadd.f32 %v1196, %v1274
        %v1287 = vadd.f32 %v1197, %v1277
        %1288 = vst [vmem:[#allocation7] sm:$0xff] %v1280
        %1289 = vst [vmem:[#allocation7 + $0x8] sm:$0xff] %v1281
        %1290 = vst [vmem:[#allocation7 + $0x10] sm:$0xff] %v1282
        %1291 = vst [vmem:[#allocation7 + $0x18] sm:$0xff] %v1283
        %1292 = vst [vmem:[#allocation7 + $0x20] sm:$0xff] %v1284
        %1293 = vst [vmem:[#allocation7 + $0x28] sm:$0xff] %v1285
        %1294 = vst [vmem:[#allocation7 + $0x30] sm:$0xff] %v1286
        %1295 = vst [vmem:[#allocation7 + $0x38] sm:$0xff] %v1287
        %v1296 = vld [vmem:[%s571 + $0x1] sm:$0xff]
        %v1297 = vld [vmem:[%s571 + $0x11] sm:$0xff]
        %v1298 = vld [vmem:[%s571 + $0x21] sm:$0xff]
        %v1299 = vld [vmem:[%s571 + $0x31] sm:$0xff]
        %v1300 = vld [vmem:[%s571 + $0x41] sm:$0xff]
        %v1301 = vld [vmem:[%s571 + $0x51] sm:$0xff]
        %v1302 = vld [vmem:[%s571 + $0x61] sm:$0xff]
        %v1303 = vld [vmem:[%s571 + $0x71] sm:$0xff]
        %v1304 = vpack.c.bf16 %v1297, %v1296
        %v1305 = vpack.c.bf16 %v1299, %v1298
        %v1306 = vpack.c.bf16 %v1301, %v1300
        %v1307 = vpack.c.bf16 %v1303, %v1302
        %v1308 = vld [vmem:[#allocation7] sm:$0xff]
        %v1309 = vld [vmem:[#allocation7 + $0x8] sm:$0xff]
        %v1310 = vld [vmem:[#allocation7 + $0x10] sm:$0xff]
        %v1311 = vld [vmem:[#allocation7 + $0x18] sm:$0xff]
        %v1312 = vld [vmem:[#allocation7 + $0x20] sm:$0xff]
        %v1313 = vld [vmem:[#allocation7 + $0x28] sm:$0xff]
        %v1314 = vld [vmem:[#allocation7 + $0x30] sm:$0xff]
        %v1315 = vld [vmem:[#allocation7 + $0x38] sm:$0xff]
        %s1316 = scalar_lea.vmem %s6, 10
        %v1317 = vld [vmem:[%s1316] sm:$0x3]
        %v1319 = vsel %vm448, %v1304, 0
        %v1322 = vsel %vm448, %v1305, 0
        %v1325 = vsel %vm448, %v1306, 0
        %v1328 = vsel %vm448, %v1307, 0
        %v1331 = vsel %vm739, %v1317, 0
        %1333 = vmatprep.subr.bf16.mxu0 0
        %1334 = vmatpush1.bf16.msra.mxu0 %v1331
        %1335 = vmatprep.subr.bf16.mxu0 0
        %1336 = vmatpush1.bf16.msra.mxu0 0
        %1337 = vmatprep.subr.bf16.mxu0 0
        %1338 = vmatpush1.bf16.msra.mxu0 0
        %1339 = vmatprep.subr.bf16.mxu0 0
        %1340 = vmatpush1.bf16.msra.mxu0 0
        %1341 = vmatprep.subr.bf16.mxu0 0
        %1342 = vmatpush1.bf16.msra.mxu0 0
        %1343 = vmatprep.subr.bf16.mxu0 0
        %1344 = vmatpush1.bf16.msra.mxu0 0
        %1345 = vmatprep.subr.bf16.mxu0 0
        %1346 = vmatpush1.bf16.msra.mxu0 0
        %1347 = vmatprep.subr.bf16.mxu0 0
        %1348 = vmatpush1.bf16.msra.mxu0 0
        %1349 = vmatprep.subr.bf16.mxu0 0
        %1350 = vmatpush1.bf16.msra.mxu0 0
        %1351 = vmatprep.subr.bf16.mxu0 0
        %1352 = vmatpush1.bf16.msra.mxu0 0
        %1353 = vmatprep.subr.bf16.mxu0 0
        %1354 = vmatpush1.bf16.msra.mxu0 0
        %1355 = vmatprep.subr.bf16.mxu0 0
        %1356 = vmatpush1.bf16.msra.mxu0 0
        %1357 = vmatprep.subr.bf16.mxu0 0
        %1358 = vmatpush1.bf16.msra.mxu0 0
        %1359 = vmatprep.subr.bf16.mxu0 0
        %1360 = vmatpush1.bf16.msra.mxu0 0
        %1361 = vmatprep.subr.bf16.mxu0 0
        %1362 = vmatpush1.bf16.msra.mxu0 0
        %1363 = vmatprep.subr.bf16.mxu0 0
        %1364 = vmatpush1.bf16.msra.mxu0 0
        %1365 = vmatprep.mubr.bf16.mxu0 0
        %1366 = vmatmul.mubr.bf16.gmra.mrb[0].mxu0 %v1319
        %v1367 = vpop.f32.mrb[0].mxu0
        %v1368 = vadd.f32 0.0, %v1367
        %v1369 = vpop.f32.mrb[0].mxu0
        %v1370 = vpop.f32.mrb[0].mxu0
        %v1371 = vadd.f32 0.0, %v1370
        %v1372 = vpop.f32.mrb[0].mxu0
        %1373 = vmatprep.mubr.bf16.mxu0 0
        %1374 = vmatmul.mubr.bf16.gmra.mrb[0].mxu0 %v1322
        %v1375 = vpop.f32.mrb[0].mxu0
        %v1376 = vadd.f32 0.0, %v1375
        %v1377 = vpop.f32.mrb[0].mxu0
        %v1378 = vpop.f32.mrb[0].mxu0
        %v1379 = vadd.f32 0.0, %v1378
        %v1380 = vpop.f32.mrb[0].mxu0
        %1381 = vmatprep.mubr.bf16.mxu0 0
        %1382 = vmatmul.mubr.bf16.gmra.mrb[0].mxu0 %v1325
        %v1383 = vpop.f32.mrb[0].mxu0
        %v1384 = vadd.f32 0.0, %v1383
        %v1385 = vpop.f32.mrb[0].mxu0
        %v1386 = vpop.f32.mrb[0].mxu0
        %v1387 = vadd.f32 0.0, %v1386
        %v1388 = vpop.f32.mrb[0].mxu0
        %1389 = vmatprep.mubr.bf16.mxu0 0
        %1390 = vmatmul.mubr.bf16.gmra.mrb[0].mxu0 %v1328
        %v1391 = vpop.f32.mrb[0].mxu0
        %v1392 = vadd.f32 0.0, %v1391
        %v1393 = vpop.f32.mrb[0].mxu0
        %v1394 = vpop.f32.mrb[0].mxu0
        %v1395 = vadd.f32 0.0, %v1394
        %v1396 = vpop.f32.mrb[0].mxu0
        %1397 = vdwg.mxu0
        %v1398 = vadd.f32 %v1308, %v1368
        %v1399 = vadd.f32 %v1309, %v1371
        %v1400 = vadd.f32 %v1310, %v1376
        %v1401 = vadd.f32 %v1311, %v1379
        %v1402 = vadd.f32 %v1312, %v1384
        %v1403 = vadd.f32 %v1313, %v1387
        %v1404 = vadd.f32 %v1314, %v1392
        %v1405 = vadd.f32 %v1315, %v1395
        %1406 = vst [vmem:[#allocation7] sm:$0xff] %v1398
        %1407 = vst [vmem:[#allocation7 + $0x8] sm:$0xff] %v1399
        %1408 = vst [vmem:[#allocation7 + $0x10] sm:$0xff] %v1400
        %1409 = vst [vmem:[#allocation7 + $0x18] sm:$0xff] %v1401
        %1410 = vst [vmem:[#allocation7 + $0x20] sm:$0xff] %v1402
        %1411 = vst [vmem:[#allocation7 + $0x28] sm:$0xff] %v1403
        %1412 = vst [vmem:[#allocation7 + $0x30] sm:$0xff] %v1404
        %1413 = vst [vmem:[#allocation7 + $0x38] sm:$0xff] %v1405
        %v1414 = vld [vmem:[%s689] sm:$0xff]
        %v1415 = vld [vmem:[%s689 + $0x10] sm:$0xff]
        %v1416 = vld [vmem:[%s689 + $0x20] sm:$0xff]
        %v1417 = vld [vmem:[%s689 + $0x30] sm:$0xff]
        %v1418 = vld [vmem:[%s689 + $0x40] sm:$0xff]
        %v1419 = vld [vmem:[%s689 + $0x50] sm:$0xff]
        %v1420 = vld [vmem:[%s689 + $0x60] sm:$0xff]
        %v1421 = vld [vmem:[%s689 + $0x70] sm:$0xff]
        %v1422 = vpack.c.bf16 %v1415, %v1414
        %v1423 = vpack.c.bf16 %v1417, %v1416
        %v1424 = vpack.c.bf16 %v1419, %v1418
        %v1425 = vpack.c.bf16 %v1421, %v1420
        %v1426 = vld [vmem:[#allocation7] sm:$0xff]
        %v1427 = vld [vmem:[#allocation7 + $0x8] sm:$0xff]
        %v1428 = vld [vmem:[#allocation7 + $0x10] sm:$0xff]
        %v1429 = vld [vmem:[#allocation7 + $0x18] sm:$0xff]
        %v1430 = vld [vmem:[#allocation7 + $0x20] sm:$0xff]
        %v1431 = vld [vmem:[#allocation7 + $0x28] sm:$0xff]
        %v1432 = vld [vmem:[#allocation7 + $0x30] sm:$0xff]
        %v1433 = vld [vmem:[#allocation7 + $0x38] sm:$0xff]
        %s1434 = scalar_lea.vmem %s6, 12
        %v1435 = vld [vmem:[%s1434] sm:$0x3]
        %v1437 = vsel %vm448, %v1422, 0
        %v1440 = vsel %vm448, %v1423, 0
        %v1443 = vsel %vm448, %v1424, 0
        %v1446 = vsel %vm448, %v1425, 0
        %v1449 = vsel %vm739, %v1435, 0
        %1451 = vmatprep.subr.bf16.mxu0 0
        %1452 = vmatpush1.bf16.msra.mxu0 %v1449
        %1453 = vmatprep.subr.bf16.mxu0 0
        %1454 = vmatpush1.bf16.msra.mxu0 0
        %1455 = vmatprep.subr.bf16.mxu0 0
        %1456 = vmatpush1.bf16.msra.mxu0 0
        %1457 = vmatprep.subr.bf16.mxu0 0
        %1458 = vmatpush1.bf16.msra.mxu0 0
        %1459 = vmatprep.subr.bf16.mxu0 0
        %1460 = vmatpush1.bf16.msra.mxu0 0
        %1461 = vmatprep.subr.bf16.mxu0 0
        %1462 = vmatpush1.bf16.msra.mxu0 0
        %1463 = vmatprep.subr.bf16.mxu0 0
        %1464 = vmatpush1.bf16.msra.mxu0 0
        %1465 = vmatprep.subr.bf16.mxu0 0
        %1466 = vmatpush1.bf16.msra.mxu0 0
        %1467 = vmatprep.subr.bf16.mxu0 0
        %1468 = vmatpush1.bf16.msra.mxu0 0
        %1469 = vmatprep.subr.bf16.mxu0 0
        %1470 = vmatpush1.bf16.msra.mxu0 0
        %1471 = vmatprep.subr.bf16.mxu0 0
        %1472 = vmatpush1.bf16.msra.mxu0 0
        %1473 = vmatprep.subr.bf16.mxu0 0
        %1474 = vmatpush1.bf16.msra.mxu0 0
        %1475 = vmatprep.subr.bf16.mxu0 0
        %1476 = vmatpush1.bf16.msra.mxu0 0
        %1477 = vmatprep.subr.bf16.mxu0 0
        %1478 = vmatpush1.bf16.msra.mxu0 0
        %1479 = vmatprep.subr.bf16.mxu0 0
        %1480 = vmatpush1.bf16.msra.mxu0 0
        %1481 = vmatprep.subr.bf16.mxu0 0
        %1482 = vmatpush1.bf16.msra.mxu0 0
        %1483 = vmatprep.mubr.bf16.mxu0 0
        %1484 = vmatmul.mubr.bf16.gmra.mrb[0].mxu0 %v1437
        %v1485 = vpop.f32.mrb[0].mxu0
        %v1486 = vadd.f32 0.0, %v1485
        %v1487 = vpop.f32.mrb[0].mxu0
        %v1488 = vpop.f32.mrb[0].mxu0
        %v1489 = vadd.f32 0.0, %v1488
        %v1490 = vpop.f32.mrb[0].mxu0
        %1491 = vmatprep.mubr.bf16.mxu0 0
        %1492 = vmatmul.mubr.bf16.gmra.mrb[0].mxu0 %v1440
        %v1493 = vpop.f32.mrb[0].mxu0
        %v1494 = vadd.f32 0.0, %v1493
        %v1495 = vpop.f32.mrb[0].mxu0
        %v1496 = vpop.f32.mrb[0].mxu0
        %v1497 = vadd.f32 0.0, %v1496
        %v1498 = vpop.f32.mrb[0].mxu0
        %1499 = vmatprep.mubr.bf16.mxu0 0
        %1500 = vmatmul.mubr.bf16.gmra.mrb[0].mxu0 %v1443
        %v1501 = vpop.f32.mrb[0].mxu0
        %v1502 = vadd.f32 0.0, %v1501
        %v1503 = vpop.f32.mrb[0].mxu0
        %v1504 = vpop.f32.mrb[0].mxu0
        %v1505 = vadd.f32 0.0, %v1504
        %v1506 = vpop.f32.mrb[0].mxu0
        %1507 = vmatprep.mubr.bf16.mxu0 0
        %1508 = vmatmul.mubr.bf16.gmra.mrb[0].mxu0 %v1446
        %v1509 = vpop.f32.mrb[0].mxu0
        %v1510 = vadd.f32 0.0, %v1509
        %v1511 = vpop.f32.mrb[0].mxu0
        %v1512 = vpop.f32.mrb[0].mxu0
        %v1513 = vadd.f32 0.0, %v1512
        %v1514 = vpop.f32.mrb[0].mxu0
        %1515 = vdwg.mxu0
        %v1516 = vadd.f32 %v1426, %v1486
        %v1517 = vadd.f32 %v1427, %v1489
        %v1518 = vadd.f32 %v1428, %v1494
        %v1519 = vadd.f32 %v1429, %v1497
        %v1520 = vadd.f32 %v1430, %v1502
        %v1521 = vadd.f32 %v1431, %v1505
        %v1522 = vadd.f32 %v1432, %v1510
        %v1523 = vadd.f32 %v1433, %v1513
        %1524 = vst [vmem:[#allocation7] sm:$0xff] %v1516
        %1525 = vst [vmem:[#allocation7 + $0x8] sm:$0xff] %v1517
        %1526 = vst [vmem:[#allocation7 + $0x10] sm:$0xff] %v1518
        %1527 = vst [vmem:[#allocation7 + $0x18] sm:$0xff] %v1519
        %1528 = vst [vmem:[#allocation7 + $0x20] sm:$0xff] %v1520
        %1529 = vst [vmem:[#allocation7 + $0x28] sm:$0xff] %v1521
        %1530 = vst [vmem:[#allocation7 + $0x30] sm:$0xff] %v1522
        %1531 = vst [vmem:[#allocation7 + $0x38] sm:$0xff] %v1523
        %v1532 = vld [vmem:[%s630 + $0x1] sm:$0xff]
        %v1533 = vld [vmem:[%s630 + $0x11] sm:$0xff]
        %v1534 = vld [vmem:[%s630 + $0x21] sm:$0xff]
        %v1535 = vld [vmem:[%s630 + $0x31] sm:$0xff]
        %v1536 = vld [vmem:[%s630 + $0x41] sm:$0xff]
        %v1537 = vld [vmem:[%s630 + $0x51] sm:$0xff]
        %v1538 = vld [vmem:[%s630 + $0x61] sm:$0xff]
        %v1539 = vld [vmem:[%s630 + $0x71] sm:$0xff]
        %v1540 = vpack.c.bf16 %v1533, %v1532
        %v1541 = vpack.c.bf16 %v1535, %v1534
        %v1542 = vpack.c.bf16 %v1537, %v1536
        %v1543 = vpack.c.bf16 %v1539, %v1538
        %v1544 = vld [vmem:[#allocation7] sm:$0xff]
        %v1545 = vld [vmem:[#allocation7 + $0x8] sm:$0xff]
        %v1546 = vld [vmem:[#allocation7 + $0x10] sm:$0xff]
        %v1547 = vld [vmem:[#allocation7 + $0x18] sm:$0xff]
        %v1548 = vld [vmem:[#allocation7 + $0x20] sm:$0xff]
        %v1549 = vld [vmem:[#allocation7 + $0x28] sm:$0xff]
        %v1550 = vld [vmem:[#allocation7 + $0x30] sm:$0xff]
        %v1551 = vld [vmem:[#allocation7 + $0x38] sm:$0xff]
        %s1552 = scalar_lea.vmem %s6, 14
        %v1553 = vld [vmem:[%s1552] sm:$0x3]
        %v1555 = vsel %vm448, %v1540, 0
        %v1558 = vsel %vm448, %v1541, 0
        %v1561 = vsel %vm448, %v1542, 0
        %v1564 = vsel %vm448, %v1543, 0
        %v1567 = vsel %vm739, %v1553, 0
        %1569 = vmatprep.subr.bf16.mxu0 0
        %1570 = vmatpush1.bf16.msra.mxu0 %v1567
        %1571 = vmatprep.subr.bf16.mxu0 0
        %1572 = vmatpush1.bf16.msra.mxu0 0
        %1573 = vmatprep.subr.bf16.mxu0 0
        %1574 = vmatpush1.bf16.msra.mxu0 0
        %1575 = vmatprep.subr.bf16.mxu0 0
        %1576 = vmatpush1.bf16.msra.mxu0 0
        %1577 = vmatprep.subr.bf16.mxu0 0
        %1578 = vmatpush1.bf16.msra.mxu0 0
        %1579 = vmatprep.subr.bf16.mxu0 0
        %1580 = vmatpush1.bf16.msra.mxu0 0
        %1581 = vmatprep.subr.bf16.mxu0 0
        %1582 = vmatpush1.bf16.msra.mxu0 0
        %1583 = vmatprep.subr.bf16.mxu0 0
        %1584 = vmatpush1.bf16.msra.mxu0 0
        %1585 = vmatprep.subr.bf16.mxu0 0
        %1586 = vmatpush1.bf16.msra.mxu0 0
        %1587 = vmatprep.subr.bf16.mxu0 0
        %1588 = vmatpush1.bf16.msra.mxu0 0
        %1589 = vmatprep.subr.bf16.mxu0 0
        %1590 = vmatpush1.bf16.msra.mxu0 0
        %1591 = vmatprep.subr.bf16.mxu0 0
        %1592 = vmatpush1.bf16.msra.mxu0 0
        %1593 = vmatprep.subr.bf16.mxu0 0
        %1594 = vmatpush1.bf16.msra.mxu0 0
        %1595 = vmatprep.subr.bf16.mxu0 0
        %1596 = vmatpush1.bf16.msra.mxu0 0
        %1597 = vmatprep.subr.bf16.mxu0 0
        %1598 = vmatpush1.bf16.msra.mxu0 0
        %1599 = vmatprep.subr.bf16.mxu0 0
        %1600 = vmatpush1.bf16.msra.mxu0 0
        %1601 = vmatprep.mubr.bf16.mxu0 0
        %1602 = vmatmul.mubr.bf16.gmra.mrb[0].mxu0 %v1555
        %v1603 = vpop.f32.mrb[0].mxu0
        %v1604 = vadd.f32 0.0, %v1603
        %v1605 = vpop.f32.mrb[0].mxu0
        %v1606 = vpop.f32.mrb[0].mxu0
        %v1607 = vadd.f32 0.0, %v1606
        %v1608 = vpop.f32.mrb[0].mxu0
        %1609 = vmatprep.mubr.bf16.mxu0 0
        %1610 = vmatmul.mubr.bf16.gmra.mrb[0].mxu0 %v1558
        %v1611 = vpop.f32.mrb[0].mxu0
        %v1612 = vadd.f32 0.0, %v1611
        %v1613 = vpop.f32.mrb[0].mxu0
        %v1614 = vpop.f32.mrb[0].mxu0
        %v1615 = vadd.f32 0.0, %v1614
        %v1616 = vpop.f32.mrb[0].mxu0
        %1617 = vmatprep.mubr.bf16.mxu0 0
        %1618 = vmatmul.mubr.bf16.gmra.mrb[0].mxu0 %v1561
        %v1619 = vpop.f32.mrb[0].mxu0
        %v1620 = vadd.f32 0.0, %v1619
        %v1621 = vpop.f32.mrb[0].mxu0
        %v1622 = vpop.f32.mrb[0].mxu0
        %v1623 = vadd.f32 0.0, %v1622
        %v1624 = vpop.f32.mrb[0].mxu0
        %1625 = vmatprep.mubr.bf16.mxu0 0
        %1626 = vmatmul.mubr.bf16.gmra.mrb[0].mxu0 %v1564
        %v1627 = vpop.f32.mrb[0].mxu0
        %v1628 = vadd.f32 0.0, %v1627
        %v1629 = vpop.f32.mrb[0].mxu0
        %v1630 = vpop.f32.mrb[0].mxu0
        %v1631 = vadd.f32 0.0, %v1630
        %v1632 = vpop.f32.mrb[0].mxu0
        %1633 = vdwg.mxu0
        %v1634 = vadd.f32 %v1544, %v1604
        %v1635 = vadd.f32 %v1545, %v1607
        %v1636 = vadd.f32 %v1546, %v1612
        %v1637 = vadd.f32 %v1547, %v1615
        %v1638 = vadd.f32 %v1548, %v1620
        %v1639 = vadd.f32 %v1549, %v1623
        %v1640 = vadd.f32 %v1550, %v1628
        %v1641 = vadd.f32 %v1551, %v1631
        %1642 = vst [vmem:[#allocation7] sm:$0xff] %v1634
        %1643 = vst [vmem:[#allocation7 + $0x8] sm:$0xff] %v1635
        %1644 = vst [vmem:[#allocation7 + $0x10] sm:$0xff] %v1636
        %1645 = vst [vmem:[#allocation7 + $0x18] sm:$0xff] %v1637
        %1646 = vst [vmem:[#allocation7 + $0x20] sm:$0xff] %v1638
        %1647 = vst [vmem:[#allocation7 + $0x28] sm:$0xff] %v1639
        %1648 = vst [vmem:[#allocation7 + $0x30] sm:$0xff] %v1640
        %1649 = vst [vmem:[#allocation7 + $0x38] sm:$0xff] %v1641
        %v1650 = vld [vmem:[%s689 + $0x1] sm:$0xff]
        %v1651 = vld [vmem:[%s689 + $0x11] sm:$0xff]
        %v1652 = vld [vmem:[%s689 + $0x21] sm:$0xff]
        %v1653 = vld [vmem:[%s689 + $0x31] sm:$0xff]
        %v1654 = vld [vmem:[%s689 + $0x41] sm:$0xff]
        %v1655 = vld [vmem:[%s689 + $0x51] sm:$0xff]
        %v1656 = vld [vmem:[%s689 + $0x61] sm:$0xff]
        %v1657 = vld [vmem:[%s689 + $0x71] sm:$0xff]
        %v1658 = vpack.c.bf16 %v1651, %v1650
        %v1659 = vpack.c.bf16 %v1653, %v1652
        %v1660 = vpack.c.bf16 %v1655, %v1654
        %v1661 = vpack.c.bf16 %v1657, %v1656
        %v1662 = vld [vmem:[#allocation7] sm:$0xff]
        %v1663 = vld [vmem:[#allocation7 + $0x8] sm:$0xff]
        %v1664 = vld [vmem:[#allocation7 + $0x10] sm:$0xff]
        %v1665 = vld [vmem:[#allocation7 + $0x18] sm:$0xff]
        %v1666 = vld [vmem:[#allocation7 + $0x20] sm:$0xff]
        %v1667 = vld [vmem:[#allocation7 + $0x28] sm:$0xff]
        %v1668 = vld [vmem:[#allocation7 + $0x30] sm:$0xff]
        %v1669 = vld [vmem:[#allocation7 + $0x38] sm:$0xff]
        %s1670 = scalar_lea.vmem %s6, 16
        %v1671 = vld [vmem:[%s1670] sm:$0x3]
        %v1673 = vsel %vm448, %v1658, 0
        %v1676 = vsel %vm448, %v1659, 0
        %v1679 = vsel %vm448, %v1660, 0
        %v1682 = vsel %vm448, %v1661, 0
        %v1685 = vsel %vm739, %v1671, 0
        %1687 = vmatprep.subr.bf16.mxu0 0
        %1688 = vmatpush1.bf16.msra.mxu0 %v1685
        %1689 = vmatprep.subr.bf16.mxu0 0
        %1690 = vmatpush1.bf16.msra.mxu0 0
        %1691 = vmatprep.subr.bf16.mxu0 0
        %1692 = vmatpush1.bf16.msra.mxu0 0
        %1693 = vmatprep.subr.bf16.mxu0 0
        %1694 = vmatpush1.bf16.msra.mxu0 0
        %1695 = vmatprep.subr.bf16.mxu0 0
        %1696 = vmatpush1.bf16.msra.mxu0 0
        %1697 = vmatprep.subr.bf16.mxu0 0
        %1698 = vmatpush1.bf16.msra.mxu0 0
        %1699 = vmatprep.subr.bf16.mxu0 0
        %1700 = vmatpush1.bf16.msra.mxu0 0
        %1701 = vmatprep.subr.bf16.mxu0 0
        %1702 = vmatpush1.bf16.msra.mxu0 0
        %1703 = vmatprep.subr.bf16.mxu0 0
        %1704 = vmatpush1.bf16.msra.mxu0 0
        %1705 = vmatprep.subr.bf16.mxu0 0
        %1706 = vmatpush1.bf16.msra.mxu0 0
        %1707 = vmatprep.subr.bf16.mxu0 0
        %1708 = vmatpush1.bf16.msra.mxu0 0
        %1709 = vmatprep.subr.bf16.mxu0 0
        %1710 = vmatpush1.bf16.msra.mxu0 0
        %1711 = vmatprep.subr.bf16.mxu0 0
        %1712 = vmatpush1.bf16.msra.mxu0 0
        %1713 = vmatprep.subr.bf16.mxu0 0
        %1714 = vmatpush1.bf16.msra.mxu0 0
        %1715 = vmatprep.subr.bf16.mxu0 0
        %1716 = vmatpush1.bf16.msra.mxu0 0
        %1717 = vmatprep.subr.bf16.mxu0 0
        %1718 = vmatpush1.bf16.msra.mxu0 0
        %1719 = vmatprep.mubr.bf16.mxu0 0
        %1720 = vmatmul.mubr.bf16.gmra.mrb[0].mxu0 %v1673
        %v1721 = vpop.f32.mrb[0].mxu0
        %v1722 = vadd.f32 0.0, %v1721
        %v1723 = vpop.f32.mrb[0].mxu0
        %v1724 = vpop.f32.mrb[0].mxu0
        %v1725 = vadd.f32 0.0, %v1724
        %v1726 = vpop.f32.mrb[0].mxu0
        %1727 = vmatprep.mubr.bf16.mxu0 0
        %1728 = vmatmul.mubr.bf16.gmra.mrb[0].mxu0 %v1676
        %v1729 = vpop.f32.mrb[0].mxu0
        %v1730 = vadd.f32 0.0, %v1729
        %v1731 = vpop.f32.mrb[0].mxu0
        %v1732 = vpop.f32.mrb[0].mxu0
        %v1733 = vadd.f32 0.0, %v1732
        %v1734 = vpop.f32.mrb[0].mxu0
        %1735 = vmatprep.mubr.bf16.mxu0 0
        %1736 = vmatmul.mubr.bf16.gmra.mrb[0].mxu0 %v1679
        %v1737 = vpop.f32.mrb[0].mxu0
        %v1738 = vadd.f32 0.0, %v1737
        %v1739 = vpop.f32.mrb[0].mxu0
        %v1740 = vpop.f32.mrb[0].mxu0
        %v1741 = vadd.f32 0.0, %v1740
        %v1742 = vpop.f32.mrb[0].mxu0
        %1743 = vmatprep.mubr.bf16.mxu0 0
        %1744 = vmatmul.mubr.bf16.gmra.mrb[0].mxu0 %v1682
        %v1745 = vpop.f32.mrb[0].mxu0
        %v1746 = vadd.f32 0.0, %v1745
        %v1747 = vpop.f32.mrb[0].mxu0
        %v1748 = vpop.f32.mrb[0].mxu0
        %v1749 = vadd.f32 0.0, %v1748
        %v1750 = vpop.f32.mrb[0].mxu0
        %1751 = vdwg.mxu0
        %v1752 = vadd.f32 %v1662, %v1722
        %v1753 = vadd.f32 %v1663, %v1725
        %v1754 = vadd.f32 %v1664, %v1730
        %v1755 = vadd.f32 %v1665, %v1733
        %v1756 = vadd.f32 %v1666, %v1738
        %v1757 = vadd.f32 %v1667, %v1741
        %v1758 = vadd.f32 %v1668, %v1746
        %v1759 = vadd.f32 %v1669, %v1749
        %1760 = vst [vmem:[#allocation7] sm:$0xff] %v1752
        %1761 = vst [vmem:[#allocation7 + $0x8] sm:$0xff] %v1753
        %1762 = vst [vmem:[#allocation7 + $0x10] sm:$0xff] %v1754
        %1763 = vst [vmem:[#allocation7 + $0x18] sm:$0xff] %v1755
        %1764 = vst [vmem:[#allocation7 + $0x20] sm:$0xff] %v1756
        %1765 = vst [vmem:[#allocation7 + $0x28] sm:$0xff] %v1757
        %1766 = vst [vmem:[#allocation7 + $0x30] sm:$0xff] %v1758
        %1767 = vst [vmem:[#allocation7 + $0x38] sm:$0xff] %v1759
        %v1768 = vld [vmem:[#allocation7] sm:$0xff]
        %v1769 = vld [vmem:[#allocation7 + $0x8] sm:$0xff]
        %v1770 = vld [vmem:[#allocation7 + $0x10] sm:$0xff]
        %v1771 = vld [vmem:[#allocation7 + $0x18] sm:$0xff]
        %v1772 = vld [vmem:[#allocation7 + $0x20] sm:$0xff]
        %v1773 = vld [vmem:[#allocation7 + $0x28] sm:$0xff]
        %v1774 = vld [vmem:[#allocation7 + $0x30] sm:$0xff]
        %v1775 = vld [vmem:[#allocation7 + $0x38] sm:$0xff]
        %v1776 = vld [vmem:[%s7] sm:$0x1]
        %v1778 = vlaneseq
        %v1779 = vshrl.u32 %v1778, 7
        %v1780 = vsub.s32 0, %v1779
        %v1781 = vrot.slane %v1776, %v1780
        %v1783 = vadd.f32 %v1768, %v1781
        %v1784 = vadd.f32 %v1769, %v1781
        %v1785 = vadd.f32 %v1770, %v1781
        %v1786 = vadd.f32 %v1771, %v1781
        %v1787 = vadd.f32 %v1772, %v1781
        %v1788 = vadd.f32 %v1773, %v1781
        %v1789 = vadd.f32 %v1774, %v1781
        %v1790 = vadd.f32 %v1775, %v1781
        %v1791 = vmax.f32 %v1783, 0.0
        %v1792 = vmax.f32 %v1784, 0.0
        %v1793 = vmax.f32 %v1785, 0.0
        %v1794 = vmax.f32 %v1786, 0.0
        %v1795 = vmax.f32 %v1787, 0.0
        %v1796 = vmax.f32 %v1788, 0.0
        %v1797 = vmax.f32 %v1789, 0.0
        %v1798 = vmax.f32 %v1790, 0.0
        %1799 = vst [vmem:[#allocation6] sm:$0xff] 0.0
        %1800 = vst [vmem:[#allocation6 + $0x8] sm:$0x3] 0.0
        %1801 = vst [vmem:[#allocation6 + $0x10] sm:$0xff] 0.0
        %1802 = vst [vmem:[#allocation6 + $0x18] sm:$0x3] 0.0
        %1803 = vst [vmem:[#allocation6 + $0x20] sm:$0xff] 0.0
        %1804 = vst [vmem:[#allocation6 + $0x28] sm:$0x3] 0.0
        %1805 = vst [vmem:[#allocation6 + $0x30] sm:$0xff] 0.0
        %1806 = vst [vmem:[#allocation6 + $0x38] sm:$0x3] 0.0
        %1807 = vst [vmem:[#allocation6 + $0x40] sm:$0xff] 0.0
        %1808 = vst [vmem:[#allocation6 + $0x48] sm:$0x3] 0.0
        %1809 = vst [vmem:[#allocation6 + $0x50] sm:$0xff] 0.0
        %1810 = vst [vmem:[#allocation6 + $0x58] sm:$0x3] 0.0
        %1811 = vst [vmem:[#allocation6 + $0x60] sm:$0xff] 0.0
        %1812 = vst [vmem:[#allocation6 + $0x68] sm:$0x3] 0.0
        %1813 = vst [vmem:[#allocation6 + $0x70] sm:$0xff] 0.0
        %1814 = vst [vmem:[#allocation6 + $0x78] sm:$0x3] 0.0
        %1815 = vst [vmem:[#allocation6 + $0x80] sm:$0xff] 0.0
        %1816 = vst [vmem:[#allocation6 + $0x88] sm:$0x3] 0.0
        %1817 = vst [vmem:[#allocation6 + $0x90] sm:$0xff] 0.0
        %1818 = vst [vmem:[#allocation6 + $0x98] sm:$0x3] 0.0
        %s1819 = scalar_lea.vmem [#allocation6], 16
        %1820 = vst [vmem:[%s1819 + $0x1] sm:$0xff] %v1791
        %1821 = vst [vmem:[%s1819 + $0x11] sm:$0xff] %v1792
        %1822 = vst [vmem:[%s1819 + $0x21] sm:$0xff] %v1793
        %1823 = vst [vmem:[%s1819 + $0x31] sm:$0xff] %v1794
        %1824 = vst [vmem:[%s1819 + $0x41] sm:$0xff] %v1795
        %1825 = vst [vmem:[%s1819 + $0x51] sm:$0xff] %v1796
        %1826 = vst [vmem:[%s1819 + $0x61] sm:$0xff] %v1797
        %1827 = vst [vmem:[%s1819 + $0x71] sm:$0xff] %v1798
        %v1828 = vld [vmem:[%s512 + $0x1] sm:$0xff]
        %v1829 = vld [vmem:[%s512 + $0x11] sm:$0xff]
        %v1830 = vld [vmem:[%s512 + $0x21] sm:$0xff]
        %v1831 = vld [vmem:[%s512 + $0x31] sm:$0xff]
        %v1832 = vld [vmem:[%s512 + $0x41] sm:$0xff]
        %v1833 = vld [vmem:[%s512 + $0x51] sm:$0xff]
        %v1834 = vld [vmem:[%s512 + $0x61] sm:$0xff]
        %v1835 = vld [vmem:[%s512 + $0x71] sm:$0xff]
        %v1836 = vpack.c.bf16 %v1829, %v1828
        %v1837 = vpack.c.bf16 %v1831, %v1830
        %v1838 = vpack.c.bf16 %v1833, %v1832
        %v1839 = vpack.c.bf16 %v1835, %v1834
        %v1840 = vld [vmem:[%s8] sm:$0x3]
        %v1841 = vld [vmem:[%s9] sm:$0x1]
        %v1843 = vlaneseq
        %v1844 = vshrl.u32 %v1843, 7
        %v1845 = vsub.s32 0, %v1844
        %v1846 = vrot.slane %v1841, %v1845
        %v1849 = vsel %vm448, %v1836, 0
        %v1852 = vsel %vm448, %v1837, 0
        %v1855 = vsel %vm448, %v1838, 0
        %v1858 = vsel %vm448, %v1839, 0
        %v1861 = vsel %vm739, %v1840, 0
        %1863 = vmatprep.subr.bf16.mxu0 0
        %1864 = vmatpush1.bf16.msra.mxu0 %v1861
        %1865 = vmatprep.subr.bf16.mxu0 0
        %1866 = vmatpush1.bf16.msra.mxu0 0
        %1867 = vmatprep.subr.bf16.mxu0 0
        %1868 = vmatpush1.bf16.msra.mxu0 0
        %1869 = vmatprep.subr.bf16.mxu0 0
        %1870 = vmatpush1.bf16.msra.mxu0 0
        %1871 = vmatprep.subr.bf16.mxu0 0
        %1872 = vmatpush1.bf16.msra.mxu0 0
        %1873 = vmatprep.subr.bf16.mxu0 0
        %1874 = vmatpush1.bf16.msra.mxu0 0
        %1875 = vmatprep.subr.bf16.mxu0 0
        %1876 = vmatpush1.bf16.msra.mxu0 0
        %1877 = vmatprep.subr.bf16.mxu0 0
        %1878 = vmatpush1.bf16.msra.mxu0 0
        %1879 = vmatprep.subr.bf16.mxu0 0
        %1880 = vmatpush1.bf16.msra.mxu0 0
        %1881 = vmatprep.subr.bf16.mxu0 0
        %1882 = vmatpush1.bf16.msra.mxu0 0
        %1883 = vmatprep.subr.bf16.mxu0 0
        %1884 = vmatpush1.bf16.msra.mxu0 0
        %1885 = vmatprep.subr.bf16.mxu0 0
        %1886 = vmatpush1.bf16.msra.mxu0 0
        %1887 = vmatprep.subr.bf16.mxu0 0
        %1888 = vmatpush1.bf16.msra.mxu0 0
        %1889 = vmatprep.subr.bf16.mxu0 0
        %1890 = vmatpush1.bf16.msra.mxu0 0
        %1891 = vmatprep.subr.bf16.mxu0 0
        %1892 = vmatpush1.bf16.msra.mxu0 0
        %1893 = vmatprep.subr.bf16.mxu0 0
        %1894 = vmatpush1.bf16.msra.mxu0 0
        %1895 = vmatprep.mubr.bf16.mxu0 0
        %1896 = vmatmul.mubr.bf16.gmra.mrb[0].mxu0 %v1849
        %v1897 = vpop.f32.mrb[0].mxu0
        %v1898 = vadd.f32 %v1846, %v1897
        %v1899 = vpop.f32.mrb[0].mxu0
        %v1900 = vpop.f32.mrb[0].mxu0
        %v1901 = vadd.f32 %v1846, %v1900
        %v1902 = vpop.f32.mrb[0].mxu0
        %1903 = vmatprep.mubr.bf16.mxu0 0
        %1904 = vmatmul.mubr.bf16.gmra.mrb[0].mxu0 %v1852
        %v1905 = vpop.f32.mrb[0].mxu0
        %v1906 = vadd.f32 %v1846, %v1905
        %v1907 = vpop.f32.mrb[0].mxu0
        %v1908 = vpop.f32.mrb[0].mxu0
        %v1909 = vadd.f32 %v1846, %v1908
        %v1910 = vpop.f32.mrb[0].mxu0
        %1911 = vmatprep.mubr.bf16.mxu0 0
        %1912 = vmatmul.mubr.bf16.gmra.mrb[0].mxu0 %v1855
        %v1913 = vpop.f32.mrb[0].mxu0
        %v1914 = vadd.f32 %v1846, %v1913
        %v1915 = vpop.f32.mrb[0].mxu0
        %v1916 = vpop.f32.mrb[0].mxu0
        %v1917 = vadd.f32 %v1846, %v1916
        %v1918 = vpop.f32.mrb[0].mxu0
        %1919 = vmatprep.mubr.bf16.mxu0 0
        %1920 = vmatmul.mubr.bf16.gmra.mrb[0].mxu0 %v1858
        %v1921 = vpop.f32.mrb[0].mxu0
        %v1922 = vadd.f32 %v1846, %v1921
        %v1923 = vpop.f32.mrb[0].mxu0
        %v1924 = vpop.f32.mrb[0].mxu0
        %v1925 = vadd.f32 %v1846, %v1924
        %v1926 = vpop.f32.mrb[0].mxu0
        %1927 = vdwg.mxu0
        %1928 = vst [vmem:[#allocation7] sm:$0xff] %v1898
        %1929 = vst [vmem:[#allocation7 + $0x8] sm:$0xff] %v1901
        %1930 = vst [vmem:[#allocation7 + $0x10] sm:$0xff] %v1906
        %1931 = vst [vmem:[#allocation7 + $0x18] sm:$0xff] %v1909
        %1932 = vst [vmem:[#allocation7 + $0x20] sm:$0xff] %v1914
        %1933 = vst [vmem:[#allocation7 + $0x28] sm:$0xff] %v1917
        %1934 = vst [vmem:[#allocation7 + $0x30] sm:$0xff] %v1922
        %1935 = vst [vmem:[#allocation7 + $0x38] sm:$0xff] %v1925
        %v1936 = vld [vmem:[#allocation6] sm:$0xff]
        %v1937 = vld [vmem:[#allocation6 + $0x10] sm:$0xff]
        %v1938 = vld [vmem:[#allocation6 + $0x20] sm:$0xff]
        %v1939 = vld [vmem:[#allocation6 + $0x30] sm:$0xff]
        %v1940 = vld [vmem:[#allocation6 + $0x40] sm:$0xff]
        %v1941 = vld [vmem:[#allocation6 + $0x50] sm:$0xff]
        %v1942 = vld [vmem:[#allocation6 + $0x60] sm:$0xff]
        %v1943 = vld [vmem:[#allocation6 + $0x70] sm:$0xff]
        %v1944 = vld [vmem:[#allocation7] sm:$0xff]
        %v1945 = vld [vmem:[#allocation7 + $0x8] sm:$0xff]
        %v1946 = vld [vmem:[#allocation7 + $0x10] sm:$0xff]
        %v1947 = vld [vmem:[#allocation7 + $0x18] sm:$0xff]
        %v1948 = vld [vmem:[#allocation7 + $0x20] sm:$0xff]
        %v1949 = vld [vmem:[#allocation7 + $0x28] sm:$0xff]
        %v1950 = vld [vmem:[#allocation7 + $0x30] sm:$0xff]
        %v1951 = vld [vmem:[#allocation7 + $0x38] sm:$0xff]
        %v1952 = vpack.c.bf16 %v1937, %v1936
        %v1953 = vpack.c.bf16 %v1939, %v1938
        %v1954 = vpack.c.bf16 %v1941, %v1940
        %v1955 = vpack.c.bf16 %v1943, %v1942
        %v1956 = vld [vmem:[%s10] sm:$0xf]
        %v1957 = vld [vmem:[%s10 + $0x4] sm:$0xf]
        %v1958 = vld [vmem:[%s10 + $0x8] sm:$0xf]
        %v1959 = vld [vmem:[%s10 + $0xc] sm:$0xf]
        %v1960 = vld [vmem:[%s10 + $0x10] sm:$0xf]
        %v1961 = vld [vmem:[%s10 + $0x14] sm:$0xf]
        %v1962 = vld [vmem:[%s10 + $0x18] sm:$0xf]
        %v1963 = vld [vmem:[%s10 + $0x1c] sm:$0xf]
        %v1964 = vld [vmem:[%s10 + $0x20] sm:$0xf]
        %v1965 = vld [vmem:[%s10 + $0x24] sm:$0xf]
        %v1966 = vld [vmem:[%s10 + $0x28] sm:$0xf]
        %v1967 = vld [vmem:[%s10 + $0x2c] sm:$0xf]
        %v1968 = vld [vmem:[%s10 + $0x30] sm:$0xf]
        %v1969 = vld [vmem:[%s10 + $0x34] sm:$0xf]
        %v1970 = vld [vmem:[%s10 + $0x38] sm:$0xf]
        %v1971 = vld [vmem:[%s10 + $0x3c] sm:$0xf]
        %v1988 = vunpack.c.l.b16 %v1956
        %v1989 = vunpack.c.l.b16 %v1957
        %v1990 = vunpack.c.l.b16 %v1958
        %v1991 = vunpack.c.l.b16 %v1959
        %v1992 = vunpack.c.l.b16 %v1960
        %v1993 = vunpack.c.l.b16 %v1961
        %v1994 = vunpack.c.l.b16 %v1962
        %v1995 = vunpack.c.l.b16 %v1963
        %v1996 = vunpack.c.l.b16 %v1964
        %v1997 = vunpack.c.l.b16 %v1965
        %v1998 = vunpack.c.l.b16 %v1966
        %v1999 = vunpack.c.l.b16 %v1967
        %v2000 = vunpack.c.l.b16 %v1968
        %v2001 = vunpack.c.l.b16 %v1969
        %v2002 = vunpack.c.l.b16 %v1970
        %v2003 = vunpack.c.l.b16 %v1971
        %v2004 = vpack.c.b16 %v1989, %v1988
        %v2005 = vpack.c.b16 %v1991, %v1990
        %v2006 = vpack.c.b16 %v1993, %v1992
        %v2007 = vpack.c.b16 %v1995, %v1994
        %v2008 = vpack.c.b16 %v1997, %v1996
        %v2009 = vpack.c.b16 %v1999, %v1998
        %v2010 = vpack.c.b16 %v2001, %v2000
        %v2011 = vpack.c.b16 %v2003, %v2002
        %2020 = vmatprep.subr.bf16.mxu0 0
        %2021 = vmatpush1.bf16.msra.mxu0 %v2004
        %2022 = vmatprep.subr.bf16.mxu0 0
        %2023 = vmatpush1.bf16.msra.mxu0 %v2005
        %2024 = vmatprep.subr.bf16.mxu0 0
        %2025 = vmatpush1.bf16.msra.mxu0 %v2006
        %2026 = vmatprep.subr.bf16.mxu0 0
        %2027 = vmatpush1.bf16.msra.mxu0 %v2007
        %2028 = vmatprep.subr.bf16.mxu0 0
        %2029 = vmatpush1.bf16.msra.mxu0 %v2008
        %2030 = vmatprep.subr.bf16.mxu0 0
        %2031 = vmatpush1.bf16.msra.mxu0 %v2009
        %2032 = vmatprep.subr.bf16.mxu0 0
        %2033 = vmatpush1.bf16.msra.mxu0 %v2010
        %2034 = vmatprep.subr.bf16.mxu0 0
        %2035 = vmatpush1.bf16.msra.mxu0 %v2011
        %2036 = vmatprep.subr.bf16.mxu0 0
        %2037 = vmatpush1.bf16.msra.mxu0 0
        %2038 = vmatprep.subr.bf16.mxu0 0
        %2039 = vmatpush1.bf16.msra.mxu0 0
        %2040 = vmatprep.subr.bf16.mxu0 0
        %2041 = vmatpush1.bf16.msra.mxu0 0
        %2042 = vmatprep.subr.bf16.mxu0 0
        %2043 = vmatpush1.bf16.msra.mxu0 0
        %2044 = vmatprep.subr.bf16.mxu0 0
        %2045 = vmatpush1.bf16.msra.mxu0 0
        %2046 = vmatprep.subr.bf16.mxu0 0
        %2047 = vmatpush1.bf16.msra.mxu0 0
        %2048 = vmatprep.subr.bf16.mxu0 0
        %2049 = vmatpush1.bf16.msra.mxu0 0
        %2050 = vmatprep.subr.bf16.mxu0 0
        %2051 = vmatpush1.bf16.msra.mxu0 0
        %2052 = vmatprep.mubr.bf16.mxu0 0
        %2053 = vmatmul.mubr.bf16.gmra.mrb[0].mxu0 %v1952
        %v2054 = vpop.f32.mrb[0].mxu0
        %v2055 = vadd.f32 0.0, %v2054
        %v2056 = vpop.f32.mrb[0].mxu0
        %v2057 = vpop.f32.mrb[0].mxu0
        %v2058 = vadd.f32 0.0, %v2057
        %v2059 = vpop.f32.mrb[0].mxu0
        %2060 = vmatprep.mubr.bf16.mxu0 0
        %2061 = vmatmul.mubr.bf16.gmra.mrb[0].mxu0 %v1953
        %v2062 = vpop.f32.mrb[0].mxu0
        %v2063 = vadd.f32 0.0, %v2062
        %v2064 = vpop.f32.mrb[0].mxu0
        %v2065 = vpop.f32.mrb[0].mxu0
        %v2066 = vadd.f32 0.0, %v2065
        %v2067 = vpop.f32.mrb[0].mxu0
        %2068 = vmatprep.mubr.bf16.mxu0 0
        %2069 = vmatmul.mubr.bf16.gmra.mrb[0].mxu0 %v1954
        %v2070 = vpop.f32.mrb[0].mxu0
        %v2071 = vadd.f32 0.0, %v2070
        %v2072 = vpop.f32.mrb[0].mxu0
        %v2073 = vpop.f32.mrb[0].mxu0
        %v2074 = vadd.f32 0.0, %v2073
        %v2075 = vpop.f32.mrb[0].mxu0
        %2076 = vmatprep.mubr.bf16.mxu0 0
        %2077 = vmatmul.mubr.bf16.gmra.mrb[0].mxu0 %v1955
        %v2078 = vpop.f32.mrb[0].mxu0
        %v2079 = vadd.f32 0.0, %v2078
        %v2080 = vpop.f32.mrb[0].mxu0
        %v2081 = vpop.f32.mrb[0].mxu0
        %v2082 = vadd.f32 0.0, %v2081
        %v2083 = vpop.f32.mrb[0].mxu0
        %2084 = vdwg.mxu0
        %v2085 = vadd.f32 %v1944, %v2055
        %v2086 = vadd.f32 %v1945, %v2058
        %v2087 = vadd.f32 %v1946, %v2063
        %v2088 = vadd.f32 %v1947, %v2066
        %v2089 = vadd.f32 %v1948, %v2071
        %v2090 = vadd.f32 %v1949, %v2074
        %v2091 = vadd.f32 %v1950, %v2079
        %v2092 = vadd.f32 %v1951, %v2082
        %2093 = vst [vmem:[#allocation7] sm:$0xff] %v2085
        %2094 = vst [vmem:[#allocation7 + $0x8] sm:$0xff] %v2086
        %2095 = vst [vmem:[#allocation7 + $0x10] sm:$0xff] %v2087
        %2096 = vst [vmem:[#allocation7 + $0x18] sm:$0xff] %v2088
        %2097 = vst [vmem:[#allocation7 + $0x20] sm:$0xff] %v2089
        %2098 = vst [vmem:[#allocation7 + $0x28] sm:$0xff] %v2090
        %2099 = vst [vmem:[#allocation7 + $0x30] sm:$0xff] %v2091
        %2100 = vst [vmem:[#allocation7 + $0x38] sm:$0xff] %v2092
        %v2101 = vld [vmem:[#allocation6 + $0x1] sm:$0xff]
        %v2102 = vld [vmem:[#allocation6 + $0x11] sm:$0xff]
        %v2103 = vld [vmem:[#allocation6 + $0x21] sm:$0xff]
        %v2104 = vld [vmem:[#allocation6 + $0x31] sm:$0xff]
        %v2105 = vld [vmem:[#allocation6 + $0x41] sm:$0xff]
        %v2106 = vld [vmem:[#allocation6 + $0x51] sm:$0xff]
        %v2107 = vld [vmem:[#allocation6 + $0x61] sm:$0xff]
        %v2108 = vld [vmem:[#allocation6 + $0x71] sm:$0xff]
        %v2109 = vld [vmem:[#allocation7] sm:$0xff]
        %v2110 = vld [vmem:[#allocation7 + $0x8] sm:$0xff]
        %v2111 = vld [vmem:[#allocation7 + $0x10] sm:$0xff]
        %v2112 = vld [vmem:[#allocation7 + $0x18] sm:$0xff]
        %v2113 = vld [vmem:[#allocation7 + $0x20] sm:$0xff]
        %v2114 = vld [vmem:[#allocation7 + $0x28] sm:$0xff]
        %v2115 = vld [vmem:[#allocation7 + $0x30] sm:$0xff]
        %v2116 = vld [vmem:[#allocation7 + $0x38] sm:$0xff]
        %v2117 = vpack.c.bf16 %v2102, %v2101
        %v2118 = vpack.c.bf16 %v2104, %v2103
        %v2119 = vpack.c.bf16 %v2106, %v2105
        %v2120 = vpack.c.bf16 %v2108, %v2107
        %s2121 = scalar_lea.vmem %s10, 64
        %v2122 = vld [vmem:[%s2121] sm:$0xf]
        %v2123 = vld [vmem:[%s2121 + $0x4] sm:$0xf]
        %v2124 = vld [vmem:[%s2121 + $0x8] sm:$0xf]
        %v2125 = vld [vmem:[%s2121 + $0xc] sm:$0xf]
        %v2126 = vld [vmem:[%s2121 + $0x10] sm:$0xf]
        %v2127 = vld [vmem:[%s2121 + $0x14] sm:$0xf]
        %v2128 = vld [vmem:[%s2121 + $0x18] sm:$0xf]
        %v2129 = vld [vmem:[%s2121 + $0x1c] sm:$0xf]
        %v2130 = vld [vmem:[%s2121 + $0x20] sm:$0xf]
        %v2131 = vld [vmem:[%s2121 + $0x24] sm:$0xf]
        %v2132 = vld [vmem:[%s2121 + $0x28] sm:$0xf]
        %v2133 = vld [vmem:[%s2121 + $0x2c] sm:$0xf]
        %v2134 = vld [vmem:[%s2121 + $0x30] sm:$0xf]
        %v2135 = vld [vmem:[%s2121 + $0x34] sm:$0xf]
        %v2136 = vld [vmem:[%s2121 + $0x38] sm:$0xf]
        %v2137 = vld [vmem:[%s2121 + $0x3c] sm:$0xf]
        %v2154 = vunpack.c.l.b16 %v2122
        %v2155 = vunpack.c.l.b16 %v2123
        %v2156 = vunpack.c.l.b16 %v2124
        %v2157 = vunpack.c.l.b16 %v2125
        %v2158 = vunpack.c.l.b16 %v2126
        %v2159 = vunpack.c.l.b16 %v2127
        %v2160 = vunpack.c.l.b16 %v2128
        %v2161 = vunpack.c.l.b16 %v2129
        %v2162 = vunpack.c.l.b16 %v2130
        %v2163 = vunpack.c.l.b16 %v2131
        %v2164 = vunpack.c.l.b16 %v2132
        %v2165 = vunpack.c.l.b16 %v2133
        %v2166 = vunpack.c.l.b16 %v2134
        %v2167 = vunpack.c.l.b16 %v2135
        %v2168 = vunpack.c.l.b16 %v2136
        %v2169 = vunpack.c.l.b16 %v2137
        %v2170 = vpack.c.b16 %v2155, %v2154
        %v2171 = vpack.c.b16 %v2157, %v2156
        %v2172 = vpack.c.b16 %v2159, %v2158
        %v2173 = vpack.c.b16 %v2161, %v2160
        %v2174 = vpack.c.b16 %v2163, %v2162
        %v2175 = vpack.c.b16 %v2165, %v2164
        %v2176 = vpack.c.b16 %v2167, %v2166
        %v2177 = vpack.c.b16 %v2169, %v2168
        %2186 = vmatprep.subr.bf16.mxu0 0
        %2187 = vmatpush1.bf16.msra.mxu0 %v2170
        %2188 = vmatprep.subr.bf16.mxu0 0
        %2189 = vmatpush1.bf16.msra.mxu0 %v2171
        %2190 = vmatprep.subr.bf16.mxu0 0
        %2191 = vmatpush1.bf16.msra.mxu0 %v2172
        %2192 = vmatprep.subr.bf16.mxu0 0
        %2193 = vmatpush1.bf16.msra.mxu0 %v2173
        %2194 = vmatprep.subr.bf16.mxu0 0
        %2195 = vmatpush1.bf16.msra.mxu0 %v2174
        %2196 = vmatprep.subr.bf16.mxu0 0
        %2197 = vmatpush1.bf16.msra.mxu0 %v2175
        %2198 = vmatprep.subr.bf16.mxu0 0
        %2199 = vmatpush1.bf16.msra.mxu0 %v2176
        %2200 = vmatprep.subr.bf16.mxu0 0
        %2201 = vmatpush1.bf16.msra.mxu0 %v2177
        %2202 = vmatprep.subr.bf16.mxu0 0
        %2203 = vmatpush1.bf16.msra.mxu0 0
        %2204 = vmatprep.subr.bf16.mxu0 0
        %2205 = vmatpush1.bf16.msra.mxu0 0
        %2206 = vmatprep.subr.bf16.mxu0 0
        %2207 = vmatpush1.bf16.msra.mxu0 0
        %2208 = vmatprep.subr.bf16.mxu0 0
        %2209 = vmatpush1.bf16.msra.mxu0 0
        %2210 = vmatprep.subr.bf16.mxu0 0
        %2211 = vmatpush1.bf16.msra.mxu0 0
        %2212 = vmatprep.subr.bf16.mxu0 0
        %2213 = vmatpush1.bf16.msra.mxu0 0
        %2214 = vmatprep.subr.bf16.mxu0 0
        %2215 = vmatpush1.bf16.msra.mxu0 0
        %2216 = vmatprep.subr.bf16.mxu0 0
        %2217 = vmatpush1.bf16.msra.mxu0 0
        %2218 = vmatprep.mubr.bf16.mxu0 0
        %2219 = vmatmul.mubr.bf16.gmra.mrb[0].mxu0 %v2117
        %v2220 = vpop.f32.mrb[0].mxu0
        %v2221 = vadd.f32 0.0, %v2220
        %v2222 = vpop.f32.mrb[0].mxu0
        %v2223 = vpop.f32.mrb[0].mxu0
        %v2224 = vadd.f32 0.0, %v2223
        %v2225 = vpop.f32.mrb[0].mxu0
        %2226 = vmatprep.mubr.bf16.mxu0 0
        %2227 = vmatmul.mubr.bf16.gmra.mrb[0].mxu0 %v2118
        %v2228 = vpop.f32.mrb[0].mxu0
        %v2229 = vadd.f32 0.0, %v2228
        %v2230 = vpop.f32.mrb[0].mxu0
        %v2231 = vpop.f32.mrb[0].mxu0
        %v2232 = vadd.f32 0.0, %v2231
        %v2233 = vpop.f32.mrb[0].mxu0
        %2234 = vmatprep.mubr.bf16.mxu0 0
        %2235 = vmatmul.mubr.bf16.gmra.mrb[0].mxu0 %v2119
        %v2236 = vpop.f32.mrb[0].mxu0
        %v2237 = vadd.f32 0.0, %v2236
        %v2238 = vpop.f32.mrb[0].mxu0
        %v2239 = vpop.f32.mrb[0].mxu0
        %v2240 = vadd.f32 0.0, %v2239
        %v2241 = vpop.f32.mrb[0].mxu0
        %2242 = vmatprep.mubr.bf16.mxu0 0
        %2243 = vmatmul.mubr.bf16.gmra.mrb[0].mxu0 %v2120
        %v2244 = vpop.f32.mrb[0].mxu0
        %v2245 = vadd.f32 0.0, %v2244
        %v2246 = vpop.f32.mrb[0].mxu0
        %v2247 = vpop.f32.mrb[0].mxu0
        %v2248 = vadd.f32 0.0, %v2247
        %v2249 = vpop.f32.mrb[0].mxu0
        %2250 = vdwg.mxu0
        %v2251 = vadd.f32 %v2109, %v2221
        %v2252 = vadd.f32 %v2110, %v2224
        %v2253 = vadd.f32 %v2111, %v2229
        %v2254 = vadd.f32 %v2112, %v2232
        %v2255 = vadd.f32 %v2113, %v2237
        %v2256 = vadd.f32 %v2114, %v2240
        %v2257 = vadd.f32 %v2115, %v2245
        %v2258 = vadd.f32 %v2116, %v2248
        %2259 = vst [vmem:[#allocation7] sm:$0xff] %v2251
        %2260 = vst [vmem:[#allocation7 + $0x8] sm:$0xff] %v2252
        %2261 = vst [vmem:[#allocation7 + $0x10] sm:$0xff] %v2253
        %2262 = vst [vmem:[#allocation7 + $0x18] sm:$0xff] %v2254
        %2263 = vst [vmem:[#allocation7 + $0x20] sm:$0xff] %v2255
        %2264 = vst [vmem:[#allocation7 + $0x28] sm:$0xff] %v2256
        %2265 = vst [vmem:[#allocation7 + $0x30] sm:$0xff] %v2257
        %2266 = vst [vmem:[#allocation7 + $0x38] sm:$0xff] %v2258
        %v2267 = vld [vmem:[#allocation6 + $0x2] sm:$0xff]
        %v2268 = vld [vmem:[#allocation6 + $0x12] sm:$0xff]
        %v2269 = vld [vmem:[#allocation6 + $0x22] sm:$0xff]
        %v2270 = vld [vmem:[#allocation6 + $0x32] sm:$0xff]
        %v2271 = vld [vmem:[#allocation6 + $0x42] sm:$0xff]
        %v2272 = vld [vmem:[#allocation6 + $0x52] sm:$0xff]
        %v2273 = vld [vmem:[#allocation6 + $0x62] sm:$0xff]
        %v2274 = vld [vmem:[#allocation6 + $0x72] sm:$0xff]
        %v2275 = vld [vmem:[#allocation7] sm:$0xff]
        %v2276 = vld [vmem:[#allocation7 + $0x8] sm:$0xff]
        %v2277 = vld [vmem:[#allocation7 + $0x10] sm:$0xff]
        %v2278 = vld [vmem:[#allocation7 + $0x18] sm:$0xff]
        %v2279 = vld [vmem:[#allocation7 + $0x20] sm:$0xff]
        %v2280 = vld [vmem:[#allocation7 + $0x28] sm:$0xff]
        %v2281 = vld [vmem:[#allocation7 + $0x30] sm:$0xff]
        %v2282 = vld [vmem:[#allocation7 + $0x38] sm:$0xff]
        %v2283 = vpack.c.bf16 %v2268, %v2267
        %v2284 = vpack.c.bf16 %v2270, %v2269
        %v2285 = vpack.c.bf16 %v2272, %v2271
        %v2286 = vpack.c.bf16 %v2274, %v2273
        %s2287 = scalar_lea.vmem %s10, 128
        %v2288 = vld [vmem:[%s2287] sm:$0xf]
        %v2289 = vld [vmem:[%s2287 + $0x4] sm:$0xf]
        %v2290 = vld [vmem:[%s2287 + $0x8] sm:$0xf]
        %v2291 = vld [vmem:[%s2287 + $0xc] sm:$0xf]
        %v2292 = vld [vmem:[%s2287 + $0x10] sm:$0xf]
        %v2293 = vld [vmem:[%s2287 + $0x14] sm:$0xf]
        %v2294 = vld [vmem:[%s2287 + $0x18] sm:$0xf]
        %v2295 = vld [vmem:[%s2287 + $0x1c] sm:$0xf]
        %v2296 = vld [vmem:[%s2287 + $0x20] sm:$0xf]
        %v2297 = vld [vmem:[%s2287 + $0x24] sm:$0xf]
        %v2298 = vld [vmem:[%s2287 + $0x28] sm:$0xf]
        %v2299 = vld [vmem:[%s2287 + $0x2c] sm:$0xf]
        %v2300 = vld [vmem:[%s2287 + $0x30] sm:$0xf]
        %v2301 = vld [vmem:[%s2287 + $0x34] sm:$0xf]
        %v2302 = vld [vmem:[%s2287 + $0x38] sm:$0xf]
        %v2303 = vld [vmem:[%s2287 + $0x3c] sm:$0xf]
        %v2320 = vunpack.c.l.b16 %v2288
        %v2321 = vunpack.c.l.b16 %v2289
        %v2322 = vunpack.c.l.b16 %v2290
        %v2323 = vunpack.c.l.b16 %v2291
        %v2324 = vunpack.c.l.b16 %v2292
        %v2325 = vunpack.c.l.b16 %v2293
        %v2326 = vunpack.c.l.b16 %v2294
        %v2327 = vunpack.c.l.b16 %v2295
        %v2328 = vunpack.c.l.b16 %v2296
        %v2329 = vunpack.c.l.b16 %v2297
        %v2330 = vunpack.c.l.b16 %v2298
        %v2331 = vunpack.c.l.b16 %v2299
        %v2332 = vunpack.c.l.b16 %v2300
        %v2333 = vunpack.c.l.b16 %v2301
        %v2334 = vunpack.c.l.b16 %v2302
        %v2335 = vunpack.c.l.b16 %v2303
        %v2336 = vpack.c.b16 %v2321, %v2320
        %v2337 = vpack.c.b16 %v2323, %v2322
        %v2338 = vpack.c.b16 %v2325, %v2324
        %v2339 = vpack.c.b16 %v2327, %v2326
        %v2340 = vpack.c.b16 %v2329, %v2328
        %v2341 = vpack.c.b16 %v2331, %v2330
        %v2342 = vpack.c.b16 %v2333, %v2332
        %v2343 = vpack.c.b16 %v2335, %v2334
        %2352 = vmatprep.subr.bf16.mxu0 0
        %2353 = vmatpush1.bf16.msra.mxu0 %v2336
        %2354 = vmatprep.subr.bf16.mxu0 0
        %2355 = vmatpush1.bf16.msra.mxu0 %v2337
        %2356 = vmatprep.subr.bf16.mxu0 0
        %2357 = vmatpush1.bf16.msra.mxu0 %v2338
        %2358 = vmatprep.subr.bf16.mxu0 0
        %2359 = vmatpush1.bf16.msra.mxu0 %v2339
        %2360 = vmatprep.subr.bf16.mxu0 0
        %2361 = vmatpush1.bf16.msra.mxu0 %v2340
        %2362 = vmatprep.subr.bf16.mxu0 0
        %2363 = vmatpush1.bf16.msra.mxu0 %v2341
        %2364 = vmatprep.subr.bf16.mxu0 0
        %2365 = vmatpush1.bf16.msra.mxu0 %v2342
        %2366 = vmatprep.subr.bf16.mxu0 0
        %2367 = vmatpush1.bf16.msra.mxu0 %v2343
        %2368 = vmatprep.subr.bf16.mxu0 0
        %2369 = vmatpush1.bf16.msra.mxu0 0
        %2370 = vmatprep.subr.bf16.mxu0 0
        %2371 = vmatpush1.bf16.msra.mxu0 0
        %2372 = vmatprep.subr.bf16.mxu0 0
        %2373 = vmatpush1.bf16.msra.mxu0 0
        %2374 = vmatprep.subr.bf16.mxu0 0
        %2375 = vmatpush1.bf16.msra.mxu0 0
        %2376 = vmatprep.subr.bf16.mxu0 0
        %2377 = vmatpush1.bf16.msra.mxu0 0
        %2378 = vmatprep.subr.bf16.mxu0 0
        %2379 = vmatpush1.bf16.msra.mxu0 0
        %2380 = vmatprep.subr.bf16.mxu0 0
        %2381 = vmatpush1.bf16.msra.mxu0 0
        %2382 = vmatprep.subr.bf16.mxu0 0
        %2383 = vmatpush1.bf16.msra.mxu0 0
        %2384 = vmatprep.mubr.bf16.mxu0 0
        %2385 = vmatmul.mubr.bf16.gmra.mrb[0].mxu0 %v2283
        %v2386 = vpop.f32.mrb[0].mxu0
        %v2387 = vadd.f32 0.0, %v2386
        %v2388 = vpop.f32.mrb[0].mxu0
        %v2389 = vpop.f32.mrb[0].mxu0
        %v2390 = vadd.f32 0.0, %v2389
        %v2391 = vpop.f32.mrb[0].mxu0
        %2392 = vmatprep.mubr.bf16.mxu0 0
        %2393 = vmatmul.mubr.bf16.gmra.mrb[0].mxu0 %v2284
        %v2394 = vpop.f32.mrb[0].mxu0
        %v2395 = vadd.f32 0.0, %v2394
        %v2396 = vpop.f32.mrb[0].mxu0
        %v2397 = vpop.f32.mrb[0].mxu0
        %v2398 = vadd.f32 0.0, %v2397
        %v2399 = vpop.f32.mrb[0].mxu0
        %2400 = vmatprep.mubr.bf16.mxu0 0
        %2401 = vmatmul.mubr.bf16.gmra.mrb[0].mxu0 %v2285
        %v2402 = vpop.f32.mrb[0].mxu0
        %v2403 = vadd.f32 0.0, %v2402
        %v2404 = vpop.f32.mrb[0].mxu0
        %v2405 = vpop.f32.mrb[0].mxu0
        %v2406 = vadd.f32 0.0, %v2405
        %v2407 = vpop.f32.mrb[0].mxu0
        %2408 = vmatprep.mubr.bf16.mxu0 0
        %2409 = vmatmul.mubr.bf16.gmra.mrb[0].mxu0 %v2286
        %v2410 = vpop.f32.mrb[0].mxu0
        %v2411 = vadd.f32 0.0, %v2410
        %v2412 = vpop.f32.mrb[0].mxu0
        %v2413 = vpop.f32.mrb[0].mxu0
        %v2414 = vadd.f32 0.0, %v2413
        %v2415 = vpop.f32.mrb[0].mxu0
        %2416 = vdwg.mxu0
        %v2417 = vadd.f32 %v2275, %v2387
        %v2418 = vadd.f32 %v2276, %v2390
        %v2419 = vadd.f32 %v2277, %v2395
        %v2420 = vadd.f32 %v2278, %v2398
        %v2421 = vadd.f32 %v2279, %v2403
        %v2422 = vadd.f32 %v2280, %v2406
        %v2423 = vadd.f32 %v2281, %v2411
        %v2424 = vadd.f32 %v2282, %v2414
        %2425 = vst [vmem:[#allocation7] sm:$0xff] %v2417
        %2426 = vst [vmem:[#allocation7 + $0x8] sm:$0xff] %v2418
        %2427 = vst [vmem:[#allocation7 + $0x10] sm:$0xff] %v2419
        %2428 = vst [vmem:[#allocation7 + $0x18] sm:$0xff] %v2420
        %2429 = vst [vmem:[#allocation7 + $0x20] sm:$0xff] %v2421
        %2430 = vst [vmem:[#allocation7 + $0x28] sm:$0xff] %v2422
        %2431 = vst [vmem:[#allocation7 + $0x30] sm:$0xff] %v2423
        %2432 = vst [vmem:[#allocation7 + $0x38] sm:$0xff] %v2424
        %v2433 = vld [vmem:[%s1819] sm:$0xff]
        %v2434 = vld [vmem:[%s1819 + $0x10] sm:$0xff]
        %v2435 = vld [vmem:[%s1819 + $0x20] sm:$0xff]
        %v2436 = vld [vmem:[%s1819 + $0x30] sm:$0xff]
        %v2437 = vld [vmem:[%s1819 + $0x40] sm:$0xff]
        %v2438 = vld [vmem:[%s1819 + $0x50] sm:$0xff]
        %v2439 = vld [vmem:[%s1819 + $0x60] sm:$0xff]
        %v2440 = vld [vmem:[%s1819 + $0x70] sm:$0xff]
        %v2441 = vld [vmem:[#allocation7] sm:$0xff]
        %v2442 = vld [vmem:[#allocation7 + $0x8] sm:$0xff]
        %v2443 = vld [vmem:[#allocation7 + $0x10] sm:$0xff]
        %v2444 = vld [vmem:[#allocation7 + $0x18] sm:$0xff]
        %v2445 = vld [vmem:[#allocation7 + $0x20] sm:$0xff]
        %v2446 = vld [vmem:[#allocation7 + $0x28] sm:$0xff]
        %v2447 = vld [vmem:[#allocation7 + $0x30] sm:$0xff]
        %v2448 = vld [vmem:[#allocation7 + $0x38] sm:$0xff]
        %v2449 = vpack.c.bf16 %v2434, %v2433
        %v2450 = vpack.c.bf16 %v2436, %v2435
        %v2451 = vpack.c.bf16 %v2438, %v2437
        %v2452 = vpack.c.bf16 %v2440, %v2439
        %s2453 = scalar_lea.vmem %s10, 192
        %v2454 = vld [vmem:[%s2453] sm:$0xf]
        %v2455 = vld [vmem:[%s2453 + $0x4] sm:$0xf]
        %v2456 = vld [vmem:[%s2453 + $0x8] sm:$0xf]
        %v2457 = vld [vmem:[%s2453 + $0xc] sm:$0xf]
        %v2458 = vld [vmem:[%s2453 + $0x10] sm:$0xf]
        %v2459 = vld [vmem:[%s2453 + $0x14] sm:$0xf]
        %v2460 = vld [vmem:[%s2453 + $0x18] sm:$0xf]
        %v2461 = vld [vmem:[%s2453 + $0x1c] sm:$0xf]
        %v2462 = vld [vmem:[%s2453 + $0x20] sm:$0xf]
        %v2463 = vld [vmem:[%s2453 + $0x24] sm:$0xf]
        %v2464 = vld [vmem:[%s2453 + $0x28] sm:$0xf]
        %v2465 = vld [vmem:[%s2453 + $0x2c] sm:$0xf]
        %v2466 = vld [vmem:[%s2453 + $0x30] sm:$0xf]
        %v2467 = vld [vmem:[%s2453 + $0x34] sm:$0xf]
        %v2468 = vld [vmem:[%s2453 + $0x38] sm:$0xf]
        %v2469 = vld [vmem:[%s2453 + $0x3c] sm:$0xf]
        %v2486 = vunpack.c.l.b16 %v2454
        %v2487 = vunpack.c.l.b16 %v2455
        %v2488 = vunpack.c.l.b16 %v2456
        %v2489 = vunpack.c.l.b16 %v2457
        %v2490 = vunpack.c.l.b16 %v2458
        %v2491 = vunpack.c.l.b16 %v2459
        %v2492 = vunpack.c.l.b16 %v2460
        %v2493 = vunpack.c.l.b16 %v2461
        %v2494 = vunpack.c.l.b16 %v2462
        %v2495 = vunpack.c.l.b16 %v2463
        %v2496 = vunpack.c.l.b16 %v2464
        %v2497 = vunpack.c.l.b16 %v2465
        %v2498 = vunpack.c.l.b16 %v2466
        %v2499 = vunpack.c.l.b16 %v2467
        %v2500 = vunpack.c.l.b16 %v2468
        %v2501 = vunpack.c.l.b16 %v2469
        %v2502 = vpack.c.b16 %v2487, %v2486
        %v2503 = vpack.c.b16 %v2489, %v2488
        %v2504 = vpack.c.b16 %v2491, %v2490
        %v2505 = vpack.c.b16 %v2493, %v2492
        %v2506 = vpack.c.b16 %v2495, %v2494
        %v2507 = vpack.c.b16 %v2497, %v2496
        %v2508 = vpack.c.b16 %v2499, %v2498
        %v2509 = vpack.c.b16 %v2501, %v2500
        %2518 = vmatprep.subr.bf16.mxu0 0
        %2519 = vmatpush1.bf16.msra.mxu0 %v2502
        %2520 = vmatprep.subr.bf16.mxu0 0
        %2521 = vmatpush1.bf16.msra.mxu0 %v2503
        %2522 = vmatprep.subr.bf16.mxu0 0
        %2523 = vmatpush1.bf16.msra.mxu0 %v2504
        %2524 = vmatprep.subr.bf16.mxu0 0
        %2525 = vmatpush1.bf16.msra.mxu0 %v2505
        %2526 = vmatprep.subr.bf16.mxu0 0
        %2527 = vmatpush1.bf16.msra.mxu0 %v2506
        %2528 = vmatprep.subr.bf16.mxu0 0
        %2529 = vmatpush1.bf16.msra.mxu0 %v2507
        %2530 = vmatprep.subr.bf16.mxu0 0
        %2531 = vmatpush1.bf16.msra.mxu0 %v2508
        %2532 = vmatprep.subr.bf16.mxu0 0
        %2533 = vmatpush1.bf16.msra.mxu0 %v2509
        %2534 = vmatprep.subr.bf16.mxu0 0
        %2535 = vmatpush1.bf16.msra.mxu0 0
        %2536 = vmatprep.subr.bf16.mxu0 0
        %2537 = vmatpush1.bf16.msra.mxu0 0
        %2538 = vmatprep.subr.bf16.mxu0 0
        %2539 = vmatpush1.bf16.msra.mxu0 0
        %2540 = vmatprep.subr.bf16.mxu0 0
        %2541 = vmatpush1.bf16.msra.mxu0 0
        %2542 = vmatprep.subr.bf16.mxu0 0
        %2543 = vmatpush1.bf16.msra.mxu0 0
        %2544 = vmatprep.subr.bf16.mxu0 0
        %2545 = vmatpush1.bf16.msra.mxu0 0
        %2546 = vmatprep.subr.bf16.mxu0 0
        %2547 = vmatpush1.bf16.msra.mxu0 0
        %2548 = vmatprep.subr.bf16.mxu0 0
        %2549 = vmatpush1.bf16.msra.mxu0 0
        %2550 = vmatprep.mubr.bf16.mxu0 0
        %2551 = vmatmul.mubr.bf16.gmra.mrb[0].mxu0 %v2449
        %v2552 = vpop.f32.mrb[0].mxu0
        %v2553 = vadd.f32 0.0, %v2552
        %v2554 = vpop.f32.mrb[0].mxu0
        %v2555 = vpop.f32.mrb[0].mxu0
        %v2556 = vadd.f32 0.0, %v2555
        %v2557 = vpop.f32.mrb[0].mxu0
        %2558 = vmatprep.mubr.bf16.mxu0 0
        %2559 = vmatmul.mubr.bf16.gmra.mrb[0].mxu0 %v2450
        %v2560 = vpop.f32.mrb[0].mxu0
        %v2561 = vadd.f32 0.0, %v2560
        %v2562 = vpop.f32.mrb[0].mxu0
        %v2563 = vpop.f32.mrb[0].mxu0
        %v2564 = vadd.f32 0.0, %v2563
        %v2565 = vpop.f32.mrb[0].mxu0
        %2566 = vmatprep.mubr.bf16.mxu0 0
        %2567 = vmatmul.mubr.bf16.gmra.mrb[0].mxu0 %v2451
        %v2568 = vpop.f32.mrb[0].mxu0
        %v2569 = vadd.f32 0.0, %v2568
        %v2570 = vpop.f32.mrb[0].mxu0
        %v2571 = vpop.f32.mrb[0].mxu0
        %v2572 = vadd.f32 0.0, %v2571
        %v2573 = vpop.f32.mrb[0].mxu0
        %2574 = vmatprep.mubr.bf16.mxu0 0
        %2575 = vmatmul.mubr.bf16.gmra.mrb[0].mxu0 %v2452
        %v2576 = vpop.f32.mrb[0].mxu0
        %v2577 = vadd.f32 0.0, %v2576
        %v2578 = vpop.f32.mrb[0].mxu0
        %v2579 = vpop.f32.mrb[0].mxu0
        %v2580 = vadd.f32 0.0, %v2579
        %v2581 = vpop.f32.mrb[0].mxu0
        %2582 = vdwg.mxu0
        %v2583 = vadd.f32 %v2441, %v2553
        %v2584 = vadd.f32 %v2442, %v2556
        %v2585 = vadd.f32 %v2443, %v2561
        %v2586 = vadd.f32 %v2444, %v2564
        %v2587 = vadd.f32 %v2445, %v2569
        %v2588 = vadd.f32 %v2446, %v2572
        %v2589 = vadd.f32 %v2447, %v2577
        %v2590 = vadd.f32 %v2448, %v2580
        %2591 = vst [vmem:[#allocation7] sm:$0xff] %v2583
        %2592 = vst [vmem:[#allocation7 + $0x8] sm:$0xff] %v2584
        %2593 = vst [vmem:[#allocation7 + $0x10] sm:$0xff] %v2585
        %2594 = vst [vmem:[#allocation7 + $0x18] sm:$0xff] %v2586
        %2595 = vst [vmem:[#allocation7 + $0x20] sm:$0xff] %v2587
        %2596 = vst [vmem:[#allocation7 + $0x28] sm:$0xff] %v2588
        %2597 = vst [vmem:[#allocation7 + $0x30] sm:$0xff] %v2589
        %2598 = vst [vmem:[#allocation7 + $0x38] sm:$0xff] %v2590
        %v2599 = vld [vmem:[%s1819 + $0x1] sm:$0xff]
        %v2600 = vld [vmem:[%s1819 + $0x11] sm:$0xff]
        %v2601 = vld [vmem:[%s1819 + $0x21] sm:$0xff]
        %v2602 = vld [vmem:[%s1819 + $0x31] sm:$0xff]
        %v2603 = vld [vmem:[%s1819 + $0x41] sm:$0xff]
        %v2604 = vld [vmem:[%s1819 + $0x51] sm:$0xff]
        %v2605 = vld [vmem:[%s1819 + $0x61] sm:$0xff]
        %v2606 = vld [vmem:[%s1819 + $0x71] sm:$0xff]
        %v2607 = vld [vmem:[#allocation7] sm:$0xff]
        %v2608 = vld [vmem:[#allocation7 + $0x8] sm:$0xff]
        %v2609 = vld [vmem:[#allocation7 + $0x10] sm:$0xff]
        %v2610 = vld [vmem:[#allocation7 + $0x18] sm:$0xff]
        %v2611 = vld [vmem:[#allocation7 + $0x20] sm:$0xff]
        %v2612 = vld [vmem:[#allocation7 + $0x28] sm:$0xff]
        %v2613 = vld [vmem:[#allocation7 + $0x30] sm:$0xff]
        %v2614 = vld [vmem:[#allocation7 + $0x38] sm:$0xff]
        %v2615 = vpack.c.bf16 %v2600, %v2599
        %v2616 = vpack.c.bf16 %v2602, %v2601
        %v2617 = vpack.c.bf16 %v2604, %v2603
        %v2618 = vpack.c.bf16 %v2606, %v2605
        %s2619 = scalar_lea.vmem %s10, 256
        %v2620 = vld [vmem:[%s2619] sm:$0xf]
        %v2621 = vld [vmem:[%s2619 + $0x4] sm:$0xf]
        %v2622 = vld [vmem:[%s2619 + $0x8] sm:$0xf]
        %v2623 = vld [vmem:[%s2619 + $0xc] sm:$0xf]
        %v2624 = vld [vmem:[%s2619 + $0x10] sm:$0xf]
        %v2625 = vld [vmem:[%s2619 + $0x14] sm:$0xf]
        %v2626 = vld [vmem:[%s2619 + $0x18] sm:$0xf]
        %v2627 = vld [vmem:[%s2619 + $0x1c] sm:$0xf]
        %v2628 = vld [vmem:[%s2619 + $0x20] sm:$0xf]
        %v2629 = vld [vmem:[%s2619 + $0x24] sm:$0xf]
        %v2630 = vld [vmem:[%s2619 + $0x28] sm:$0xf]
        %v2631 = vld [vmem:[%s2619 + $0x2c] sm:$0xf]
        %v2632 = vld [vmem:[%s2619 + $0x30] sm:$0xf]
        %v2633 = vld [vmem:[%s2619 + $0x34] sm:$0xf]
        %v2634 = vld [vmem:[%s2619 + $0x38] sm:$0xf]
        %v2635 = vld [vmem:[%s2619 + $0x3c] sm:$0xf]
        %v2652 = vunpack.c.l.b16 %v2620
        %v2653 = vunpack.c.l.b16 %v2621
        %v2654 = vunpack.c.l.b16 %v2622
        %v2655 = vunpack.c.l.b16 %v2623
        %v2656 = vunpack.c.l.b16 %v2624
        %v2657 = vunpack.c.l.b16 %v2625
        %v2658 = vunpack.c.l.b16 %v2626
        %v2659 = vunpack.c.l.b16 %v2627
        %v2660 = vunpack.c.l.b16 %v2628
        %v2661 = vunpack.c.l.b16 %v2629
        %v2662 = vunpack.c.l.b16 %v2630
        %v2663 = vunpack.c.l.b16 %v2631
        %v2664 = vunpack.c.l.b16 %v2632
        %v2665 = vunpack.c.l.b16 %v2633
        %v2666 = vunpack.c.l.b16 %v2634
        %v2667 = vunpack.c.l.b16 %v2635
        %v2668 = vpack.c.b16 %v2653, %v2652
        %v2669 = vpack.c.b16 %v2655, %v2654
        %v2670 = vpack.c.b16 %v2657, %v2656
        %v2671 = vpack.c.b16 %v2659, %v2658
        %v2672 = vpack.c.b16 %v2661, %v2660
        %v2673 = vpack.c.b16 %v2663, %v2662
        %v2674 = vpack.c.b16 %v2665, %v2664
        %v2675 = vpack.c.b16 %v2667, %v2666
        %2684 = vmatprep.subr.bf16.mxu0 0
        %2685 = vmatpush1.bf16.msra.mxu0 %v2668
        %2686 = vmatprep.subr.bf16.mxu0 0
        %2687 = vmatpush1.bf16.msra.mxu0 %v2669
        %2688 = vmatprep.subr.bf16.mxu0 0
        %2689 = vmatpush1.bf16.msra.mxu0 %v2670
        %2690 = vmatprep.subr.bf16.mxu0 0
        %2691 = vmatpush1.bf16.msra.mxu0 %v2671
        %2692 = vmatprep.subr.bf16.mxu0 0
        %2693 = vmatpush1.bf16.msra.mxu0 %v2672
        %2694 = vmatprep.subr.bf16.mxu0 0
        %2695 = vmatpush1.bf16.msra.mxu0 %v2673
        %2696 = vmatprep.subr.bf16.mxu0 0
        %2697 = vmatpush1.bf16.msra.mxu0 %v2674
        %2698 = vmatprep.subr.bf16.mxu0 0
        %2699 = vmatpush1.bf16.msra.mxu0 %v2675
        %2700 = vmatprep.subr.bf16.mxu0 0
        %2701 = vmatpush1.bf16.msra.mxu0 0
        %2702 = vmatprep.subr.bf16.mxu0 0
        %2703 = vmatpush1.bf16.msra.mxu0 0
        %2704 = vmatprep.subr.bf16.mxu0 0
        %2705 = vmatpush1.bf16.msra.mxu0 0
        %2706 = vmatprep.subr.bf16.mxu0 0
        %2707 = vmatpush1.bf16.msra.mxu0 0
        %2708 = vmatprep.subr.bf16.mxu0 0
        %2709 = vmatpush1.bf16.msra.mxu0 0
        %2710 = vmatprep.subr.bf16.mxu0 0
        %2711 = vmatpush1.bf16.msra.mxu0 0
        %2712 = vmatprep.subr.bf16.mxu0 0
        %2713 = vmatpush1.bf16.msra.mxu0 0
        %2714 = vmatprep.subr.bf16.mxu0 0
        %2715 = vmatpush1.bf16.msra.mxu0 0
        %2716 = vmatprep.mubr.bf16.mxu0 0
        %2717 = vmatmul.mubr.bf16.gmra.mrb[0].mxu0 %v2615
        %v2718 = vpop.f32.mrb[0].mxu0
        %v2719 = vadd.f32 0.0, %v2718
        %v2720 = vpop.f32.mrb[0].mxu0
        %v2721 = vpop.f32.mrb[0].mxu0
        %v2722 = vadd.f32 0.0, %v2721
        %v2723 = vpop.f32.mrb[0].mxu0
        %2724 = vmatprep.mubr.bf16.mxu0 0
        %2725 = vmatmul.mubr.bf16.gmra.mrb[0].mxu0 %v2616
        %v2726 = vpop.f32.mrb[0].mxu0
        %v2727 = vadd.f32 0.0, %v2726
        %v2728 = vpop.f32.mrb[0].mxu0
        %v2729 = vpop.f32.mrb[0].mxu0
        %v2730 = vadd.f32 0.0, %v2729
        %v2731 = vpop.f32.mrb[0].mxu0
        %2732 = vmatprep.mubr.bf16.mxu0 0
        %2733 = vmatmul.mubr.bf16.gmra.mrb[0].mxu0 %v2617
        %v2734 = vpop.f32.mrb[0].mxu0
        %v2735 = vadd.f32 0.0, %v2734
        %v2736 = vpop.f32.mrb[0].mxu0
        %v2737 = vpop.f32.mrb[0].mxu0
        %v2738 = vadd.f32 0.0, %v2737
        %v2739 = vpop.f32.mrb[0].mxu0
        %2740 = vmatprep.mubr.bf16.mxu0 0
        %2741 = vmatmul.mubr.bf16.gmra.mrb[0].mxu0 %v2618
        %v2742 = vpop.f32.mrb[0].mxu0
        %v2743 = vadd.f32 0.0, %v2742
        %v2744 = vpop.f32.mrb[0].mxu0
        %v2745 = vpop.f32.mrb[0].mxu0
        %v2746 = vadd.f32 0.0, %v2745
        %v2747 = vpop.f32.mrb[0].mxu0
        %2748 = vdwg.mxu0
        %v2749 = vadd.f32 %v2607, %v2719
        %v2750 = vadd.f32 %v2608, %v2722
        %v2751 = vadd.f32 %v2609, %v2727
        %v2752 = vadd.f32 %v2610, %v2730
        %v2753 = vadd.f32 %v2611, %v2735
        %v2754 = vadd.f32 %v2612, %v2738
        %v2755 = vadd.f32 %v2613, %v2743
        %v2756 = vadd.f32 %v2614, %v2746
        %2757 = vst [vmem:[#allocation7] sm:$0xff] %v2749
        %2758 = vst [vmem:[#allocation7 + $0x8] sm:$0xff] %v2750
        %2759 = vst [vmem:[#allocation7 + $0x10] sm:$0xff] %v2751
        %2760 = vst [vmem:[#allocation7 + $0x18] sm:$0xff] %v2752
        %2761 = vst [vmem:[#allocation7 + $0x20] sm:$0xff] %v2753
        %2762 = vst [vmem:[#allocation7 + $0x28] sm:$0xff] %v2754
        %2763 = vst [vmem:[#allocation7 + $0x30] sm:$0xff] %v2755
        %2764 = vst [vmem:[#allocation7 + $0x38] sm:$0xff] %v2756
        %v2765 = vld [vmem:[%s1819 + $0x2] sm:$0xff]
        %v2766 = vld [vmem:[%s1819 + $0x12] sm:$0xff]
        %v2767 = vld [vmem:[%s1819 + $0x22] sm:$0xff]
        %v2768 = vld [vmem:[%s1819 + $0x32] sm:$0xff]
        %v2769 = vld [vmem:[%s1819 + $0x42] sm:$0xff]
        %v2770 = vld [vmem:[%s1819 + $0x52] sm:$0xff]
        %v2771 = vld [vmem:[%s1819 + $0x62] sm:$0xff]
        %v2772 = vld [vmem:[%s1819 + $0x72] sm:$0xff]
        %v2773 = vld [vmem:[#allocation7] sm:$0xff]
        %v2774 = vld [vmem:[#allocation7 + $0x8] sm:$0xff]
        %v2775 = vld [vmem:[#allocation7 + $0x10] sm:$0xff]
        %v2776 = vld [vmem:[#allocation7 + $0x18] sm:$0xff]
        %v2777 = vld [vmem:[#allocation7 + $0x20] sm:$0xff]
        %v2778 = vld [vmem:[#allocation7 + $0x28] sm:$0xff]
        %v2779 = vld [vmem:[#allocation7 + $0x30] sm:$0xff]
        %v2780 = vld [vmem:[#allocation7 + $0x38] sm:$0xff]
        %v2781 = vpack.c.bf16 %v2766, %v2765
        %v2782 = vpack.c.bf16 %v2768, %v2767
        %v2783 = vpack.c.bf16 %v2770, %v2769
        %v2784 = vpack.c.bf16 %v2772, %v2771
        %s2785 = scalar_lea.vmem %s10, 320
        %v2786 = vld [vmem:[%s2785] sm:$0xf]
        %v2787 = vld [vmem:[%s2785 + $0x4] sm:$0xf]
        %v2788 = vld [vmem:[%s2785 + $0x8] sm:$0xf]
        %v2789 = vld [vmem:[%s2785 + $0xc] sm:$0xf]
        %v2790 = vld [vmem:[%s2785 + $0x10] sm:$0xf]
        %v2791 = vld [vmem:[%s2785 + $0x14] sm:$0xf]
        %v2792 = vld [vmem:[%s2785 + $0x18] sm:$0xf]
        %v2793 = vld [vmem:[%s2785 + $0x1c] sm:$0xf]
        %v2794 = vld [vmem:[%s2785 + $0x20] sm:$0xf]
        %v2795 = vld [vmem:[%s2785 + $0x24] sm:$0xf]
        %v2796 = vld [vmem:[%s2785 + $0x28] sm:$0xf]
        %v2797 = vld [vmem:[%s2785 + $0x2c] sm:$0xf]
        %v2798 = vld [vmem:[%s2785 + $0x30] sm:$0xf]
        %v2799 = vld [vmem:[%s2785 + $0x34] sm:$0xf]
        %v2800 = vld [vmem:[%s2785 + $0x38] sm:$0xf]
        %v2801 = vld [vmem:[%s2785 + $0x3c] sm:$0xf]
        %v2818 = vunpack.c.l.b16 %v2786
        %v2819 = vunpack.c.l.b16 %v2787
        %v2820 = vunpack.c.l.b16 %v2788
        %v2821 = vunpack.c.l.b16 %v2789
        %v2822 = vunpack.c.l.b16 %v2790
        %v2823 = vunpack.c.l.b16 %v2791
        %v2824 = vunpack.c.l.b16 %v2792
        %v2825 = vunpack.c.l.b16 %v2793
        %v2826 = vunpack.c.l.b16 %v2794
        %v2827 = vunpack.c.l.b16 %v2795
        %v2828 = vunpack.c.l.b16 %v2796
        %v2829 = vunpack.c.l.b16 %v2797
        %v2830 = vunpack.c.l.b16 %v2798
        %v2831 = vunpack.c.l.b16 %v2799
        %v2832 = vunpack.c.l.b16 %v2800
        %v2833 = vunpack.c.l.b16 %v2801
        %v2834 = vpack.c.b16 %v2819, %v2818
        %v2835 = vpack.c.b16 %v2821, %v2820
        %v2836 = vpack.c.b16 %v2823, %v2822
        %v2837 = vpack.c.b16 %v2825, %v2824
        %v2838 = vpack.c.b16 %v2827, %v2826
        %v2839 = vpack.c.b16 %v2829, %v2828
        %v2840 = vpack.c.b16 %v2831, %v2830
        %v2841 = vpack.c.b16 %v2833, %v2832
        %2850 = vmatprep.subr.bf16.mxu0 0
        %2851 = vmatpush1.bf16.msra.mxu0 %v2834
        %2852 = vmatprep.subr.bf16.mxu0 0
        %2853 = vmatpush1.bf16.msra.mxu0 %v2835
        %2854 = vmatprep.subr.bf16.mxu0 0
        %2855 = vmatpush1.bf16.msra.mxu0 %v2836
        %2856 = vmatprep.subr.bf16.mxu0 0
        %2857 = vmatpush1.bf16.msra.mxu0 %v2837
        %2858 = vmatprep.subr.bf16.mxu0 0
        %2859 = vmatpush1.bf16.msra.mxu0 %v2838
        %2860 = vmatprep.subr.bf16.mxu0 0
        %2861 = vmatpush1.bf16.msra.mxu0 %v2839
        %2862 = vmatprep.subr.bf16.mxu0 0
        %2863 = vmatpush1.bf16.msra.mxu0 %v2840
        %2864 = vmatprep.subr.bf16.mxu0 0
        %2865 = vmatpush1.bf16.msra.mxu0 %v2841
        %2866 = vmatprep.subr.bf16.mxu0 0
        %2867 = vmatpush1.bf16.msra.mxu0 0
        %2868 = vmatprep.subr.bf16.mxu0 0
        %2869 = vmatpush1.bf16.msra.mxu0 0
        %2870 = vmatprep.subr.bf16.mxu0 0
        %2871 = vmatpush1.bf16.msra.mxu0 0
        %2872 = vmatprep.subr.bf16.mxu0 0
        %2873 = vmatpush1.bf16.msra.mxu0 0
        %2874 = vmatprep.subr.bf16.mxu0 0
        %2875 = vmatpush1.bf16.msra.mxu0 0
        %2876 = vmatprep.subr.bf16.mxu0 0
        %2877 = vmatpush1.bf16.msra.mxu0 0
        %2878 = vmatprep.subr.bf16.mxu0 0
        %2879 = vmatpush1.bf16.msra.mxu0 0
        %2880 = vmatprep.subr.bf16.mxu0 0
        %2881 = vmatpush1.bf16.msra.mxu0 0
        %2882 = vmatprep.mubr.bf16.mxu0 0
        %2883 = vmatmul.mubr.bf16.gmra.mrb[0].mxu0 %v2781
        %v2884 = vpop.f32.mrb[0].mxu0
        %v2885 = vadd.f32 0.0, %v2884
        %v2886 = vpop.f32.mrb[0].mxu0
        %v2887 = vpop.f32.mrb[0].mxu0
        %v2888 = vadd.f32 0.0, %v2887
        %v2889 = vpop.f32.mrb[0].mxu0
        %2890 = vmatprep.mubr.bf16.mxu0 0
        %2891 = vmatmul.mubr.bf16.gmra.mrb[0].mxu0 %v2782
        %v2892 = vpop.f32.mrb[0].mxu0
        %v2893 = vadd.f32 0.0, %v2892
        %v2894 = vpop.f32.mrb[0].mxu0
        %v2895 = vpop.f32.mrb[0].mxu0
        %v2896 = vadd.f32 0.0, %v2895
        %v2897 = vpop.f32.mrb[0].mxu0
        %2898 = vmatprep.mubr.bf16.mxu0 0
        %2899 = vmatmul.mubr.bf16.gmra.mrb[0].mxu0 %v2783
        %v2900 = vpop.f32.mrb[0].mxu0
        %v2901 = vadd.f32 0.0, %v2900
        %v2902 = vpop.f32.mrb[0].mxu0
        %v2903 = vpop.f32.mrb[0].mxu0
        %v2904 = vadd.f32 0.0, %v2903
        %v2905 = vpop.f32.mrb[0].mxu0
        %2906 = vmatprep.mubr.bf16.mxu0 0
        %2907 = vmatmul.mubr.bf16.gmra.mrb[0].mxu0 %v2784
        %v2908 = vpop.f32.mrb[0].mxu0
        %v2909 = vadd.f32 0.0, %v2908
        %v2910 = vpop.f32.mrb[0].mxu0
        %v2911 = vpop.f32.mrb[0].mxu0
        %v2912 = vadd.f32 0.0, %v2911
        %v2913 = vpop.f32.mrb[0].mxu0
        %2914 = vdwg.mxu0
        %v2915 = vadd.f32 %v2773, %v2885
        %v2916 = vadd.f32 %v2774, %v2888
        %v2917 = vadd.f32 %v2775, %v2893
        %v2918 = vadd.f32 %v2776, %v2896
        %v2919 = vadd.f32 %v2777, %v2901
        %v2920 = vadd.f32 %v2778, %v2904
        %v2921 = vadd.f32 %v2779, %v2909
        %v2922 = vadd.f32 %v2780, %v2912
        %2923 = vst [vmem:[#allocation7] sm:$0xff] %v2915
        %2924 = vst [vmem:[#allocation7 + $0x8] sm:$0xff] %v2916
        %2925 = vst [vmem:[#allocation7 + $0x10] sm:$0xff] %v2917
        %2926 = vst [vmem:[#allocation7 + $0x18] sm:$0xff] %v2918
        %2927 = vst [vmem:[#allocation7 + $0x20] sm:$0xff] %v2919
        %2928 = vst [vmem:[#allocation7 + $0x28] sm:$0xff] %v2920
        %2929 = vst [vmem:[#allocation7 + $0x30] sm:$0xff] %v2921
        %2930 = vst [vmem:[#allocation7 + $0x38] sm:$0xff] %v2922
        %s2931 = scalar_lea.vmem [#allocation6], 32
        %v2932 = vld [vmem:[%s2931] sm:$0xff]
        %v2933 = vld [vmem:[%s2931 + $0x10] sm:$0xff]
        %v2934 = vld [vmem:[%s2931 + $0x20] sm:$0xff]
        %v2935 = vld [vmem:[%s2931 + $0x30] sm:$0xff]
        %v2936 = vld [vmem:[%s2931 + $0x40] sm:$0xff]
        %v2937 = vld [vmem:[%s2931 + $0x50] sm:$0xff]
        %v2938 = vld [vmem:[%s2931 + $0x60] sm:$0xff]
        %v2939 = vld [vmem:[%s2931 + $0x70] sm:$0xff]
        %v2940 = vld [vmem:[#allocation7] sm:$0xff]
        %v2941 = vld [vmem:[#allocation7 + $0x8] sm:$0xff]
        %v2942 = vld [vmem:[#allocation7 + $0x10] sm:$0xff]
        %v2943 = vld [vmem:[#allocation7 + $0x18] sm:$0xff]
        %v2944 = vld [vmem:[#allocation7 + $0x20] sm:$0xff]
        %v2945 = vld [vmem:[#allocation7 + $0x28] sm:$0xff]
        %v2946 = vld [vmem:[#allocation7 + $0x30] sm:$0xff]
        %v2947 = vld [vmem:[#allocation7 + $0x38] sm:$0xff]
        %v2948 = vpack.c.bf16 %v2933, %v2932
        %v2949 = vpack.c.bf16 %v2935, %v2934
        %v2950 = vpack.c.bf16 %v2937, %v2936
        %v2951 = vpack.c.bf16 %v2939, %v2938
        %s2952 = scalar_lea.vmem %s10, 384
        %v2953 = vld [vmem:[%s2952] sm:$0xf]
        %v2954 = vld [vmem:[%s2952 + $0x4] sm:$0xf]
        %v2955 = vld [vmem:[%s2952 + $0x8] sm:$0xf]
        %v2956 = vld [vmem:[%s2952 + $0xc] sm:$0xf]
        %v2957 = vld [vmem:[%s2952 + $0x10] sm:$0xf]
        %v2958 = vld [vmem:[%s2952 + $0x14] sm:$0xf]
        %v2959 = vld [vmem:[%s2952 + $0x18] sm:$0xf]
        %v2960 = vld [vmem:[%s2952 + $0x1c] sm:$0xf]
        %v2961 = vld [vmem:[%s2952 + $0x20] sm:$0xf]
        %v2962 = vld [vmem:[%s2952 + $0x24] sm:$0xf]
        %v2963 = vld [vmem:[%s2952 + $0x28] sm:$0xf]
        %v2964 = vld [vmem:[%s2952 + $0x2c] sm:$0xf]
        %v2965 = vld [vmem:[%s2952 + $0x30] sm:$0xf]
        %v2966 = vld [vmem:[%s2952 + $0x34] sm:$0xf]
        %v2967 = vld [vmem:[%s2952 + $0x38] sm:$0xf]
        %v2968 = vld [vmem:[%s2952 + $0x3c] sm:$0xf]
        %v2985 = vunpack.c.l.b16 %v2953
        %v2986 = vunpack.c.l.b16 %v2954
        %v2987 = vunpack.c.l.b16 %v2955
        %v2988 = vunpack.c.l.b16 %v2956
        %v2989 = vunpack.c.l.b16 %v2957
        %v2990 = vunpack.c.l.b16 %v2958
        %v2991 = vunpack.c.l.b16 %v2959
        %v2992 = vunpack.c.l.b16 %v2960
        %v2993 = vunpack.c.l.b16 %v2961
        %v2994 = vunpack.c.l.b16 %v2962
        %v2995 = vunpack.c.l.b16 %v2963
        %v2996 = vunpack.c.l.b16 %v2964
        %v2997 = vunpack.c.l.b16 %v2965
        %v2998 = vunpack.c.l.b16 %v2966
        %v2999 = vunpack.c.l.b16 %v2967
        %v3000 = vunpack.c.l.b16 %v2968
        %v3001 = vpack.c.b16 %v2986, %v2985
        %v3002 = vpack.c.b16 %v2988, %v2987
        %v3003 = vpack.c.b16 %v2990, %v2989
        %v3004 = vpack.c.b16 %v2992, %v2991
        %v3005 = vpack.c.b16 %v2994, %v2993
        %v3006 = vpack.c.b16 %v2996, %v2995
        %v3007 = vpack.c.b16 %v2998, %v2997
        %v3008 = vpack.c.b16 %v3000, %v2999
        %3017 = vmatprep.subr.bf16.mxu0 0
        %3018 = vmatpush1.bf16.msra.mxu0 %v3001
        %3019 = vmatprep.subr.bf16.mxu0 0
        %3020 = vmatpush1.bf16.msra.mxu0 %v3002
        %3021 = vmatprep.subr.bf16.mxu0 0
        %3022 = vmatpush1.bf16.msra.mxu0 %v3003
        %3023 = vmatprep.subr.bf16.mxu0 0
        %3024 = vmatpush1.bf16.msra.mxu0 %v3004
        %3025 = vmatprep.subr.bf16.mxu0 0
        %3026 = vmatpush1.bf16.msra.mxu0 %v3005
        %3027 = vmatprep.subr.bf16.mxu0 0
        %3028 = vmatpush1.bf16.msra.mxu0 %v3006
        %3029 = vmatprep.subr.bf16.mxu0 0
        %3030 = vmatpush1.bf16.msra.mxu0 %v3007
        %3031 = vmatprep.subr.bf16.mxu0 0
        %3032 = vmatpush1.bf16.msra.mxu0 %v3008
        %3033 = vmatprep.subr.bf16.mxu0 0
        %3034 = vmatpush1.bf16.msra.mxu0 0
        %3035 = vmatprep.subr.bf16.mxu0 0
        %3036 = vmatpush1.bf16.msra.mxu0 0
        %3037 = vmatprep.subr.bf16.mxu0 0
        %3038 = vmatpush1.bf16.msra.mxu0 0
        %3039 = vmatprep.subr.bf16.mxu0 0
        %3040 = vmatpush1.bf16.msra.mxu0 0
        %3041 = vmatprep.subr.bf16.mxu0 0
        %3042 = vmatpush1.bf16.msra.mxu0 0
        %3043 = vmatprep.subr.bf16.mxu0 0
        %3044 = vmatpush1.bf16.msra.mxu0 0
        %3045 = vmatprep.subr.bf16.mxu0 0
        %3046 = vmatpush1.bf16.msra.mxu0 0
        %3047 = vmatprep.subr.bf16.mxu0 0
        %3048 = vmatpush1.bf16.msra.mxu0 0
        %3049 = vmatprep.mubr.bf16.mxu0 0
        %3050 = vmatmul.mubr.bf16.gmra.mrb[0].mxu0 %v2948
        %v3051 = vpop.f32.mrb[0].mxu0
        %v3052 = vadd.f32 0.0, %v3051
        %v3053 = vpop.f32.mrb[0].mxu0
        %v3054 = vpop.f32.mrb[0].mxu0
        %v3055 = vadd.f32 0.0, %v3054
        %v3056 = vpop.f32.mrb[0].mxu0
        %3057 = vmatprep.mubr.bf16.mxu0 0
        %3058 = vmatmul.mubr.bf16.gmra.mrb[0].mxu0 %v2949
        %v3059 = vpop.f32.mrb[0].mxu0
        %v3060 = vadd.f32 0.0, %v3059
        %v3061 = vpop.f32.mrb[0].mxu0
        %v3062 = vpop.f32.mrb[0].mxu0
        %v3063 = vadd.f32 0.0, %v3062
        %v3064 = vpop.f32.mrb[0].mxu0
        %3065 = vmatprep.mubr.bf16.mxu0 0
        %3066 = vmatmul.mubr.bf16.gmra.mrb[0].mxu0 %v2950
        %v3067 = vpop.f32.mrb[0].mxu0
        %v3068 = vadd.f32 0.0, %v3067
        %v3069 = vpop.f32.mrb[0].mxu0
        %v3070 = vpop.f32.mrb[0].mxu0
        %v3071 = vadd.f32 0.0, %v3070
        %v3072 = vpop.f32.mrb[0].mxu0
        %3073 = vmatprep.mubr.bf16.mxu0 0
        %3074 = vmatmul.mubr.bf16.gmra.mrb[0].mxu0 %v2951
        %v3075 = vpop.f32.mrb[0].mxu0
        %v3076 = vadd.f32 0.0, %v3075
        %v3077 = vpop.f32.mrb[0].mxu0
        %v3078 = vpop.f32.mrb[0].mxu0
        %v3079 = vadd.f32 0.0, %v3078
        %v3080 = vpop.f32.mrb[0].mxu0
        %3081 = vdwg.mxu0
        %v3082 = vadd.f32 %v2940, %v3052
        %v3083 = vadd.f32 %v2941, %v3055
        %v3084 = vadd.f32 %v2942, %v3060
        %v3085 = vadd.f32 %v2943, %v3063
        %v3086 = vadd.f32 %v2944, %v3068
        %v3087 = vadd.f32 %v2945, %v3071
        %v3088 = vadd.f32 %v2946, %v3076
        %v3089 = vadd.f32 %v2947, %v3079
        %3090 = vst [vmem:[#allocation7] sm:$0xff] %v3082
        %3091 = vst [vmem:[#allocation7 + $0x8] sm:$0xff] %v3083
        %3092 = vst [vmem:[#allocation7 + $0x10] sm:$0xff] %v3084
        %3093 = vst [vmem:[#allocation7 + $0x18] sm:$0xff] %v3085
        %3094 = vst [vmem:[#allocation7 + $0x20] sm:$0xff] %v3086
        %3095 = vst [vmem:[#allocation7 + $0x28] sm:$0xff] %v3087
        %3096 = vst [vmem:[#allocation7 + $0x30] sm:$0xff] %v3088
        %3097 = vst [vmem:[#allocation7 + $0x38] sm:$0xff] %v3089
        %v3098 = vld [vmem:[%s2931 + $0x1] sm:$0xff]
        %v3099 = vld [vmem:[%s2931 + $0x11] sm:$0xff]
        %v3100 = vld [vmem:[%s2931 + $0x21] sm:$0xff]
        %v3101 = vld [vmem:[%s2931 + $0x31] sm:$0xff]
        %v3102 = vld [vmem:[%s2931 + $0x41] sm:$0xff]
        %v3103 = vld [vmem:[%s2931 + $0x51] sm:$0xff]
        %v3104 = vld [vmem:[%s2931 + $0x61] sm:$0xff]
        %v3105 = vld [vmem:[%s2931 + $0x71] sm:$0xff]
        %v3106 = vld [vmem:[#allocation7] sm:$0xff]
        %v3107 = vld [vmem:[#allocation7 + $0x8] sm:$0xff]
        %v3108 = vld [vmem:[#allocation7 + $0x10] sm:$0xff]
        %v3109 = vld [vmem:[#allocation7 + $0x18] sm:$0xff]
        %v3110 = vld [vmem:[#allocation7 + $0x20] sm:$0xff]
        %v3111 = vld [vmem:[#allocation7 + $0x28] sm:$0xff]
        %v3112 = vld [vmem:[#allocation7 + $0x30] sm:$0xff]
        %v3113 = vld [vmem:[#allocation7 + $0x38] sm:$0xff]
        %v3114 = vpack.c.bf16 %v3099, %v3098
        %v3115 = vpack.c.bf16 %v3101, %v3100
        %v3116 = vpack.c.bf16 %v3103, %v3102
        %v3117 = vpack.c.bf16 %v3105, %v3104
        %s3118 = scalar_lea.vmem %s10, 448
        %v3119 = vld [vmem:[%s3118] sm:$0xf]
        %v3120 = vld [vmem:[%s3118 + $0x4] sm:$0xf]
        %v3121 = vld [vmem:[%s3118 + $0x8] sm:$0xf]
        %v3122 = vld [vmem:[%s3118 + $0xc] sm:$0xf]
        %v3123 = vld [vmem:[%s3118 + $0x10] sm:$0xf]
        %v3124 = vld [vmem:[%s3118 + $0x14] sm:$0xf]
        %v3125 = vld [vmem:[%s3118 + $0x18] sm:$0xf]
        %v3126 = vld [vmem:[%s3118 + $0x1c] sm:$0xf]
        %v3127 = vld [vmem:[%s3118 + $0x20] sm:$0xf]
        %v3128 = vld [vmem:[%s3118 + $0x24] sm:$0xf]
        %v3129 = vld [vmem:[%s3118 + $0x28] sm:$0xf]
        %v3130 = vld [vmem:[%s3118 + $0x2c] sm:$0xf]
        %v3131 = vld [vmem:[%s3118 + $0x30] sm:$0xf]
        %v3132 = vld [vmem:[%s3118 + $0x34] sm:$0xf]
        %v3133 = vld [vmem:[%s3118 + $0x38] sm:$0xf]
        %v3134 = vld [vmem:[%s3118 + $0x3c] sm:$0xf]
        %v3151 = vunpack.c.l.b16 %v3119
        %v3152 = vunpack.c.l.b16 %v3120
        %v3153 = vunpack.c.l.b16 %v3121
        %v3154 = vunpack.c.l.b16 %v3122
        %v3155 = vunpack.c.l.b16 %v3123
        %v3156 = vunpack.c.l.b16 %v3124
        %v3157 = vunpack.c.l.b16 %v3125
        %v3158 = vunpack.c.l.b16 %v3126
        %v3159 = vunpack.c.l.b16 %v3127
        %v3160 = vunpack.c.l.b16 %v3128
        %v3161 = vunpack.c.l.b16 %v3129
        %v3162 = vunpack.c.l.b16 %v3130
        %v3163 = vunpack.c.l.b16 %v3131
        %v3164 = vunpack.c.l.b16 %v3132
        %v3165 = vunpack.c.l.b16 %v3133
        %v3166 = vunpack.c.l.b16 %v3134
        %v3167 = vpack.c.b16 %v3152, %v3151
        %v3168 = vpack.c.b16 %v3154, %v3153
        %v3169 = vpack.c.b16 %v3156, %v3155
        %v3170 = vpack.c.b16 %v3158, %v3157
        %v3171 = vpack.c.b16 %v3160, %v3159
        %v3172 = vpack.c.b16 %v3162, %v3161
        %v3173 = vpack.c.b16 %v3164, %v3163
        %v3174 = vpack.c.b16 %v3166, %v3165
        %3183 = vmatprep.subr.bf16.mxu0 0
        %3184 = vmatpush1.bf16.msra.mxu0 %v3167
        %3185 = vmatprep.subr.bf16.mxu0 0
        %3186 = vmatpush1.bf16.msra.mxu0 %v3168
        %3187 = vmatprep.subr.bf16.mxu0 0
        %3188 = vmatpush1.bf16.msra.mxu0 %v3169
        %3189 = vmatprep.subr.bf16.mxu0 0
        %3190 = vmatpush1.bf16.msra.mxu0 %v3170
        %3191 = vmatprep.subr.bf16.mxu0 0
        %3192 = vmatpush1.bf16.msra.mxu0 %v3171
        %3193 = vmatprep.subr.bf16.mxu0 0
        %3194 = vmatpush1.bf16.msra.mxu0 %v3172
        %3195 = vmatprep.subr.bf16.mxu0 0
        %3196 = vmatpush1.bf16.msra.mxu0 %v3173
        %3197 = vmatprep.subr.bf16.mxu0 0
        %3198 = vmatpush1.bf16.msra.mxu0 %v3174
        %3199 = vmatprep.subr.bf16.mxu0 0
        %3200 = vmatpush1.bf16.msra.mxu0 0
        %3201 = vmatprep.subr.bf16.mxu0 0
        %3202 = vmatpush1.bf16.msra.mxu0 0
        %3203 = vmatprep.subr.bf16.mxu0 0
        %3204 = vmatpush1.bf16.msra.mxu0 0
        %3205 = vmatprep.subr.bf16.mxu0 0
        %3206 = vmatpush1.bf16.msra.mxu0 0
        %3207 = vmatprep.subr.bf16.mxu0 0
        %3208 = vmatpush1.bf16.msra.mxu0 0
        %3209 = vmatprep.subr.bf16.mxu0 0
        %3210 = vmatpush1.bf16.msra.mxu0 0
        %3211 = vmatprep.subr.bf16.mxu0 0
        %3212 = vmatpush1.bf16.msra.mxu0 0
        %3213 = vmatprep.subr.bf16.mxu0 0
        %3214 = vmatpush1.bf16.msra.mxu0 0
        %3215 = vmatprep.mubr.bf16.mxu0 0
        %3216 = vmatmul.mubr.bf16.gmra.mrb[0].mxu0 %v3114
        %v3217 = vpop.f32.mrb[0].mxu0
        %v3218 = vadd.f32 0.0, %v3217
        %v3219 = vpop.f32.mrb[0].mxu0
        %v3220 = vpop.f32.mrb[0].mxu0
        %v3221 = vadd.f32 0.0, %v3220
        %v3222 = vpop.f32.mrb[0].mxu0
        %3223 = vmatprep.mubr.bf16.mxu0 0
        %3224 = vmatmul.mubr.bf16.gmra.mrb[0].mxu0 %v3115
        %v3225 = vpop.f32.mrb[0].mxu0
        %v3226 = vadd.f32 0.0, %v3225
        %v3227 = vpop.f32.mrb[0].mxu0
        %v3228 = vpop.f32.mrb[0].mxu0
        %v3229 = vadd.f32 0.0, %v3228
        %v3230 = vpop.f32.mrb[0].mxu0
        %3231 = vmatprep.mubr.bf16.mxu0 0
        %3232 = vmatmul.mubr.bf16.gmra.mrb[0].mxu0 %v3116
        %v3233 = vpop.f32.mrb[0].mxu0
        %v3234 = vadd.f32 0.0, %v3233
        %v3235 = vpop.f32.mrb[0].mxu0
        %v3236 = vpop.f32.mrb[0].mxu0
        %v3237 = vadd.f32 0.0, %v3236
        %v3238 = vpop.f32.mrb[0].mxu0
        %3239 = vmatprep.mubr.bf16.mxu0 0
        %3240 = vmatmul.mubr.bf16.gmra.mrb[0].mxu0 %v3117
        %v3241 = vpop.f32.mrb[0].mxu0
        %v3242 = vadd.f32 0.0, %v3241
        %v3243 = vpop.f32.mrb[0].mxu0
        %v3244 = vpop.f32.mrb[0].mxu0
        %v3245 = vadd.f32 0.0, %v3244
        %v3246 = vpop.f32.mrb[0].mxu0
        %3247 = vdwg.mxu0
        %v3248 = vadd.f32 %v3106, %v3218
        %v3249 = vadd.f32 %v3107, %v3221
        %v3250 = vadd.f32 %v3108, %v3226
        %v3251 = vadd.f32 %v3109, %v3229
        %v3252 = vadd.f32 %v3110, %v3234
        %v3253 = vadd.f32 %v3111, %v3237
        %v3254 = vadd.f32 %v3112, %v3242
        %v3255 = vadd.f32 %v3113, %v3245
        %3256 = vst [vmem:[#allocation7] sm:$0xff] %v3248
        %3257 = vst [vmem:[#allocation7 + $0x8] sm:$0xff] %v3249
        %3258 = vst [vmem:[#allocation7 + $0x10] sm:$0xff] %v3250
        %3259 = vst [vmem:[#allocation7 + $0x18] sm:$0xff] %v3251
        %3260 = vst [vmem:[#allocation7 + $0x20] sm:$0xff] %v3252
        %3261 = vst [vmem:[#allocation7 + $0x28] sm:$0xff] %v3253
        %3262 = vst [vmem:[#allocation7 + $0x30] sm:$0xff] %v3254
        %3263 = vst [vmem:[#allocation7 + $0x38] sm:$0xff] %v3255
        %v3264 = vld [vmem:[%s2931 + $0x2] sm:$0xff]
        %v3265 = vld [vmem:[%s2931 + $0x12] sm:$0xff]
        %v3266 = vld [vmem:[%s2931 + $0x22] sm:$0xff]
        %v3267 = vld [vmem:[%s2931 + $0x32] sm:$0xff]
        %v3268 = vld [vmem:[%s2931 + $0x42] sm:$0xff]
        %v3269 = vld [vmem:[%s2931 + $0x52] sm:$0xff]
        %v3270 = vld [vmem:[%s2931 + $0x62] sm:$0xff]
        %v3271 = vld [vmem:[%s2931 + $0x72] sm:$0xff]
        %v3272 = vld [vmem:[#allocation7] sm:$0xff]
        %v3273 = vld [vmem:[#allocation7 + $0x8] sm:$0xff]
        %v3274 = vld [vmem:[#allocation7 + $0x10] sm:$0xff]
        %v3275 = vld [vmem:[#allocation7 + $0x18] sm:$0xff]
        %v3276 = vld [vmem:[#allocation7 + $0x20] sm:$0xff]
        %v3277 = vld [vmem:[#allocation7 + $0x28] sm:$0xff]
        %v3278 = vld [vmem:[#allocation7 + $0x30] sm:$0xff]
        %v3279 = vld [vmem:[#allocation7 + $0x38] sm:$0xff]
        %v3280 = vpack.c.bf16 %v3265, %v3264
        %v3281 = vpack.c.bf16 %v3267, %v3266
        %v3282 = vpack.c.bf16 %v3269, %v3268
        %v3283 = vpack.c.bf16 %v3271, %v3270
        %s3284 = scalar_lea.vmem %s10, 512
        %v3285 = vld [vmem:[%s3284] sm:$0xf]
        %v3286 = vld [vmem:[%s3284 + $0x4] sm:$0xf]
        %v3287 = vld [vmem:[%s3284 + $0x8] sm:$0xf]
        %v3288 = vld [vmem:[%s3284 + $0xc] sm:$0xf]
        %v3289 = vld [vmem:[%s3284 + $0x10] sm:$0xf]
        %v3290 = vld [vmem:[%s3284 + $0x14] sm:$0xf]
        %v3291 = vld [vmem:[%s3284 + $0x18] sm:$0xf]
        %v3292 = vld [vmem:[%s3284 + $0x1c] sm:$0xf]
        %v3293 = vld [vmem:[%s3284 + $0x20] sm:$0xf]
        %v3294 = vld [vmem:[%s3284 + $0x24] sm:$0xf]
        %v3295 = vld [vmem:[%s3284 + $0x28] sm:$0xf]
        %v3296 = vld [vmem:[%s3284 + $0x2c] sm:$0xf]
        %v3297 = vld [vmem:[%s3284 + $0x30] sm:$0xf]
        %v3298 = vld [vmem:[%s3284 + $0x34] sm:$0xf]
        %v3299 = vld [vmem:[%s3284 + $0x38] sm:$0xf]
        %v3300 = vld [vmem:[%s3284 + $0x3c] sm:$0xf]
        %v3317 = vunpack.c.l.b16 %v3285
        %v3318 = vunpack.c.l.b16 %v3286
        %v3319 = vunpack.c.l.b16 %v3287
        %v3320 = vunpack.c.l.b16 %v3288
        %v3321 = vunpack.c.l.b16 %v3289
        %v3322 = vunpack.c.l.b16 %v3290
        %v3323 = vunpack.c.l.b16 %v3291
        %v3324 = vunpack.c.l.b16 %v3292
        %v3325 = vunpack.c.l.b16 %v3293
        %v3326 = vunpack.c.l.b16 %v3294
        %v3327 = vunpack.c.l.b16 %v3295
        %v3328 = vunpack.c.l.b16 %v3296
        %v3329 = vunpack.c.l.b16 %v3297
        %v3330 = vunpack.c.l.b16 %v3298
        %v3331 = vunpack.c.l.b16 %v3299
        %v3332 = vunpack.c.l.b16 %v3300
        %v3333 = vpack.c.b16 %v3318, %v3317
        %v3334 = vpack.c.b16 %v3320, %v3319
        %v3335 = vpack.c.b16 %v3322, %v3321
        %v3336 = vpack.c.b16 %v3324, %v3323
        %v3337 = vpack.c.b16 %v3326, %v3325
        %v3338 = vpack.c.b16 %v3328, %v3327
        %v3339 = vpack.c.b16 %v3330, %v3329
        %v3340 = vpack.c.b16 %v3332, %v3331
        %3349 = vmatprep.subr.bf16.mxu0 0
        %3350 = vmatpush1.bf16.msra.mxu0 %v3333
        %3351 = vmatprep.subr.bf16.mxu0 0
        %3352 = vmatpush1.bf16.msra.mxu0 %v3334
        %3353 = vmatprep.subr.bf16.mxu0 0
        %3354 = vmatpush1.bf16.msra.mxu0 %v3335
        %3355 = vmatprep.subr.bf16.mxu0 0
        %3356 = vmatpush1.bf16.msra.mxu0 %v3336
        %3357 = vmatprep.subr.bf16.mxu0 0
        %3358 = vmatpush1.bf16.msra.mxu0 %v3337
        %3359 = vmatprep.subr.bf16.mxu0 0
        %3360 = vmatpush1.bf16.msra.mxu0 %v3338
        %3361 = vmatprep.subr.bf16.mxu0 0
        %3362 = vmatpush1.bf16.msra.mxu0 %v3339
        %3363 = vmatprep.subr.bf16.mxu0 0
        %3364 = vmatpush1.bf16.msra.mxu0 %v3340
        %3365 = vmatprep.subr.bf16.mxu0 0
        %3366 = vmatpush1.bf16.msra.mxu0 0
        %3367 = vmatprep.subr.bf16.mxu0 0
        %3368 = vmatpush1.bf16.msra.mxu0 0
        %3369 = vmatprep.subr.bf16.mxu0 0
        %3370 = vmatpush1.bf16.msra.mxu0 0
        %3371 = vmatprep.subr.bf16.mxu0 0
        %3372 = vmatpush1.bf16.msra.mxu0 0
        %3373 = vmatprep.subr.bf16.mxu0 0
        %3374 = vmatpush1.bf16.msra.mxu0 0
        %3375 = vmatprep.subr.bf16.mxu0 0
        %3376 = vmatpush1.bf16.msra.mxu0 0
        %3377 = vmatprep.subr.bf16.mxu0 0
        %3378 = vmatpush1.bf16.msra.mxu0 0
        %3379 = vmatprep.subr.bf16.mxu0 0
        %3380 = vmatpush1.bf16.msra.mxu0 0
        %3381 = vmatprep.mubr.bf16.mxu0 0
        %3382 = vmatmul.mubr.bf16.gmra.mrb[0].mxu0 %v3280
        %v3383 = vpop.f32.mrb[0].mxu0
        %v3384 = vadd.f32 0.0, %v3383
        %v3385 = vpop.f32.mrb[0].mxu0
        %v3386 = vpop.f32.mrb[0].mxu0
        %v3387 = vadd.f32 0.0, %v3386
        %v3388 = vpop.f32.mrb[0].mxu0
        %3389 = vmatprep.mubr.bf16.mxu0 0
        %3390 = vmatmul.mubr.bf16.gmra.mrb[0].mxu0 %v3281
        %v3391 = vpop.f32.mrb[0].mxu0
        %v3392 = vadd.f32 0.0, %v3391
        %v3393 = vpop.f32.mrb[0].mxu0
        %v3394 = vpop.f32.mrb[0].mxu0
        %v3395 = vadd.f32 0.0, %v3394
        %v3396 = vpop.f32.mrb[0].mxu0
        %3397 = vmatprep.mubr.bf16.mxu0 0
        %3398 = vmatmul.mubr.bf16.gmra.mrb[0].mxu0 %v3282
        %v3399 = vpop.f32.mrb[0].mxu0
        %v3400 = vadd.f32 0.0, %v3399
        %v3401 = vpop.f32.mrb[0].mxu0
        %v3402 = vpop.f32.mrb[0].mxu0
        %v3403 = vadd.f32 0.0, %v3402
        %v3404 = vpop.f32.mrb[0].mxu0
        %3405 = vmatprep.mubr.bf16.mxu0 0
        %3406 = vmatmul.mubr.bf16.gmra.mrb[0].mxu0 %v3283
        %v3407 = vpop.f32.mrb[0].mxu0
        %v3408 = vadd.f32 0.0, %v3407
        %v3409 = vpop.f32.mrb[0].mxu0
        %v3410 = vpop.f32.mrb[0].mxu0
        %v3411 = vadd.f32 0.0, %v3410
        %v3412 = vpop.f32.mrb[0].mxu0
        %3413 = vdwg.mxu0
        %v3414 = vadd.f32 %v3272, %v3384
        %v3415 = vadd.f32 %v3273, %v3387
        %v3416 = vadd.f32 %v3274, %v3392
        %v3417 = vadd.f32 %v3275, %v3395
        %v3418 = vadd.f32 %v3276, %v3400
        %v3419 = vadd.f32 %v3277, %v3403
        %v3420 = vadd.f32 %v3278, %v3408
        %v3421 = vadd.f32 %v3279, %v3411
        %3422 = vst [vmem:[#allocation7] sm:$0xff] %v3414
        %3423 = vst [vmem:[#allocation7 + $0x8] sm:$0xff] %v3415
        %3424 = vst [vmem:[#allocation7 + $0x10] sm:$0xff] %v3416
        %3425 = vst [vmem:[#allocation7 + $0x18] sm:$0xff] %v3417
        %3426 = vst [vmem:[#allocation7 + $0x20] sm:$0xff] %v3418
        %3427 = vst [vmem:[#allocation7 + $0x28] sm:$0xff] %v3419
        %3428 = vst [vmem:[#allocation7 + $0x30] sm:$0xff] %v3420
        %3429 = vst [vmem:[#allocation7 + $0x38] sm:$0xff] %v3421
        %v3430 = vld [vmem:[#allocation7] sm:$0xff]
        %v3431 = vld [vmem:[#allocation7 + $0x8] sm:$0xff]
        %v3432 = vld [vmem:[#allocation7 + $0x10] sm:$0xff]
        %v3433 = vld [vmem:[#allocation7 + $0x18] sm:$0xff]
        %v3434 = vld [vmem:[#allocation7 + $0x20] sm:$0xff]
        %v3435 = vld [vmem:[#allocation7 + $0x28] sm:$0xff]
        %v3436 = vld [vmem:[#allocation7 + $0x30] sm:$0xff]
        %v3437 = vld [vmem:[#allocation7 + $0x38] sm:$0xff]
        %3438 = vst [vmem:[%s424] sm:$0xff] %v3430
        %3439 = vst [vmem:[%s424 + $0x8] sm:$0xff] %v3431
        %3440 = vst [vmem:[%s424 + $0x10] sm:$0xff] %v3432
        %3441 = vst [vmem:[%s424 + $0x18] sm:$0xff] %v3433
        %3442 = vst [vmem:[%s424 + $0x20] sm:$0xff] %v3434
        %3443 = vst [vmem:[%s424 + $0x28] sm:$0xff] %v3435
        %3444 = vst [vmem:[%s424 + $0x30] sm:$0xff] %v3436
        %3445 = vst [vmem:[%s424 + $0x38] sm:$0xff] %v3437
        %s3446 = sand.u32 %s284, 1
        %s3447 = scalar_lea.sflag [#allocation9], %s3446
        %s3448 = sand.u32 %s284, 1
        %s3449 = smul.addr %s3448, 64
        %s3450 = scalar_lea.vmem [#allocation8], %s3449
        // Predicated region
        $region65: #{tpu_custom_call.1} parent=63 // pred_check
          %p3451 = pneg %p294
        $region66: #{tpu_custom_call.1} parent=63 // pred_check_branch
          %3453 = sbr.rel (%p3451) target = $region68
        $region67: #{tpu_custom_call.1} parent=63 // pred_region
          %s3455 = ssub.s32 1024, 1024
          %3456 = vsyncadd %s3447, %s3455
          %s3457 = smul.addr %s25, 8
          %s3458 = smul.addr %s3457, 128
          %s3459 = scalar_lea.hbm %s11, %s3458
          %s3460 = sshll.u32 %s3450, 4
          %s3461 = int_to_ptr.vmem [resolvable:$true] %s3460
          %3466 = dma.vmem_to_hbm [thread:$0]  %s3461, 1024, %s3459, %s3447, 128, 128, 8
        $region68: #{tpu_custom_call.1} parent=63 // pred_fallthru
          _
      $region64: #{tpu_custom_call.1} parent=5 // pred_fallthru
        _
      %p3467 = scmp.le.s32.totalorder 2, %s20
      // Predicated region
      $region69: #{tpu_custom_call.1} parent=5 // pred_check
        %p3468 = pneg %p3467
      $region70: #{tpu_custom_call.1} parent=5 // pred_check_branch
        %3470 = sbr.rel (%p3468) target = $region72
      $region71: #{tpu_custom_call.1} parent=5 // pred_region
        %s3471 = ssub.s32 %s20, 2
        // Predicated region
        $region73: #{tpu_custom_call.1} parent=71 // pred_check
          %p3472 = pneg %p300
        $region74: #{tpu_custom_call.1} parent=71 // pred_check_branch
          %3474 = sbr.rel (%p3472) target = $region76
        $region75: #{tpu_custom_call.1} parent=71 // pred_region
          %s3475 = sand.u32 %s285, 1
          %s3476 = scalar_lea.sflag [#allocation9], %s3475
          %s3477 = sand.u32 %s285, 1
          %s3478 = smul.addr %s3477, 64
          %s3479 = scalar_lea.vmem [#allocation8], %s3478
          %3480 = dma.done %s3476, 1024
        $region76: #{tpu_custom_call.1} parent=71 // pred_fallthru
          _
      $region72: #{tpu_custom_call.1} parent=5 // pred_fallthru
        _
    $region6: #{tpu_custom_call.1} parent=1 // loop_footer
      %s24 = sadd.s32 1, %s20
    $region7: #{tpu_custom_call.1} parent=1 // loop_footer_branch
      %19 = sbr.rel target = $region3
    $region8: #{tpu_custom_call.1} parent=1 // loop_exit
      _
    %3481 = vsyncpa [#allocation9], 1
    %s3482 = scalar_lea.sflag [#allocation9], 1
    %3483 = vsyncpa %s3482, 1

</llo_original>
